<compile_context>
chip_gen: v7x
topology: tpu7x:2x2x1
jax: 0.10.0
libtpu: 0.0.40
codegen_flags: <defaults>
</compile_context>

<pallas_src>
import functools

import jax
import jax.numpy as jnp
import numpy as np
from jax import lax
from jax.experimental import pallas as pl
from jax.experimental.pallas import tpu as pltpu


DEFAULT_VMEM_LIMIT = 48 * 1024 * 1024   # leaves headroom on v7x (64 MiB physical)
MAX_VMEM_LIMIT = 56 * 1024 * 1024
REC_VMEM_BUDGET = 40 * 1024 * 1024      # target for the recurrence kernel blocks


# ----------------------------------------------------------------------------
# small helpers
# ----------------------------------------------------------------------------
def _round_up(x, m):
    return (x + m - 1) // m * m


def _pick_tile(dim, cap, quantum):
    """Largest multiple of `quantum` that divides `dim` and is <= cap.
    `dim` must itself be a multiple of `quantum`."""
    t = max(quantum, (min(dim, cap) // quantum) * quantum)
    while dim % t:
        t -= quantum
    return t


def _pick_time_block(T, cap):
    """Largest divisor of T that is <= cap (timesteps per grid step)."""
    tt = max(1, min(T, cap))
    while T % tt:
        tt -= 1
    return tt


def _compiler_params(dimension_semantics, est_vmem_bytes=None):
    if est_vmem_bytes is None:
        limit = DEFAULT_VMEM_LIMIT
    else:
        limit = min(MAX_VMEM_LIMIT,
                    max(16 * 1024 * 1024, est_vmem_bytes + (8 << 20)))
    return pltpu.CompilerParams(dimension_semantics=dimension_semantics,
                                vmem_limit_bytes=limit)


# ----------------------------------------------------------------------------
# Pallas kernel 1: blocked embedding gather (manual DMA, ids scalar-prefetched)
# ----------------------------------------------------------------------------
def _emb_gather_kernel(ids_ref, table_ref, out_ref, sems, *, rb):
    blk = pl.program_id(0)
    base = blk * rb
    # Issue all row DMAs of this block (overlapped), then wait for all of them.
    for r in range(rb):
        row = ids_ref[base + r]
        pltpu.make_async_copy(table_ref.at[row], out_ref.at[r], sems.at[r]).start()
    for r in range(rb):
        row = ids_ref[base + r]
        pltpu.make_async_copy(table_ref.at[row], out_ref.at[r], sems.at[r]).wait()


def embedding_lookup(ids_flat, table_pad):
    """ids_flat: (N,) int32 (N multiple of 8); table_pad: (ntoken, I_pad) f32
    -> (N, I_pad) f32."""
    n = ids_flat.shape[0]
    ip = table_pad.shape[1]
    rb = _pick_tile(n, 64, 8)          # rows gathered per grid step
    kernel = functools.partial(_emb_gather_kernel, rb=rb)
    return pl.pallas_call(
        kernel,
        out_shape=jax.ShapeDtypeStruct((n, ip), table_pad.dtype),
        grid_spec=pltpu.PrefetchScalarGridSpec(
            num_scalar_prefetch=1,
            grid=(n // rb,),
            in_specs=[pl.BlockSpec(memory_space=pl.ANY)],      # table stays in HBM
            out_specs=pl.BlockSpec((rb, ip), lambda i, ids: (i, 0)),
            scratch_shapes=[pltpu.SemaphoreType.DMA((rb,))],
        ),
        compiler_params=_compiler_params(("parallel",)),
    )(ids_flat, table_pad)


# ----------------------------------------------------------------------------
# Pallas kernel 2: tiled matmul with fused bias (input projection GEMM)
#   out = x @ w + b; x cast to bf16 in-kernel, w is bf16, accumulation in f32,
#   final store in out dtype (bf16 for gates_in). K-axis reduction on the grid.
# ----------------------------------------------------------------------------
def _matmul_bias_kernel(x_ref, w_ref, b_ref, o_ref, acc_ref):
    k = pl.program_id(2)

    @pl.when(k == 0)
    def _():
        acc_ref[...] = jnp.broadcast_to(b_ref[...], acc_ref.shape)

    acc_ref[...] += jnp.dot(x_ref[...].astype(jnp.bfloat16), w_ref[...],
                            preferred_element_type=jnp.float32)

    @pl.when(k == pl.num_programs(2) - 1)
    def _():
        o_ref[...] = acc_ref[...].astype(o_ref.dtype)


def matmul_bias(x, w, b, out_dtype=jnp.bfloat16):
    """x: (M, K) f32; w: (K, N) bf16; b: (1, N) f32.
    M multiple of 8, K/N multiples of 128."""
    M, K = x.shape
    _, N = w.shape
    tm = _pick_tile(M, 512, 8)
    tk = _pick_tile(K, 512, 128)
    tn = _pick_tile(N, 2048, 128)
    return pl.pallas_call(
        _matmul_bias_kernel,
        out_shape=jax.ShapeDtypeStruct((M, N), out_dtype),
        grid_spec=pltpu.PrefetchScalarGridSpec(
            num_scalar_prefetch=0,
            grid=(M // tm, N // tn, K // tk),
            in_specs=[
                pl.BlockSpec((tm, tk), lambda i, j, k: (i, k)),
                pl.BlockSpec((tk, tn), lambda i, j, k: (k, j)),
                pl.BlockSpec((1, tn), lambda i, j, k: (0, j)),
            ],
            out_specs=pl.BlockSpec((tm, tn), lambda i, j, k: (i, j)),
            scratch_shapes=[pltpu.VMEM((tm, tn), jnp.float32)],
        ),
        compiler_params=_compiler_params(("parallel", "parallel", "arbitrary")),
    )(x, w, b)


# ----------------------------------------------------------------------------
# Pallas kernel 3: LSTM recurrence over precomputed input gates.
#   grid = (batch_blocks [parallel], time_blocks [arbitrary])
#   Each grid step runs TT timesteps via lax.fori_loop(unroll=True); h/c carried
#   in VMEM scratch; only the recurrent matmul h @ W_hh^T (bf16 operands, f32
#   accumulate) remains on the serial path. Gate math is per-gate (B, H) slabs.
# ----------------------------------------------------------------------------
def _lstm_rec_kernel(gin_ref, whh_ref, h0_ref, c0_ref,
                     y_ref, hT_ref, cT_ref, h_sc, c_sc, *, tt, hpad):
    t = pl.program_id(1)

    @pl.when(t == 0)
    def _():
        h_sc[...] = h0_ref[...]
        c_sc[...] = c0_ref[...]

    def step(s, carry):
        h_prev, c_prev = carry
        hb = h_prev.astype(jnp.bfloat16)
        g_in = gin_ref[s]                                   # (bb, 4*hpad) bf16

        def gate(k):
            # (B, hpad) slab: precomputed x-projection + recurrent matmul
            return (g_in[:, k * hpad:(k + 1) * hpad].astype(jnp.float32)
                    + jnp.dot(hb, whh_ref[:, k * hpad:(k + 1) * hpad],
                              preferred_element_type=jnp.float32))

        # PyTorch gate order: input, forget, cell(g), output.
        # Elementwise math stays f32; only MXU operands are bf16.
        c_new = jax.nn.sigmoid(gate(1)) * c_prev
        c_new = c_new + jax.nn.sigmoid(gate(0)) * jnp.tanh(gate(2))
        h_new = jax.nn.sigmoid(gate(3)) * jnp.tanh(c_new)
        y_ref[s] = h_new
        return h_new, c_new

    h_fin, c_fin = lax.fori_loop(0, tt, step, (h_sc[...], c_sc[...]),
                                 unroll=True)
    h_sc[...] = h_fin
    c_sc[...] = c_fin

    @pl.when(t == pl.num_programs(1) - 1)
    def _():
        hT_ref[...] = h_sc[...]
        cT_ref[...] = c_sc[...]


def _rec_vmem_bytes(tt, bb, hp):
    whh = hp * 4 * hp * 2                 # bf16, single-buffered (Buffered(1))
    gin = 2 * tt * bb * 4 * hp * 2        # bf16, double-buffered
    y = 2 * tt * bb * hp * 4              # f32, double-buffered
    hc_in = 2 * 2 * bb * hp * 4           # h0, c0 (double-buffered)
    hc_out = 2 * 2 * bb * hp * 4          # hT, cT (double-buffered)
    scratch = 2 * bb * hp * 4             # h/c carry scratch
    return whh + gin + y + hc_in + hc_out + scratch


def lstm_layer(x_pad, layer_p, h0_pad, c0_pad, *, batch_blocks=1):
    """x_pad: (T, B_pad, I_pad) f32; layer_p holds pre-transposed padded bf16
    weights; h0_pad/c0_pad: (B_pad, H_pad) f32. Returns padded (y, hT, cT)."""
    T, Bp, Ip = x_pad.shape
    Hp = layer_p["out_pad"]

    # 1) Hoisted input projection: one big MXU GEMM over all T*B rows
    #    (bf16 operands, f32 acc, bf16 result).
    gates_in = matmul_bias(x_pad.reshape(T * Bp, Ip),
                           layer_p["w_ih_t"], layer_p["bias"],
                           out_dtype=jnp.bfloat16)
    gates_in = gates_in.reshape(T, Bp, 4 * Hp)

    # 2) Recurrence. Single-TC chips (v5e/v6e) keep the full batch per step so
    #    the recurrent GEMM's M dim is not halved.
    # TODO(synk): pass batch_blocks=2 on v7x (2 TCs/chip) to megacore-shard the batch.
    if batch_blocks > 1 and Bp % (batch_blocks * 8) == 0:
        bb = Bp // batch_blocks
    else:
        bb = Bp

    tt = _pick_time_block(T, cap=8)
    while tt > 1 and _rec_vmem_bytes(tt, bb, Hp) > REC_VMEM_BUDGET:
        tt = _pick_time_block(T, cap=tt - 1)

    kernel = functools.partial(_lstm_rec_kernel, tt=tt, hpad=Hp)

    y, hT, cT = pl.pallas_call(
        kernel,
        out_shape=(
            jax.ShapeDtypeStruct((T, Bp, Hp), jnp.float32),
            jax.ShapeDtypeStruct((Bp, Hp), jnp.float32),
            jax.ShapeDtypeStruct((Bp, Hp), jnp.float32),
        ),
        grid_spec=pltpu.PrefetchScalarGridSpec(
            num_scalar_prefetch=0,
            grid=(Bp // bb, T // tt),
            in_specs=[
                pl.BlockSpec((tt, bb, 4 * Hp), lambda b, t: (t, b, 0)),   # gates_in
                pl.BlockSpec((Hp, 4 * Hp), lambda b, t: (0, 0),           # W_hh^T
                             pipeline_mode=pl.Buffered(buffer_count=1)),  #   resident, single-buffered
                pl.BlockSpec((bb, Hp), lambda b, t: (b, 0)),              # h0
                pl.BlockSpec((bb, Hp), lambda b, t: (b, 0)),              # c0
            ],
            out_specs=(
                pl.BlockSpec((tt, bb, Hp), lambda b, t: (t, b, 0)),       # y
                pl.BlockSpec((bb, Hp), lambda b, t: (b, 0)),              # h_T
                pl.BlockSpec((bb, Hp), lambda b, t: (b, 0)),              # c_T
            ),
            scratch_shapes=[
                pltpu.VMEM((bb, Hp), jnp.float32),                        # h carry
                pltpu.VMEM((bb, Hp), jnp.float32),                        # c carry
            ],
        ),
        compiler_params=_compiler_params(
            ("parallel", "arbitrary"),
            est_vmem_bytes=_rec_vmem_bytes(tt, bb, Hp)),
    )(gates_in, layer_p["w_hh_t"], h0_pad, c0_pad)
    return y, hT, cT


# ----------------------------------------------------------------------------
# One-time parameter preparation: transpose, combine biases, zero-pad to
# lane/sublane-aligned shapes, cast MXU weights to bf16. Done once.
# ----------------------------------------------------------------------------
def prepare_params(params):
    ntoken, ninp = params["encoder"].shape
    ip = _round_up(ninp, 128)
    enc_pad = jnp.zeros((ntoken, ip), jnp.float32).at[:, :ninp].set(
        params["encoder"].astype(jnp.float32))

    layers = []
    for layer in params["rnns"]:
        w_ih, w_hh = layer["w_ih"], layer["w_hh"]
        b_ih, b_hh = layer["b_ih"], layer["b_hh"]
        in_sz = w_ih.shape[1]
        out_sz = w_hh.shape[1]
        in_p = _round_up(in_sz, 128)
        out_p = _round_up(out_sz, 128)

        # (4H, I) -> (I, 4, H) -> pad -> (I_pad, 4*H_pad), gate-aligned columns.
        w_ih_t = jnp.transpose(w_ih).reshape(in_sz, 4, out_sz).astype(jnp.float32)
        w_ih_t = jnp.zeros((in_p, 4, out_p), jnp.float32).at[
            :in_sz, :, :out_sz].set(w_ih_t).reshape(in_p, 4 * out_p)

        w_hh_t = jnp.transpose(w_hh).reshape(out_sz, 4, out_sz).astype(jnp.float32)
        w_hh_t = jnp.zeros((out_p, 4, out_p), jnp.float32).at[
            :out_sz, :, :out_sz].set(w_hh_t).reshape(out_p, 4 * out_p)

        bias = (b_ih + b_hh).reshape(4, out_sz).astype(jnp.float32)
        bias = jnp.zeros((4, out_p), jnp.float32).at[:, :out_sz].set(
            bias).reshape(1, 4 * out_p)

        layers.append(dict(
            w_ih_t=w_ih_t.astype(jnp.bfloat16),   # MXU operands stored bf16
            w_hh_t=w_hh_t.astype(jnp.bfloat16),
            bias=bias,                            # f32 (added into f32 accumulator)
            in_sz=in_sz, out_sz=out_sz,
            in_pad=in_p, out_pad=out_p))
    return dict(encoder=enc_pad, ninp=ninp, ninp_pad=ip, layers=layers)


# ----------------------------------------------------------------------------
# RNNModel forward (eval mode) built on the Pallas kernels.
# ----------------------------------------------------------------------------
def rnn_model_forward(prepared, input_ids, hidden, *, batch_blocks=1):
    """input_ids: (T, B) int32; hidden: list of (h, c), each (1, B, H)."""
    T, B = input_ids.shape
    Bp = _round_up(B, 8)

    # encoder lookup (embedded_dropout / lockdrop(dropouti) are identity in eval)
    ids_pad = jnp.zeros((T, Bp), jnp.int32).at[:, :B].set(
        input_ids.astype(jnp.int32))
    emb = embedding_lookup(ids_pad.reshape(-1), prepared["encoder"])
    x = emb.reshape(T, Bp, prepared["ninp_pad"])

    new_hidden = []
    for l, lp in enumerate(prepared["layers"]):
        h0 = jnp.zeros((Bp, lp["out_pad"]), jnp.float32).at[
            :B, :lp["out_sz"]].set(hidden[l][0][0])
        c0 = jnp.zeros((Bp, lp["out_pad"]), jnp.float32).at[
            :B, :lp["out_sz"]].set(hidden[l][1][0])
        y, hT, cT = lstm_layer(x, lp, h0, c0, batch_blocks=batch_blocks)
        new_hidden.append((hT[:B, :lp["out_sz"]][None],
                           cT[:B, :lp["out_sz"]][None]))
        # lockdrop(raw_output, dropouth) is identity in eval mode.
        x = y
        # TODO(synk): keep layer-to-layer y in bf16 / fuse layers to avoid the
        #             f32 HBM round trip (kept f32 here for output fidelity).

    out_sz = prepared["layers"][-1]["out_sz"]
    # lockdrop(output, dropout) -> identity in eval mode
    result = x[:, :B, :out_sz].reshape(T * B, out_sz)
    return result, new_hidden


# ----------------------------------------------------------------------------
# Pure-JAX reference (correctness check only)
# ----------------------------------------------------------------------------
def _lstm_layer_ref(x, w_ih, w_hh, b_ih, b_hh, h0, c0):
    b = b_ih + b_hh

    def step(carry, x_t):
        h, c = carry
        gates = x_t @ w_ih.T + h @ w_hh.T + b
        i, f, g, o = jnp.split(gates, 4, axis=-1)
        c = jax.nn.sigmoid(f) * c + jax.nn.sigmoid(i) * jnp.tanh(g)
        h = jax.nn.sigmoid(o) * jnp.tanh(c)
        return (h, c), h

    (hT, cT), ys = lax.scan(step, (h0, c0), x)
    return ys, hT, cT


def rnn_model_forward_ref(params, input_ids, hidden):
    T, B = input_ids.shape
    emb = jnp.take(params["encoder"], input_ids.reshape(-1), axis=0).reshape(T, B, -1)
    raw_output = emb
    new_hidden = []
    for l, layer in enumerate(params["rnns"]):
        y, hT, cT = _lstm_layer_ref(raw_output,
                                    layer["w_ih"], layer["w_hh"],
                                    layer["b_ih"], layer["b_hh"],
                                    hidden[l][0][0], hidden[l][1][0])
        new_hidden.append((hT[None], cT[None]))
        raw_output = y
    result = raw_output.reshape(T * B, raw_output.shape[2])
    return result, new_hidden


# ----------------------------------------------------------------------------
# Deterministic parameter / state init (mirrors module __init__ shapes)
# ----------------------------------------------------------------------------
def init_params(key, ntoken, ninp, nhid, nlayers, tie_weights=False):
    n_keys = 2 + 4 * nlayers
    keys = jax.random.split(key, n_keys)
    initrange = 0.1
    encoder = jax.random.uniform(keys[0], (ntoken, ninp), jnp.float32,
                                 -initrange, initrange)
    rnns = []
    for l in range(nlayers):
        in_sz = ninp if l == 0 else nhid
        out_sz = nhid if l != nlayers - 1 else (ninp if tie_weights else nhid)
        stdv = 1.0 / np.sqrt(out_sz)
        k = keys[1 + 4 * l: 1 + 4 * (l + 1)]
        rnns.append(dict(
            w_ih=jax.random.uniform(k[0], (4 * out_sz, in_sz), jnp.float32, -stdv, stdv),
            w_hh=jax.random.uniform(k[1], (4 * out_sz, out_sz), jnp.float32, -stdv, stdv),
            b_ih=jax.random.uniform(k[2], (4 * out_sz,), jnp.float32, -stdv, stdv),
            b_hh=jax.random.uniform(k[3], (4 * out_sz,), jnp.float32, -stdv, stdv),
        ))
    # Decoder Linear(nhid, ntoken) exists in the module but is unused in forward().
    decoder_w = jax.random.uniform(keys[-1], (ntoken, nhid), jnp.float32,
                                   -initrange, initrange)
    decoder_b = jnp.zeros((ntoken,), jnp.float32)
    return dict(encoder=encoder, rnns=rnns, decoder_w=decoder_w, decoder_b=decoder_b)


def init_hidden(bsz, ninp, nhid, nlayers, tie_weights=False):
    hidden = []
    for l in range(nlayers):
        h_sz = nhid if l != nlayers - 1 else (ninp if tie_weights else nhid)
        hidden.append((jnp.zeros((1, bsz, h_sz), jnp.float32),
                       jnp.zeros((1, bsz, h_sz), jnp.float32)))
    return hidden


if __name__ == "__main__":
    ntoken, ninp, nhid, nlayers = 50, 16, 32, 2
    T, B = 8, 2

    key = jax.random.PRNGKey(0)
    pkey, ikey = jax.random.split(key)
    params = init_params(pkey, ntoken, ninp, nhid, nlayers)
    prepared = prepare_params(params)           # one-time: transpose/pad/bf16 weights
    input_ids = jax.random.randint(ikey, (T, B), 0, ntoken, dtype=jnp.int32)
    hidden = init_hidden(B, ninp, nhid, nlayers)

    result, new_hidden = rnn_model_forward(prepared, input_ids, hidden)
    jax.block_until_ready(result)

    # Correctness check against a pure-JAX f32 reference of the same forward
    # pass (bf16 MXU operands => loosened tolerance).
    ref_result, ref_hidden = rnn_model_forward_ref(params, input_ids, hidden)
    np.testing.assert_allclose(np.asarray(result), np.asarray(ref_result),
                               rtol=2e-2, atol=2e-2)
    for (h, c), (rh, rc) in zip(new_hidden, ref_hidden):
        np.testing.assert_allclose(np.asarray(h), np.asarray(rh), rtol=2e-2, atol=2e-2)
        np.testing.assert_allclose(np.asarray(c), np.asarray(rc), rtol=2e-2, atol=2e-2)

    print("KERNEL_OK")
</pallas_src>

<mosaic_0001>
module attributes {stable_mosaic.version = 11 : i64} {
  func.func @_emb_gather_kernel(%arg0: i32, %arg1: memref<64xi32, #tpu.memory_space<smem>>, %arg2: memref<50x128xf32, #tpu.memory_space<any>>, %arg3: memref<64x128xf32, #tpu.memory_space<vmem>>, %arg4: memref<64x!tpu.dma_semaphore, #tpu.memory_space<semaphore_mem>>) attributes {dimension_semantics = [#tpu.dimension_semantics<parallel>], iteration_bounds = array<i64: 1>, scalar_prefetch = 1 : i64, scratch_operands = 1 : i64, tpu.core_type = #tpu.core_type<tc>, window_params = [{}, {transform_indices = @transform_1, window_bounds = array<i64: 64, 128>}]} {
    %c64_i32 = arith.constant 64 : i32
    %0 = arith.muli %arg0, %c64_i32 : i32
    %c0_i32 = arith.constant 0 : i32
    %1 = arith.addi %0, %c0_i32 : i32
    %2 = arith.index_cast %1 : i32 to index
    %3 = memref.load %arg1[%2] : memref<64xi32, #tpu.memory_space<smem>>
    %c0_i32_0 = arith.constant 0 : i32
    %c0_i32_1 = arith.constant 0 : i32
    %c0_i32_2 = arith.constant 0 : i32
    %4 = tpu.memref_slice %arg2[%3, %c0_i32_2] : memref<50x128xf32, #tpu.memory_space<any>> -> memref<1x128xf32, #tpu.memory_space<any>>
    %5 = tpu.memref_squeeze %4 : memref<1x128xf32, #tpu.memory_space<any>> -> memref<128xf32, #tpu.memory_space<any>>
    %c0_i32_3 = arith.constant 0 : i32
    %6 = tpu.memref_slice %arg3[%c0_i32_0, %c0_i32_3] : memref<64x128xf32, #tpu.memory_space<vmem>> -> memref<1x128xf32, #tpu.memory_space<vmem>>
    %7 = tpu.memref_squeeze %6 : memref<1x128xf32, #tpu.memory_space<vmem>> -> memref<128xf32, #tpu.memory_space<vmem>>
    %8 = tpu.memref_slice %arg4[%c0_i32_1] : memref<64x!tpu.dma_semaphore, #tpu.memory_space<semaphore_mem>> -> memref<1x!tpu.dma_semaphore, #tpu.memory_space<semaphore_mem>>
    %9 = tpu.memref_squeeze %8 : memref<1x!tpu.dma_semaphore, #tpu.memory_space<semaphore_mem>> -> memref<!tpu.dma_semaphore, #tpu.memory_space<semaphore_mem>>
    tpu.enqueue_dma source(%5 : memref<128xf32, #tpu.memory_space<any>>) target(%7 : memref<128xf32, #tpu.memory_space<vmem>>) target_semaphore(%9 : memref<!tpu.dma_semaphore, #tpu.memory_space<semaphore_mem>>)
    %c1_i32 = arith.constant 1 : i32
    %10 = arith.addi %0, %c1_i32 : i32
    %11 = arith.index_cast %10 : i32 to index
    %12 = memref.load %arg1[%11] : memref<64xi32, #tpu.memory_space<smem>>
    %c1_i32_4 = arith.constant 1 : i32
    %c1_i32_5 = arith.constant 1 : i32
    %c0_i32_6 = arith.constant 0 : i32
    %13 = tpu.memref_slice %arg2[%12, %c0_i32_6] : memref<50x128xf32, #tpu.memory_space<any>> -> memref<1x128xf32, #tpu.memory_space<any>>
    %14 = tpu.memref_squeeze %13 : memref<1x128xf32, #tpu.memory_space<any>> -> memref<128xf32, #tpu.memory_space<any>>
    %c0_i32_7 = arith.constant 0 : i32
    %15 = tpu.memref_slice %arg3[%c1_i32_4, %c0_i32_7] : memref<64x128xf32, #tpu.memory_space<vmem>> -> memref<1x128xf32, #tpu.memory_space<vmem>>
    %16 = tpu.memref_squeeze %15 : memref<1x128xf32, #tpu.memory_space<vmem>> -> memref<128xf32, #tpu.memory_space<vmem>>
    %17 = tpu.memref_slice %arg4[%c1_i32_5] : memref<64x!tpu.dma_semaphore, #tpu.memory_space<semaphore_mem>> -> memref<1x!tpu.dma_semaphore, #tpu.memory_space<semaphore_mem>>
    %18 = tpu.memref_squeeze %17 : memref<1x!tpu.dma_semaphore, #tpu.memory_space<semaphore_mem>> -> memref<!tpu.dma_semaphore, #tpu.memory_space<semaphore_mem>>
    tpu.enqueue_dma source(%14 : memref<128xf32, #tpu.memory_space<any>>) target(%16 : memref<128xf32, #tpu.memory_space<vmem>>) target_semaphore(%18 : memref<!tpu.dma_semaphore, #tpu.memory_space<semaphore_mem>>)
    %c2_i32 = arith.constant 2 : i32
    %19 = arith.addi %0, %c2_i32 : i32
    %20 = arith.index_cast %19 : i32 to index
    %21 = memref.load %arg1[%20] : memref<64xi32, #tpu.memory_space<smem>>
    %c2_i32_8 = arith.constant 2 : i32
    %c2_i32_9 = arith.constant 2 : i32
    %c0_i32_10 = arith.constant 0 : i32
    %22 = tpu.memref_slice %arg2[%21, %c0_i32_10] : memref<50x128xf32, #tpu.memory_space<any>> -> memref<1x128xf32, #tpu.memory_space<any>>
    %23 = tpu.memref_squeeze %22 : memref<1x128xf32, #tpu.memory_space<any>> -> memref<128xf32, #tpu.memory_space<any>>
    %c0_i32_11 = arith.constant 0 : i32
    %24 = tpu.memref_slice %arg3[%c2_i32_8, %c0_i32_11] : memref<64x128xf32, #tpu.memory_space<vmem>> -> memref<1x128xf32, #tpu.memory_space<vmem>>
    %25 = tpu.memref_squeeze %24 : memref<1x128xf32, #tpu.memory_space<vmem>> -> memref<128xf32, #tpu.memory_space<vmem>>
    %26 = tpu.memref_slice %arg4[%c2_i32_9] : memref<64x!tpu.dma_semaphore, #tpu.memory_space<semaphore_mem>> -> memref<1x!tpu.dma_semaphore, #tpu.memory_space<semaphore_mem>>
    %27 = tpu.memref_squeeze %26 : memref<1x!tpu.dma_semaphore, #tpu.memory_space<semaphore_mem>> -> memref<!tpu.dma_semaphore, #tpu.memory_space<semaphore_mem>>
    tpu.enqueue_dma source(%23 : memref<128xf32, #tpu.memory_space<any>>) target(%25 : memref<128xf32, #tpu.memory_space<vmem>>) target_semaphore(%27 : memref<!tpu.dma_semaphore, #tpu.memory_space<semaphore_mem>>)
    %c3_i32 = arith.constant 3 : i32
    %28 = arith.addi %0, %c3_i32 : i32
    %29 = arith.index_cast %28 : i32 to index
    %30 = memref.load %arg1[%29] : memref<64xi32, #tpu.memory_space<smem>>
    %c3_i32_12 = arith.constant 3 : i32
    %c3_i32_13 = arith.constant 3 : i32
    %c0_i32_14 = arith.constant 0 : i32
    %31 = tpu.memref_slice %arg2[%30, %c0_i32_14] : memref<50x128xf32, #tpu.memory_space<any>> -> memref<1x128xf32, #tpu.memory_space<any>>
    %32 = tpu.memref_squeeze %31 : memref<1x128xf32, #tpu.memory_space<any>> -> memref<128xf32, #tpu.memory_space<any>>
    %c0_i32_15 = arith.constant 0 : i32
    %33 = tpu.memref_slice %arg3[%c3_i32_12, %c0_i32_15] : memref<64x128xf32, #tpu.memory_space<vmem>> -> memref<1x128xf32, #tpu.memory_space<vmem>>
    %34 = tpu.memref_squeeze %33 : memref<1x128xf32, #tpu.memory_space<vmem>> -> memref<128xf32, #tpu.memory_space<vmem>>
    %35 = tpu.memref_slice %arg4[%c3_i32_13] : memref<64x!tpu.dma_semaphore, #tpu.memory_space<semaphore_mem>> -> memref<1x!tpu.dma_semaphore, #tpu.memory_space<semaphore_mem>>
    %36 = tpu.memref_squeeze %35 : memref<1x!tpu.dma_semaphore, #tpu.memory_space<semaphore_mem>> -> memref<!tpu.dma_semaphore, #tpu.memory_space<semaphore_mem>>
    tpu.enqueue_dma source(%32 : memref<128xf32, #tpu.memory_space<any>>) target(%34 : memref<128xf32, #tpu.memory_space<vmem>>) target_semaphore(%36 : memref<!tpu.dma_semaphore, #tpu.memory_space<semaphore_mem>>)
    %c4_i32 = arith.constant 4 : i32
    %37 = arith.addi %0, %c4_i32 : i32
    %38 = arith.index_cast %37 : i32 to index
    %39 = memref.load %arg1[%38] : memref<64xi32, #tpu.memory_space<smem>>
    %c4_i32_16 = arith.constant 4 : i32
    %c4_i32_17 = arith.constant 4 : i32
    %c0_i32_18 = arith.constant 0 : i32
    %40 = tpu.memref_slice %arg2[%39, %c0_i32_18] : memref<50x128xf32, #tpu.memory_space<any>> -> memref<1x128xf32, #tpu.memory_space<any>>
    %41 = tpu.memref_squeeze %40 : memref<1x128xf32, #tpu.memory_space<any>> -> memref<128xf32, #tpu.memory_space<any>>
    %c0_i32_19 = arith.constant 0 : i32
    %42 = tpu.memref_slice %arg3[%c4_i32_16, %c0_i32_19] : memref<64x128xf32, #tpu.memory_space<vmem>> -> memref<1x128xf32, #tpu.memory_space<vmem>>
    %43 = tpu.memref_squeeze %42 : memref<1x128xf32, #tpu.memory_space<vmem>> -> memref<128xf32, #tpu.memory_space<vmem>>
    %44 = tpu.memref_slice %arg4[%c4_i32_17] : memref<64x!tpu.dma_semaphore, #tpu.memory_space<semaphore_mem>> -> memref<1x!tpu.dma_semaphore, #tpu.memory_space<semaphore_mem>>
    %45 = tpu.memref_squeeze %44 : memref<1x!tpu.dma_semaphore, #tpu.memory_space<semaphore_mem>> -> memref<!tpu.dma_semaphore, #tpu.memory_space<semaphore_mem>>
    tpu.enqueue_dma source(%41 : memref<128xf32, #tpu.memory_space<any>>) target(%43 : memref<128xf32, #tpu.memory_space<vmem>>) target_semaphore(%45 : memref<!tpu.dma_semaphore, #tpu.memory_space<semaphore_mem>>)
    %c5_i32 = arith.constant 5 : i32
    %46 = arith.addi %0, %c5_i32 : i32
    %47 = arith.index_cast %46 : i32 to index
    %48 = memref.load %arg1[%47] : memref<64xi32, #tpu.memory_space<smem>>
    %c5_i32_20 = arith.constant 5 : i32
    %c5_i32_21 = arith.constant 5 : i32
    %c0_i32_22 = arith.constant 0 : i32
    %49 = tpu.memref_slice %arg2[%48, %c0_i32_22] : memref<50x128xf32, #tpu.memory_space<any>> -> memref<1x128xf32, #tpu.memory_space<any>>
    %50 = tpu.memref_squeeze %49 : memref<1x128xf32, #tpu.memory_space<any>> -> memref<128xf32, #tpu.memory_space<any>>
    %c0_i32_23 = arith.constant 0 : i32
    %51 = tpu.memref_slice %arg3[%c5_i32_20, %c0_i32_23] : memref<64x128xf32, #tpu.memory_space<vmem>> -> memref<1x128xf32, #tpu.memory_space<vmem>>
    %52 = tpu.memref_squeeze %51 : memref<1x128xf32, #tpu.memory_space<vmem>> -> memref<128xf32, #tpu.memory_space<vmem>>
    %53 = tpu.memref_slice %arg4[%c5_i32_21] : memref<64x!tpu.dma_semaphore, #tpu.memory_space<semaphore_mem>> -> memref<1x!tpu.dma_semaphore, #tpu.memory_space<semaphore_mem>>
    %54 = tpu.memref_squeeze %53 : memref<1x!tpu.dma_semaphore, #tpu.memory_space<semaphore_mem>> -> memref<!tpu.dma_semaphore, #tpu.memory_space<semaphore_mem>>
    tpu.enqueue_dma source(%50 : memref<128xf32, #tpu.memory_space<any>>) target(%52 : memref<128xf32, #tpu.memory_space<vmem>>) target_semaphore(%54 : memref<!tpu.dma_semaphore, #tpu.memory_space<semaphore_mem>>)
    %c6_i32 = arith.constant 6 : i32
    %55 = arith.addi %0, %c6_i32 : i32
    %56 = arith.index_cast %55 : i32 to index
    %57 = memref.load %arg1[%56] : memref<64xi32, #tpu.memory_space<smem>>
    %c6_i32_24 = arith.constant 6 : i32
    %c6_i32_25 = arith.constant 6 : i32
    %c0_i32_26 = arith.constant 0 : i32
    %58 = tpu.memref_slice %arg2[%57, %c0_i32_26] : memref<50x128xf32, #tpu.memory_space<any>> -> memref<1x128xf32, #tpu.memory_space<any>>
    %59 = tpu.memref_squeeze %58 : memref<1x128xf32, #tpu.memory_space<any>> -> memref<128xf32, #tpu.memory_space<any>>
    %c0_i32_27 = arith.constant 0 : i32
    %60 = tpu.memref_slice %arg3[%c6_i32_24, %c0_i32_27] : memref<64x128xf32, #tpu.memory_space<vmem>> -> memref<1x128xf32, #tpu.memory_space<vmem>>
    %61 = tpu.memref_squeeze %60 : memref<1x128xf32, #tpu.memory_space<vmem>> -> memref<128xf32, #tpu.memory_space<vmem>>
    %62 = tpu.memref_slice %arg4[%c6_i32_25] : memref<64x!tpu.dma_semaphore, #tpu.memory_space<semaphore_mem>> -> memref<1x!tpu.dma_semaphore, #tpu.memory_space<semaphore_mem>>
    %63 = tpu.memref_squeeze %62 : memref<1x!tpu.dma_semaphore, #tpu.memory_space<semaphore_mem>> -> memref<!tpu.dma_semaphore, #tpu.memory_space<semaphore_mem>>
    tpu.enqueue_dma source(%59 : memref<128xf32, #tpu.memory_space<any>>) target(%61 : memref<128xf32, #tpu.memory_space<vmem>>) target_semaphore(%63 : memref<!tpu.dma_semaphore, #tpu.memory_space<semaphore_mem>>)
    %c7_i32 = arith.constant 7 : i32
    %64 = arith.addi %0, %c7_i32 : i32
    %65 = arith.index_cast %64 : i32 to index
    %66 = memref.load %arg1[%65] : memref<64xi32, #tpu.memory_space<smem>>
    %c7_i32_28 = arith.constant 7 : i32
    %c7_i32_29 = arith.constant 7 : i32
    %c0_i32_30 = arith.constant 0 : i32
    %67 = tpu.memref_slice %arg2[%66, %c0_i32_30] : memref<50x128xf32, #tpu.memory_space<any>> -> memref<1x128xf32, #tpu.memory_space<any>>
    %68 = tpu.memref_squeeze %67 : memref<1x128xf32, #tpu.memory_space<any>> -> memref<128xf32, #tpu.memory_space<any>>
    %c0_i32_31 = arith.constant 0 : i32
    %69 = tpu.memref_slice %arg3[%c7_i32_28, %c0_i32_31] : memref<64x128xf32, #tpu.memory_space<vmem>> -> memref<1x128xf32, #tpu.memory_space<vmem>>
    %70 = tpu.memref_squeeze %69 : memref<1x128xf32, #tpu.memory_space<vmem>> -> memref<128xf32, #tpu.memory_space<vmem>>
    %71 = tpu.memref_slice %arg4[%c7_i32_29] : memref<64x!tpu.dma_semaphore, #tpu.memory_space<semaphore_mem>> -> memref<1x!tpu.dma_semaphore, #tpu.memory_space<semaphore_mem>>
    %72 = tpu.memref_squeeze %71 : memref<1x!tpu.dma_semaphore, #tpu.memory_space<semaphore_mem>> -> memref<!tpu.dma_semaphore, #tpu.memory_space<semaphore_mem>>
    tpu.enqueue_dma source(%68 : memref<128xf32, #tpu.memory_space<any>>) target(%70 : memref<128xf32, #tpu.memory_space<vmem>>) target_semaphore(%72 : memref<!tpu.dma_semaphore, #tpu.memory_space<semaphore_mem>>)
    %c8_i32 = arith.constant 8 : i32
    %73 = arith.addi %0, %c8_i32 : i32
    %74 = arith.index_cast %73 : i32 to index
    %75 = memref.load %arg1[%74] : memref<64xi32, #tpu.memory_space<smem>>
    %c8_i32_32 = arith.constant 8 : i32
    %c8_i32_33 = arith.constant 8 : i32
    %c0_i32_34 = arith.constant 0 : i32
    %76 = tpu.memref_slice %arg2[%75, %c0_i32_34] : memref<50x128xf32, #tpu.memory_space<any>> -> memref<1x128xf32, #tpu.memory_space<any>>
    %77 = tpu.memref_squeeze %76 : memref<1x128xf32, #tpu.memory_space<any>> -> memref<128xf32, #tpu.memory_space<any>>
    %c0_i32_35 = arith.constant 0 : i32
    %78 = tpu.memref_slice %arg3[%c8_i32_32, %c0_i32_35] : memref<64x128xf32, #tpu.memory_space<vmem>> -> memref<1x128xf32, #tpu.memory_space<vmem>>
    %79 = tpu.memref_squeeze %78 : memref<1x128xf32, #tpu.memory_space<vmem>> -> memref<128xf32, #tpu.memory_space<vmem>>
    %80 = tpu.memref_slice %arg4[%c8_i32_33] : memref<64x!tpu.dma_semaphore, #tpu.memory_space<semaphore_mem>> -> memref<1x!tpu.dma_semaphore, #tpu.memory_space<semaphore_mem>>
    %81 = tpu.memref_squeeze %80 : memref<1x!tpu.dma_semaphore, #tpu.memory_space<semaphore_mem>> -> memref<!tpu.dma_semaphore, #tpu.memory_space<semaphore_mem>>
    tpu.enqueue_dma source(%77 : memref<128xf32, #tpu.memory_space<any>>) target(%79 : memref<128xf32, #tpu.memory_space<vmem>>) target_semaphore(%81 : memref<!tpu.dma_semaphore, #tpu.memory_space<semaphore_mem>>)
    %c9_i32 = arith.constant 9 : i32
    %82 = arith.addi %0, %c9_i32 : i32
    %83 = arith.index_cast %82 : i32 to index
    %84 = memref.load %arg1[%83] : memref<64xi32, #tpu.memory_space<smem>>
    %c9_i32_36 = arith.constant 9 : i32
    %c9_i32_37 = arith.constant 9 : i32
    %c0_i32_38 = arith.constant 0 : i32
    %85 = tpu.memref_slice %arg2[%84, %c0_i32_38] : memref<50x128xf32, #tpu.memory_space<any>> -> memref<1x128xf32, #tpu.memory_space<any>>
    %86 = tpu.memref_squeeze %85 : memref<1x128xf32, #tpu.memory_space<any>> -> memref<128xf32, #tpu.memory_space<any>>
    %c0_i32_39 = arith.constant 0 : i32
    %87 = tpu.memref_slice %arg3[%c9_i32_36, %c0_i32_39] : memref<64x128xf32, #tpu.memory_space<vmem>> -> memref<1x128xf32, #tpu.memory_space<vmem>>
    %88 = tpu.memref_squeeze %87 : memref<1x128xf32, #tpu.memory_space<vmem>> -> memref<128xf32, #tpu.memory_space<vmem>>
    %89 = tpu.memref_slice %arg4[%c9_i32_37] : memref<64x!tpu.dma_semaphore, #tpu.memory_space<semaphore_mem>> -> memref<1x!tpu.dma_semaphore, #tpu.memory_space<semaphore_mem>>
    %90 = tpu.memref_squeeze %89 : memref<1x!tpu.dma_semaphore, #tpu.memory_space<semaphore_mem>> -> memref<!tpu.dma_semaphore, #tpu.memory_space<semaphore_mem>>
    tpu.enqueue_dma source(%86 : memref<128xf32, #tpu.memory_space<any>>) target(%88 : memref<128xf32, #tpu.memory_space<vmem>>) target_semaphore(%90 : memref<!tpu.dma_semaphore, #tpu.memory_space<semaphore_mem>>)
    %c10_i32 = arith.constant 10 : i32
    %91 = arith.addi %0, %c10_i32 : i32
    %92 = arith.index_cast %91 : i32 to index
    %93 = memref.load %arg1[%92] : memref<64xi32, #tpu.memory_space<smem>>
    %c10_i32_40 = arith.constant 10 : i32
    %c10_i32_41 = arith.constant 10 : i32
    %c0_i32_42 = arith.constant 0 : i32
    %94 = tpu.memref_slice %arg2[%93, %c0_i32_42] : memref<50x128xf32, #tpu.memory_space<any>> -> memref<1x128xf32, #tpu.memory_space<any>>
    %95 = tpu.memref_squeeze %94 : memref<1x128xf32, #tpu.memory_space<any>> -> memref<128xf32, #tpu.memory_space<any>>
    %c0_i32_43 = arith.constant 0 : i32
    %96 = tpu.memref_slice %arg3[%c10_i32_40, %c0_i32_43] : memref<64x128xf32, #tpu.memory_space<vmem>> -> memref<1x128xf32, #tpu.memory_space<vmem>>
    %97 = tpu.memref_squeeze %96 : memref<1x128xf32, #tpu.memory_space<vmem>> -> memref<128xf32, #tpu.memory_space<vmem>>
    %98 = tpu.memref_slice %arg4[%c10_i32_41] : memref<64x!tpu.dma_semaphore, #tpu.memory_space<semaphore_mem>> -> memref<1x!tpu.dma_semaphore, #tpu.memory_space<semaphore_mem>>
    %99 = tpu.memref_squeeze %98 : memref<1x!tpu.dma_semaphore, #tpu.memory_space<semaphore_mem>> -> memref<!tpu.dma_semaphore, #tpu.memory_space<semaphore_mem>>
    tpu.enqueue_dma source(%95 : memref<128xf32, #tpu.memory_space<any>>) target(%97 : memref<128xf32, #tpu.memory_space<vmem>>) target_semaphore(%99 : memref<!tpu.dma_semaphore, #tpu.memory_space<semaphore_mem>>)
    %c11_i32 = arith.constant 11 : i32
    %100 = arith.addi %0, %c11_i32 : i32
    %101 = arith.index_cast %100 : i32 to index
    %102 = memref.load %arg1[%101] : memref<64xi32, #tpu.memory_space<smem>>
    %c11_i32_44 = arith.constant 11 : i32
    %c11_i32_45 = arith.constant 11 : i32
    %c0_i32_46 = arith.constant 0 : i32
    %103 = tpu.memref_slice %arg2[%102, %c0_i32_46] : memref<50x128xf32, #tpu.memory_space<any>> -> memref<1x128xf32, #tpu.memory_space<any>>
    %104 = tpu.memref_squeeze %103 : memref<1x128xf32, #tpu.memory_space<any>> -> memref<128xf32, #tpu.memory_space<any>>
    %c0_i32_47 = arith.constant 0 : i32
    %105 = tpu.memref_slice %arg3[%c11_i32_44, %c0_i32_47] : memref<64x128xf32, #tpu.memory_space<vmem>> -> memref<1x128xf32, #tpu.memory_space<vmem>>
    %106 = tpu.memref_squeeze %105 : memref<1x128xf32, #tpu.memory_space<vmem>> -> memref<128xf32, #tpu.memory_space<vmem>>
    %107 = tpu.memref_slice %arg4[%c11_i32_45] : memref<64x!tpu.dma_semaphore, #tpu.memory_space<semaphore_mem>> -> memref<1x!tpu.dma_semaphore, #tpu.memory_space<semaphore_mem>>
    %108 = tpu.memref_squeeze %107 : memref<1x!tpu.dma_semaphore, #tpu.memory_space<semaphore_mem>> -> memref<!tpu.dma_semaphore, #tpu.memory_space<semaphore_mem>>
    tpu.enqueue_dma source(%104 : memref<128xf32, #tpu.memory_space<any>>) target(%106 : memref<128xf32, #tpu.memory_space<vmem>>) target_semaphore(%108 : memref<!tpu.dma_semaphore, #tpu.memory_space<semaphore_mem>>)
    %c12_i32 = arith.constant 12 : i32
    %109 = arith.addi %0, %c12_i32 : i32
    %110 = arith.index_cast %109 : i32 to index
    %111 = memref.load %arg1[%110] : memref<64xi32, #tpu.memory_space<smem>>
    %c12_i32_48 = arith.constant 12 : i32
    %c12_i32_49 = arith.constant 12 : i32
    %c0_i32_50 = arith.constant 0 : i32
    %112 = tpu.memref_slice %arg2[%111, %c0_i32_50] : memref<50x128xf32, #tpu.memory_space<any>> -> memref<1x128xf32, #tpu.memory_space<any>>
    %113 = tpu.memref_squeeze %112 : memref<1x128xf32, #tpu.memory_space<any>> -> memref<128xf32, #tpu.memory_space<any>>
    %c0_i32_51 = arith.constant 0 : i32
    %114 = tpu.memref_slice %arg3[%c12_i32_48, %c0_i32_51] : memref<64x128xf32, #tpu.memory_space<vmem>> -> memref<1x128xf32, #tpu.memory_space<vmem>>
    %115 = tpu.memref_squeeze %114 : memref<1x128xf32, #tpu.memory_space<vmem>> -> memref<128xf32, #tpu.memory_space<vmem>>
    %116 = tpu.memref_slice %arg4[%c12_i32_49] : memref<64x!tpu.dma_semaphore, #tpu.memory_space<semaphore_mem>> -> memref<1x!tpu.dma_semaphore, #tpu.memory_space<semaphore_mem>>
    %117 = tpu.memref_squeeze %116 : memref<1x!tpu.dma_semaphore, #tpu.memory_space<semaphore_mem>> -> memref<!tpu.dma_semaphore, #tpu.memory_space<semaphore_mem>>
    tpu.enqueue_dma source(%113 : memref<128xf32, #tpu.memory_space<any>>) target(%115 : memref<128xf32, #tpu.memory_space<vmem>>) target_semaphore(%117 : memref<!tpu.dma_semaphore, #tpu.memory_space<semaphore_mem>>)
    %c13_i32 = arith.constant 13 : i32
    %118 = arith.addi %0, %c13_i32 : i32
    %119 = arith.index_cast %118 : i32 to index
    %120 = memref.load %arg1[%119] : memref<64xi32, #tpu.memory_space<smem>>
    %c13_i32_52 = arith.constant 13 : i32
    %c13_i32_53 = arith.constant 13 : i32
    %c0_i32_54 = arith.constant 0 : i32
    %121 = tpu.memref_slice %arg2[%120, %c0_i32_54] : memref<50x128xf32, #tpu.memory_space<any>> -> memref<1x128xf32, #tpu.memory_space<any>>
    %122 = tpu.memref_squeeze %121 : memref<1x128xf32, #tpu.memory_space<any>> -> memref<128xf32, #tpu.memory_space<any>>
    %c0_i32_55 = arith.constant 0 : i32
    %123 = tpu.memref_slice %arg3[%c13_i32_52, %c0_i32_55] : memref<64x128xf32, #tpu.memory_space<vmem>> -> memref<1x128xf32, #tpu.memory_space<vmem>>
    %124 = tpu.memref_squeeze %123 : memref<1x128xf32, #tpu.memory_space<vmem>> -> memref<128xf32, #tpu.memory_space<vmem>>
    %125 = tpu.memref_slice %arg4[%c13_i32_53] : memref<64x!tpu.dma_semaphore, #tpu.memory_space<semaphore_mem>> -> memref<1x!tpu.dma_semaphore, #tpu.memory_space<semaphore_mem>>
    %126 = tpu.memref_squeeze %125 : memref<1x!tpu.dma_semaphore, #tpu.memory_space<semaphore_mem>> -> memref<!tpu.dma_semaphore, #tpu.memory_space<semaphore_mem>>
    tpu.enqueue_dma source(%122 : memref<128xf32, #tpu.memory_space<any>>) target(%124 : memref<128xf32, #tpu.memory_space<vmem>>) target_semaphore(%126 : memref<!tpu.dma_semaphore, #tpu.memory_space<semaphore_mem>>)
    %c14_i32 = arith.constant 14 : i32
    %127 = arith.addi %0, %c14_i32 : i32
    %128 = arith.index_cast %127 : i32 to index
    %129 = memref.load %arg1[%128] : memref<64xi32, #tpu.memory_space<smem>>
    %c14_i32_56 = arith.constant 14 : i32
    %c14_i32_57 = arith.constant 14 : i32
    %c0_i32_58 = arith.constant 0 : i32
    %130 = tpu.memref_slice %arg2[%129, %c0_i32_58] : memref<50x128xf32, #tpu.memory_space<any>> -> memref<1x128xf32, #tpu.memory_space<any>>
    %131 = tpu.memref_squeeze %130 : memref<1x128xf32, #tpu.memory_space<any>> -> memref<128xf32, #tpu.memory_space<any>>
    %c0_i32_59 = arith.constant 0 : i32
    %132 = tpu.memref_slice %arg3[%c14_i32_56, %c0_i32_59] : memref<64x128xf32, #tpu.memory_space<vmem>> -> memref<1x128xf32, #tpu.memory_space<vmem>>
    %133 = tpu.memref_squeeze %132 : memref<1x128xf32, #tpu.memory_space<vmem>> -> memref<128xf32, #tpu.memory_space<vmem>>
    %134 = tpu.memref_slice %arg4[%c14_i32_57] : memref<64x!tpu.dma_semaphore, #tpu.memory_space<semaphore_mem>> -> memref<1x!tpu.dma_semaphore, #tpu.memory_space<semaphore_mem>>
    %135 = tpu.memref_squeeze %134 : memref<1x!tpu.dma_semaphore, #tpu.memory_space<semaphore_mem>> -> memref<!tpu.dma_semaphore, #tpu.memory_space<semaphore_mem>>
    tpu.enqueue_dma source(%131 : memref<128xf32, #tpu.memory_space<any>>) target(%133 : memref<128xf32, #tpu.memory_space<vmem>>) target_semaphore(%135 : memref<!tpu.dma_semaphore, #tpu.memory_space<semaphore_mem>>)
    %c15_i32 = arith.constant 15 : i32
    %136 = arith.addi %0, %c15_i32 : i32
    %137 = arith.index_cast %136 : i32 to index
    %138 = memref.load %arg1[%137] : memref<64xi32, #tpu.memory_space<smem>>
    %c15_i32_60 = arith.constant 15 : i32
    %c15_i32_61 = arith.constant 15 : i32
    %c0_i32_62 = arith.constant 0 : i32
    %139 = tpu.memref_slice %arg2[%138, %c0_i32_62] : memref<50x128xf32, #tpu.memory_space<any>> -> memref<1x128xf32, #tpu.memory_space<any>>
    %140 = tpu.memref_squeeze %139 : memref<1x128xf32, #tpu.memory_space<any>> -> memref<128xf32, #tpu.memory_space<any>>
    %c0_i32_63 = arith.constant 0 : i32
    %141 = tpu.memref_slice %arg3[%c15_i32_60, %c0_i32_63] : memref<64x128xf32, #tpu.memory_space<vmem>> -> memref<1x128xf32, #tpu.memory_space<vmem>>
    %142 = tpu.memref_squeeze %141 : memref<1x128xf32, #tpu.memory_space<vmem>> -> memref<128xf32, #tpu.memory_space<vmem>>
    %143 = tpu.memref_slice %arg4[%c15_i32_61] : memref<64x!tpu.dma_semaphore, #tpu.memory_space<semaphore_mem>> -> memref<1x!tpu.dma_semaphore, #tpu.memory_space<semaphore_mem>>
    %144 = tpu.memref_squeeze %143 : memref<1x!tpu.dma_semaphore, #tpu.memory_space<semaphore_mem>> -> memref<!tpu.dma_semaphore, #tpu.memory_space<semaphore_mem>>
    tpu.enqueue_dma source(%140 : memref<128xf32, #tpu.memory_space<any>>) target(%142 : memref<128xf32, #tpu.memory_space<vmem>>) target_semaphore(%144 : memref<!tpu.dma_semaphore, #tpu.memory_space<semaphore_mem>>)
    %c16_i32 = arith.constant 16 : i32
    %145 = arith.addi %0, %c16_i32 : i32
    %146 = arith.index_cast %145 : i32 to index
    %147 = memref.load %arg1[%146] : memref<64xi32, #tpu.memory_space<smem>>
    %c16_i32_64 = arith.constant 16 : i32
    %c16_i32_65 = arith.constant 16 : i32
    %c0_i32_66 = arith.constant 0 : i32
    %148 = tpu.memref_slice %arg2[%147, %c0_i32_66] : memref<50x128xf32, #tpu.memory_space<any>> -> memref<1x128xf32, #tpu.memory_space<any>>
    %149 = tpu.memref_squeeze %148 : memref<1x128xf32, #tpu.memory_space<any>> -> memref<128xf32, #tpu.memory_space<any>>
    %c0_i32_67 = arith.constant 0 : i32
    %150 = tpu.memref_slice %arg3[%c16_i32_64, %c0_i32_67] : memref<64x128xf32, #tpu.memory_space<vmem>> -> memref<1x128xf32, #tpu.memory_space<vmem>>
    %151 = tpu.memref_squeeze %150 : memref<1x128xf32, #tpu.memory_space<vmem>> -> memref<128xf32, #tpu.memory_space<vmem>>
    %152 = tpu.memref_slice %arg4[%c16_i32_65] : memref<64x!tpu.dma_semaphore, #tpu.memory_space<semaphore_mem>> -> memref<1x!tpu.dma_semaphore, #tpu.memory_space<semaphore_mem>>
    %153 = tpu.memref_squeeze %152 : memref<1x!tpu.dma_semaphore, #tpu.memory_space<semaphore_mem>> -> memref<!tpu.dma_semaphore, #tpu.memory_space<semaphore_mem>>
    tpu.enqueue_dma source(%149 : memref<128xf32, #tpu.memory_space<any>>) target(%151 : memref<128xf32, #tpu.memory_space<vmem>>) target_semaphore(%153 : memref<!tpu.dma_semaphore, #tpu.memory_space<semaphore_mem>>)
    %c17_i32 = arith.constant 17 : i32
    %154 = arith.addi %0, %c17_i32 : i32
    %155 = arith.index_cast %154 : i32 to index
    %156 = memref.load %arg1[%155] : memref<64xi32, #tpu.memory_space<smem>>
    %c17_i32_68 = arith.constant 17 : i32
    %c17_i32_69 = arith.constant 17 : i32
    %c0_i32_70 = arith.constant 0 : i32
    %157 = tpu.memref_slice %arg2[%156, %c0_i32_70] : memref<50x128xf32, #tpu.memory_space<any>> -> memref<1x128xf32, #tpu.memory_space<any>>
    %158 = tpu.memref_squeeze %157 : memref<1x128xf32, #tpu.memory_space<any>> -> memref<128xf32, #tpu.memory_space<any>>
    %c0_i32_71 = arith.constant 0 : i32
    %159 = tpu.memref_slice %arg3[%c17_i32_68, %c0_i32_71] : memref<64x128xf32, #tpu.memory_space<vmem>> -> memref<1x128xf32, #tpu.memory_space<vmem>>
    %160 = tpu.memref_squeeze %159 : memref<1x128xf32, #tpu.memory_space<vmem>> -> memref<128xf32, #tpu.memory_space<vmem>>
    %161 = tpu.memref_slice %arg4[%c17_i32_69] : memref<64x!tpu.dma_semaphore, #tpu.memory_space<semaphore_mem>> -> memref<1x!tpu.dma_semaphore, #tpu.memory_space<semaphore_mem>>
    %162 = tpu.memref_squeeze %161 : memref<1x!tpu.dma_semaphore, #tpu.memory_space<semaphore_mem>> -> memref<!tpu.dma_semaphore, #tpu.memory_space<semaphore_mem>>
    tpu.enqueue_dma source(%158 : memref<128xf32, #tpu.memory_space<any>>) target(%160 : memref<128xf32, #tpu.memory_space<vmem>>) target_semaphore(%162 : memref<!tpu.dma_semaphore, #tpu.memory_space<semaphore_mem>>)
    %c18_i32 = arith.constant 18 : i32
    %163 = arith.addi %0, %c18_i32 : i32
    %164 = arith.index_cast %163 : i32 to index
    %165 = memref.load %arg1[%164] : memref<64xi32, #tpu.memory_space<smem>>
    %c18_i32_72 = arith.constant 18 : i32
    %c18_i32_73 = arith.constant 18 : i32
    %c0_i32_74 = arith.constant 0 : i32
    %166 = tpu.memref_slice %arg2[%165, %c0_i32_74] : memref<50x128xf32, #tpu.memory_space<any>> -> memref<1x128xf32, #tpu.memory_space<any>>
    %167 = tpu.memref_squeeze %166 : memref<1x128xf32, #tpu.memory_space<any>> -> memref<128xf32, #tpu.memory_space<any>>
    %c0_i32_75 = arith.constant 0 : i32
    %168 = tpu.memref_slice %arg3[%c18_i32_72, %c0_i32_75] : memref<64x128xf32, #tpu.memory_space<vmem>> -> memref<1x128xf32, #tpu.memory_space<vmem>>
    %169 = tpu.memref_squeeze %168 : memref<1x128xf32, #tpu.memory_space<vmem>> -> memref<128xf32, #tpu.memory_space<vmem>>
    %170 = tpu.memref_slice %arg4[%c18_i32_73] : memref<64x!tpu.dma_semaphore, #tpu.memory_space<semaphore_mem>> -> memref<1x!tpu.dma_semaphore, #tpu.memory_space<semaphore_mem>>
    %171 = tpu.memref_squeeze %170 : memref<1x!tpu.dma_semaphore, #tpu.memory_space<semaphore_mem>> -> memref<!tpu.dma_semaphore, #tpu.memory_space<semaphore_mem>>
    tpu.enqueue_dma source(%167 : memref<128xf32, #tpu.memory_space<any>>) target(%169 : memref<128xf32, #tpu.memory_space<vmem>>) target_semaphore(%171 : memref<!tpu.dma_semaphore, #tpu.memory_space<semaphore_mem>>)
    %c19_i32 = arith.constant 19 : i32
    %172 = arith.addi %0, %c19_i32 : i32
    %173 = arith.index_cast %172 : i32 to index
    %174 = memref.load %arg1[%173] : memref<64xi32, #tpu.memory_space<smem>>
    %c19_i32_76 = arith.constant 19 : i32
    %c19_i32_77 = arith.constant 19 : i32
    %c0_i32_78 = arith.constant 0 : i32
    %175 = tpu.memref_slice %arg2[%174, %c0_i32_78] : memref<50x128xf32, #tpu.memory_space<any>> -> memref<1x128xf32, #tpu.memory_space<any>>
    %176 = tpu.memref_squeeze %175 : memref<1x128xf32, #tpu.memory_space<any>> -> memref<128xf32, #tpu.memory_space<any>>
    %c0_i32_79 = arith.constant 0 : i32
    %177 = tpu.memref_slice %arg3[%c19_i32_76, %c0_i32_79] : memref<64x128xf32, #tpu.memory_space<vmem>> -> memref<1x128xf32, #tpu.memory_space<vmem>>
    %178 = tpu.memref_squeeze %177 : memref<1x128xf32, #tpu.memory_space<vmem>> -> memref<128xf32, #tpu.memory_space<vmem>>
    %179 = tpu.memref_slice %arg4[%c19_i32_77] : memref<64x!tpu.dma_semaphore, #tpu.memory_space<semaphore_mem>> -> memref<1x!tpu.dma_semaphore, #tpu.memory_space<semaphore_mem>>
    %180 = tpu.memref_squeeze %179 : memref<1x!tpu.dma_semaphore, #tpu.memory_space<semaphore_mem>> -> memref<!tpu.dma_semaphore, #tpu.memory_space<semaphore_mem>>
    tpu.enqueue_dma source(%176 : memref<128xf32, #tpu.memory_space<any>>) target(%178 : memref<128xf32, #tpu.memory_space<vmem>>) target_semaphore(%180 : memref<!tpu.dma_semaphore, #tpu.memory_space<semaphore_mem>>)
    %c20_i32 = arith.constant 20 : i32
    %181 = arith.addi %0, %c20_i32 : i32
    %182 = arith.index_cast %181 : i32 to index
    %183 = memref.load %arg1[%182] : memref<64xi32, #tpu.memory_space<smem>>
    %c20_i32_80 = arith.constant 20 : i32
    %c20_i32_81 = arith.constant 20 : i32
    %c0_i32_82 = arith.constant 0 : i32
    %184 = tpu.memref_slice %arg2[%183, %c0_i32_82] : memref<50x128xf32, #tpu.memory_space<any>> -> memref<1x128xf32, #tpu.memory_space<any>>
    %185 = tpu.memref_squeeze %184 : memref<1x128xf32, #tpu.memory_space<any>> -> memref<128xf32, #tpu.memory_space<any>>
    %c0_i32_83 = arith.constant 0 : i32
    %186 = tpu.memref_slice %arg3[%c20_i32_80, %c0_i32_83] : memref<64x128xf32, #tpu.memory_space<vmem>> -> memref<1x128xf32, #tpu.memory_space<vmem>>
    %187 = tpu.memref_squeeze %186 : memref<1x128xf32, #tpu.memory_space<vmem>> -> memref<128xf32, #tpu.memory_space<vmem>>
    %188 = tpu.memref_slice %arg4[%c20_i32_81] : memref<64x!tpu.dma_semaphore, #tpu.memory_space<semaphore_mem>> -> memref<1x!tpu.dma_semaphore, #tpu.memory_space<semaphore_mem>>
    %189 = tpu.memref_squeeze %188 : memref<1x!tpu.dma_semaphore, #tpu.memory_space<semaphore_mem>> -> memref<!tpu.dma_semaphore, #tpu.memory_space<semaphore_mem>>
    tpu.enqueue_dma source(%185 : memref<128xf32, #tpu.memory_space<any>>) target(%187 : memref<128xf32, #tpu.memory_space<vmem>>) target_semaphore(%189 : memref<!tpu.dma_semaphore, #tpu.memory_space<semaphore_mem>>)
    %c21_i32 = arith.constant 21 : i32
    %190 = arith.addi %0, %c21_i32 : i32
    %191 = arith.index_cast %190 : i32 to index
    %192 = memref.load %arg1[%191] : memref<64xi32, #tpu.memory_space<smem>>
    %c21_i32_84 = arith.constant 21 : i32
    %c21_i32_85 = arith.constant 21 : i32
    %c0_i32_86 = arith.constant 0 : i32
    %193 = tpu.memref_slice %arg2[%192, %c0_i32_86] : memref<50x128xf32, #tpu.memory_space<any>> -> memref<1x128xf32, #tpu.memory_space<any>>
    %194 = tpu.memref_squeeze %193 : memref<1x128xf32, #tpu.memory_space<any>> -> memref<128xf32, #tpu.memory_space<any>>
    %c0_i32_87 = arith.constant 0 : i32
    %195 = tpu.memref_slice %arg3[%c21_i32_84, %c0_i32_87] : memref<64x128xf32, #tpu.memory_space<vmem>> -> memref<1x128xf32, #tpu.memory_space<vmem>>
    %196 = tpu.memref_squeeze %195 : memref<1x128xf32, #tpu.memory_space<vmem>> -> memref<128xf32, #tpu.memory_space<vmem>>
    %197 = tpu.memref_slice %arg4[%c21_i32_85] : memref<64x!tpu.dma_semaphore, #tpu.memory_space<semaphore_mem>> -> memref<1x!tpu.dma_semaphore, #tpu.memory_space<semaphore_mem>>
    %198 = tpu.memref_squeeze %197 : memref<1x!tpu.dma_semaphore, #tpu.memory_space<semaphore_mem>> -> memref<!tpu.dma_semaphore, #tpu.memory_space<semaphore_mem>>
    tpu.enqueue_dma source(%194 : memref<128xf32, #tpu.memory_space<any>>) target(%196 : memref<128xf32, #tpu.memory_space<vmem>>) target_semaphore(%198 : memref<!tpu.dma_semaphore, #tpu.memory_space<semaphore_mem>>)
    %c22_i32 = arith.constant 22 : i32
    %199 = arith.addi %0, %c22_i32 : i32
    %200 = arith.index_cast %199 : i32 to index
    %201 = memref.load %arg1[%200] : memref<64xi32, #tpu.memory_space<smem>>
    %c22_i32_88 = arith.constant 22 : i32
    %c22_i32_89 = arith.constant 22 : i32
    %c0_i32_90 = arith.constant 0 : i32
    %202 = tpu.memref_slice %arg2[%201, %c0_i32_90] : memref<50x128xf32, #tpu.memory_space<any>> -> memref<1x128xf32, #tpu.memory_space<any>>
    %203 = tpu.memref_squeeze %202 : memref<1x128xf32, #tpu.memory_space<any>> -> memref<128xf32, #tpu.memory_space<any>>
    %c0_i32_91 = arith.constant 0 : i32
    %204 = tpu.memref_slice %arg3[%c22_i32_88, %c0_i32_91] : memref<64x128xf32, #tpu.memory_space<vmem>> -> memref<1x128xf32, #tpu.memory_space<vmem>>
    %205 = tpu.memref_squeeze %204 : memref<1x128xf32, #tpu.memory_space<vmem>> -> memref<128xf32, #tpu.memory_space<vmem>>
    %206 = tpu.memref_slice %arg4[%c22_i32_89] : memref<64x!tpu.dma_semaphore, #tpu.memory_space<semaphore_mem>> -> memref<1x!tpu.dma_semaphore, #tpu.memory_space<semaphore_mem>>
    %207 = tpu.memref_squeeze %206 : memref<1x!tpu.dma_semaphore, #tpu.memory_space<semaphore_mem>> -> memref<!tpu.dma_semaphore, #tpu.memory_space<semaphore_mem>>
    tpu.enqueue_dma source(%203 : memref<128xf32, #tpu.memory_space<any>>) target(%205 : memref<128xf32, #tpu.memory_space<vmem>>) target_semaphore(%207 : memref<!tpu.dma_semaphore, #tpu.memory_space<semaphore_mem>>)
    %c23_i32 = arith.constant 23 : i32
    %208 = arith.addi %0, %c23_i32 : i32
    %209 = arith.index_cast %208 : i32 to index
    %210 = memref.load %arg1[%209] : memref<64xi32, #tpu.memory_space<smem>>
    %c23_i32_92 = arith.constant 23 : i32
    %c23_i32_93 = arith.constant 23 : i32
    %c0_i32_94 = arith.constant 0 : i32
    %211 = tpu.memref_slice %arg2[%210, %c0_i32_94] : memref<50x128xf32, #tpu.memory_space<any>> -> memref<1x128xf32, #tpu.memory_space<any>>
    %212 = tpu.memref_squeeze %211 : memref<1x128xf32, #tpu.memory_space<any>> -> memref<128xf32, #tpu.memory_space<any>>
    %c0_i32_95 = arith.constant 0 : i32
    %213 = tpu.memref_slice %arg3[%c23_i32_92, %c0_i32_95] : memref<64x128xf32, #tpu.memory_space<vmem>> -> memref<1x128xf32, #tpu.memory_space<vmem>>
    %214 = tpu.memref_squeeze %213 : memref<1x128xf32, #tpu.memory_space<vmem>> -> memref<128xf32, #tpu.memory_space<vmem>>
    %215 = tpu.memref_slice %arg4[%c23_i32_93] : memref<64x!tpu.dma_semaphore, #tpu.memory_space<semaphore_mem>> -> memref<1x!tpu.dma_semaphore, #tpu.memory_space<semaphore_mem>>
    %216 = tpu.memref_squeeze %215 : memref<1x!tpu.dma_semaphore, #tpu.memory_space<semaphore_mem>> -> memref<!tpu.dma_semaphore, #tpu.memory_space<semaphore_mem>>
    tpu.enqueue_dma source(%212 : memref<128xf32, #tpu.memory_space<any>>) target(%214 : memref<128xf32, #tpu.memory_space<vmem>>) target_semaphore(%216 : memref<!tpu.dma_semaphore, #tpu.memory_space<semaphore_mem>>)
    %c24_i32 = arith.constant 24 : i32
    %217 = arith.addi %0, %c24_i32 : i32
    %218 = arith.index_cast %217 : i32 to index
    %219 = memref.load %arg1[%218] : memref<64xi32, #tpu.memory_space<smem>>
    %c24_i32_96 = arith.constant 24 : i32
    %c24_i32_97 = arith.constant 24 : i32
    %c0_i32_98 = arith.constant 0 : i32
    %220 = tpu.memref_slice %arg2[%219, %c0_i32_98] : memref<50x128xf32, #tpu.memory_space<any>> -> memref<1x128xf32, #tpu.memory_space<any>>
    %221 = tpu.memref_squeeze %220 : memref<1x128xf32, #tpu.memory_space<any>> -> memref<128xf32, #tpu.memory_space<any>>
    %c0_i32_99 = arith.constant 0 : i32
    %222 = tpu.memref_slice %arg3[%c24_i32_96, %c0_i32_99] : memref<64x128xf32, #tpu.memory_space<vmem>> -> memref<1x128xf32, #tpu.memory_space<vmem>>
    %223 = tpu.memref_squeeze %222 : memref<1x128xf32, #tpu.memory_space<vmem>> -> memref<128xf32, #tpu.memory_space<vmem>>
    %224 = tpu.memref_slice %arg4[%c24_i32_97] : memref<64x!tpu.dma_semaphore, #tpu.memory_space<semaphore_mem>> -> memref<1x!tpu.dma_semaphore, #tpu.memory_space<semaphore_mem>>
    %225 = tpu.memref_squeeze %224 : memref<1x!tpu.dma_semaphore, #tpu.memory_space<semaphore_mem>> -> memref<!tpu.dma_semaphore, #tpu.memory_space<semaphore_mem>>
    tpu.enqueue_dma source(%221 : memref<128xf32, #tpu.memory_space<any>>) target(%223 : memref<128xf32, #tpu.memory_space<vmem>>) target_semaphore(%225 : memref<!tpu.dma_semaphore, #tpu.memory_space<semaphore_mem>>)
    %c25_i32 = arith.constant 25 : i32
    %226 = arith.addi %0, %c25_i32 : i32
    %227 = arith.index_cast %226 : i32 to index
    %228 = memref.load %arg1[%227] : memref<64xi32, #tpu.memory_space<smem>>
    %c25_i32_100 = arith.constant 25 : i32
    %c25_i32_101 = arith.constant 25 : i32
    %c0_i32_102 = arith.constant 0 : i32
    %229 = tpu.memref_slice %arg2[%228, %c0_i32_102] : memref<50x128xf32, #tpu.memory_space<any>> -> memref<1x128xf32, #tpu.memory_space<any>>
    %230 = tpu.memref_squeeze %229 : memref<1x128xf32, #tpu.memory_space<any>> -> memref<128xf32, #tpu.memory_space<any>>
    %c0_i32_103 = arith.constant 0 : i32
    %231 = tpu.memref_slice %arg3[%c25_i32_100, %c0_i32_103] : memref<64x128xf32, #tpu.memory_space<vmem>> -> memref<1x128xf32, #tpu.memory_space<vmem>>
    %232 = tpu.memref_squeeze %231 : memref<1x128xf32, #tpu.memory_space<vmem>> -> memref<128xf32, #tpu.memory_space<vmem>>
    %233 = tpu.memref_slice %arg4[%c25_i32_101] : memref<64x!tpu.dma_semaphore, #tpu.memory_space<semaphore_mem>> -> memref<1x!tpu.dma_semaphore, #tpu.memory_space<semaphore_mem>>
    %234 = tpu.memref_squeeze %233 : memref<1x!tpu.dma_semaphore, #tpu.memory_space<semaphore_mem>> -> memref<!tpu.dma_semaphore, #tpu.memory_space<semaphore_mem>>
    tpu.enqueue_dma source(%230 : memref<128xf32, #tpu.memory_space<any>>) target(%232 : memref<128xf32, #tpu.memory_space<vmem>>) target_semaphore(%234 : memref<!tpu.dma_semaphore, #tpu.memory_space<semaphore_mem>>)
    %c26_i32 = arith.constant 26 : i32
    %235 = arith.addi %0, %c26_i32 : i32
    %236 = arith.index_cast %235 : i32 to index
    %237 = memref.load %arg1[%236] : memref<64xi32, #tpu.memory_space<smem>>
    %c26_i32_104 = arith.constant 26 : i32
    %c26_i32_105 = arith.constant 26 : i32
    %c0_i32_106 = arith.constant 0 : i32
    %238 = tpu.memref_slice %arg2[%237, %c0_i32_106] : memref<50x128xf32, #tpu.memory_space<any>> -> memref<1x128xf32, #tpu.memory_space<any>>
    %239 = tpu.memref_squeeze %238 : memref<1x128xf32, #tpu.memory_space<any>> -> memref<128xf32, #tpu.memory_space<any>>
    %c0_i32_107 = arith.constant 0 : i32
    %240 = tpu.memref_slice %arg3[%c26_i32_104, %c0_i32_107] : memref<64x128xf32, #tpu.memory_space<vmem>> -> memref<1x128xf32, #tpu.memory_space<vmem>>
    %241 = tpu.memref_squeeze %240 : memref<1x128xf32, #tpu.memory_space<vmem>> -> memref<128xf32, #tpu.memory_space<vmem>>
    %242 = tpu.memref_slice %arg4[%c26_i32_105] : memref<64x!tpu.dma_semaphore, #tpu.memory_space<semaphore_mem>> -> memref<1x!tpu.dma_semaphore, #tpu.memory_space<semaphore_mem>>
    %243 = tpu.memref_squeeze %242 : memref<1x!tpu.dma_semaphore, #tpu.memory_space<semaphore_mem>> -> memref<!tpu.dma_semaphore, #tpu.memory_space<semaphore_mem>>
    tpu.enqueue_dma source(%239 : memref<128xf32, #tpu.memory_space<any>>) target(%241 : memref<128xf32, #tpu.memory_space<vmem>>) target_semaphore(%243 : memref<!tpu.dma_semaphore, #tpu.memory_space<semaphore_mem>>)
    %c27_i32 = arith.constant 27 : i32
    %244 = arith.addi %0, %c27_i32 : i32
    %245 = arith.index_cast %244 : i32 to index
    %246 = memref.load %arg1[%245] : memref<64xi32, #tpu.memory_space<smem>>
    %c27_i32_108 = arith.constant 27 : i32
    %c27_i32_109 = arith.constant 27 : i32
    %c0_i32_110 = arith.constant 0 : i32
    %247 = tpu.memref_slice %arg2[%246, %c0_i32_110] : memref<50x128xf32, #tpu.memory_space<any>> -> memref<1x128xf32, #tpu.memory_space<any>>
    %248 = tpu.memref_squeeze %247 : memref<1x128xf32, #tpu.memory_space<any>> -> memref<128xf32, #tpu.memory_space<any>>
    %c0_i32_111 = arith.constant 0 : i32
    %249 = tpu.memref_slice %arg3[%c27_i32_108, %c0_i32_111] : memref<64x128xf32, #tpu.memory_space<vmem>> -> memref<1x128xf32, #tpu.memory_space<vmem>>
    %250 = tpu.memref_squeeze %249 : memref<1x128xf32, #tpu.memory_space<vmem>> -> memref<128xf32, #tpu.memory_space<vmem>>
    %251 = tpu.memref_slice %arg4[%c27_i32_109] : memref<64x!tpu.dma_semaphore, #tpu.memory_space<semaphore_mem>> -> memref<1x!tpu.dma_semaphore, #tpu.memory_space<semaphore_mem>>
    %252 = tpu.memref_squeeze %251 : memref<1x!tpu.dma_semaphore, #tpu.memory_space<semaphore_mem>> -> memref<!tpu.dma_semaphore, #tpu.memory_space<semaphore_mem>>
    tpu.enqueue_dma source(%248 : memref<128xf32, #tpu.memory_space<any>>) target(%250 : memref<128xf32, #tpu.memory_space<vmem>>) target_semaphore(%252 : memref<!tpu.dma_semaphore, #tpu.memory_space<semaphore_mem>>)
    %c28_i32 = arith.constant 28 : i32
    %253 = arith.addi %0, %c28_i32 : i32
    %254 = arith.index_cast %253 : i32 to index
    %255 = memref.load %arg1[%254] : memref<64xi32, #tpu.memory_space<smem>>
    %c28_i32_112 = arith.constant 28 : i32
    %c28_i32_113 = arith.constant 28 : i32
    %c0_i32_114 = arith.constant 0 : i32
    %256 = tpu.memref_slice %arg2[%255, %c0_i32_114] : memref<50x128xf32, #tpu.memory_space<any>> -> memref<1x128xf32, #tpu.memory_space<any>>
    %257 = tpu.memref_squeeze %256 : memref<1x128xf32, #tpu.memory_space<any>> -> memref<128xf32, #tpu.memory_space<any>>
    %c0_i32_115 = arith.constant 0 : i32
    %258 = tpu.memref_slice %arg3[%c28_i32_112, %c0_i32_115] : memref<64x128xf32, #tpu.memory_space<vmem>> -> memref<1x128xf32, #tpu.memory_space<vmem>>
    %259 = tpu.memref_squeeze %258 : memref<1x128xf32, #tpu.memory_space<vmem>> -> memref<128xf32, #tpu.memory_space<vmem>>
    %260 = tpu.memref_slice %arg4[%c28_i32_113] : memref<64x!tpu.dma_semaphore, #tpu.memory_space<semaphore_mem>> -> memref<1x!tpu.dma_semaphore, #tpu.memory_space<semaphore_mem>>
    %261 = tpu.memref_squeeze %260 : memref<1x!tpu.dma_semaphore, #tpu.memory_space<semaphore_mem>> -> memref<!tpu.dma_semaphore, #tpu.memory_space<semaphore_mem>>
    tpu.enqueue_dma source(%257 : memref<128xf32, #tpu.memory_space<any>>) target(%259 : memref<128xf32, #tpu.memory_space<vmem>>) target_semaphore(%261 : memref<!tpu.dma_semaphore, #tpu.memory_space<semaphore_mem>>)
    %c29_i32 = arith.constant 29 : i32
    %262 = arith.addi %0, %c29_i32 : i32
    %263 = arith.index_cast %262 : i32 to index
    %264 = memref.load %arg1[%263] : memref<64xi32, #tpu.memory_space<smem>>
    %c29_i32_116 = arith.constant 29 : i32
    %c29_i32_117 = arith.constant 29 : i32
    %c0_i32_118 = arith.constant 0 : i32
    %265 = tpu.memref_slice %arg2[%264, %c0_i32_118] : memref<50x128xf32, #tpu.memory_space<any>> -> memref<1x128xf32, #tpu.memory_space<any>>
    %266 = tpu.memref_squeeze %265 : memref<1x128xf32, #tpu.memory_space<any>> -> memref<128xf32, #tpu.memory_space<any>>
    %c0_i32_119 = arith.constant 0 : i32
    %267 = tpu.memref_slice %arg3[%c29_i32_116, %c0_i32_119] : memref<64x128xf32, #tpu.memory_space<vmem>> -> memref<1x128xf32, #tpu.memory_space<vmem>>
    %268 = tpu.memref_squeeze %267 : memref<1x128xf32, #tpu.memory_space<vmem>> -> memref<128xf32, #tpu.memory_space<vmem>>
    %269 = tpu.memref_slice %arg4[%c29_i32_117] : memref<64x!tpu.dma_semaphore, #tpu.memory_space<semaphore_mem>> -> memref<1x!tpu.dma_semaphore, #tpu.memory_space<semaphore_mem>>
    %270 = tpu.memref_squeeze %269 : memref<1x!tpu.dma_semaphore, #tpu.memory_space<semaphore_mem>> -> memref<!tpu.dma_semaphore, #tpu.memory_space<semaphore_mem>>
    tpu.enqueue_dma source(%266 : memref<128xf32, #tpu.memory_space<any>>) target(%268 : memref<128xf32, #tpu.memory_space<vmem>>) target_semaphore(%270 : memref<!tpu.dma_semaphore, #tpu.memory_space<semaphore_mem>>)
    %c30_i32 = arith.constant 30 : i32
    %271 = arith.addi %0, %c30_i32 : i32
    %272 = arith.index_cast %271 : i32 to index
    %273 = memref.load %arg1[%272] : memref<64xi32, #tpu.memory_space<smem>>
    %c30_i32_120 = arith.constant 30 : i32
    %c30_i32_121 = arith.constant 30 : i32
    %c0_i32_122 = arith.constant 0 : i32
    %274 = tpu.memref_slice %arg2[%273, %c0_i32_122] : memref<50x128xf32, #tpu.memory_space<any>> -> memref<1x128xf32, #tpu.memory_space<any>>
    %275 = tpu.memref_squeeze %274 : memref<1x128xf32, #tpu.memory_space<any>> -> memref<128xf32, #tpu.memory_space<any>>
    %c0_i32_123 = arith.constant 0 : i32
    %276 = tpu.memref_slice %arg3[%c30_i32_120, %c0_i32_123] : memref<64x128xf32, #tpu.memory_space<vmem>> -> memref<1x128xf32, #tpu.memory_space<vmem>>
    %277 = tpu.memref_squeeze %276 : memref<1x128xf32, #tpu.memory_space<vmem>> -> memref<128xf32, #tpu.memory_space<vmem>>
    %278 = tpu.memref_slice %arg4[%c30_i32_121] : memref<64x!tpu.dma_semaphore, #tpu.memory_space<semaphore_mem>> -> memref<1x!tpu.dma_semaphore, #tpu.memory_space<semaphore_mem>>
    %279 = tpu.memref_squeeze %278 : memref<1x!tpu.dma_semaphore, #tpu.memory_space<semaphore_mem>> -> memref<!tpu.dma_semaphore, #tpu.memory_space<semaphore_mem>>
    tpu.enqueue_dma source(%275 : memref<128xf32, #tpu.memory_space<any>>) target(%277 : memref<128xf32, #tpu.memory_space<vmem>>) target_semaphore(%279 : memref<!tpu.dma_semaphore, #tpu.memory_space<semaphore_mem>>)
    %c31_i32 = arith.constant 31 : i32
    %280 = arith.addi %0, %c31_i32 : i32
    %281 = arith.index_cast %280 : i32 to index
    %282 = memref.load %arg1[%281] : memref<64xi32, #tpu.memory_space<smem>>
    %c31_i32_124 = arith.constant 31 : i32
    %c31_i32_125 = arith.constant 31 : i32
    %c0_i32_126 = arith.constant 0 : i32
    %283 = tpu.memref_slice %arg2[%282, %c0_i32_126] : memref<50x128xf32, #tpu.memory_space<any>> -> memref<1x128xf32, #tpu.memory_space<any>>
    %284 = tpu.memref_squeeze %283 : memref<1x128xf32, #tpu.memory_space<any>> -> memref<128xf32, #tpu.memory_space<any>>
    %c0_i32_127 = arith.constant 0 : i32
    %285 = tpu.memref_slice %arg3[%c31_i32_124, %c0_i32_127] : memref<64x128xf32, #tpu.memory_space<vmem>> -> memref<1x128xf32, #tpu.memory_space<vmem>>
    %286 = tpu.memref_squeeze %285 : memref<1x128xf32, #tpu.memory_space<vmem>> -> memref<128xf32, #tpu.memory_space<vmem>>
    %287 = tpu.memref_slice %arg4[%c31_i32_125] : memref<64x!tpu.dma_semaphore, #tpu.memory_space<semaphore_mem>> -> memref<1x!tpu.dma_semaphore, #tpu.memory_space<semaphore_mem>>
    %288 = tpu.memref_squeeze %287 : memref<1x!tpu.dma_semaphore, #tpu.memory_space<semaphore_mem>> -> memref<!tpu.dma_semaphore, #tpu.memory_space<semaphore_mem>>
    tpu.enqueue_dma source(%284 : memref<128xf32, #tpu.memory_space<any>>) target(%286 : memref<128xf32, #tpu.memory_space<vmem>>) target_semaphore(%288 : memref<!tpu.dma_semaphore, #tpu.memory_space<semaphore_mem>>)
    %c32_i32 = arith.constant 32 : i32
    %289 = arith.addi %0, %c32_i32 : i32
    %290 = arith.index_cast %289 : i32 to index
    %291 = memref.load %arg1[%290] : memref<64xi32, #tpu.memory_space<smem>>
    %c32_i32_128 = arith.constant 32 : i32
    %c32_i32_129 = arith.constant 32 : i32
    %c0_i32_130 = arith.constant 0 : i32
    %292 = tpu.memref_slice %arg2[%291, %c0_i32_130] : memref<50x128xf32, #tpu.memory_space<any>> -> memref<1x128xf32, #tpu.memory_space<any>>
    %293 = tpu.memref_squeeze %292 : memref<1x128xf32, #tpu.memory_space<any>> -> memref<128xf32, #tpu.memory_space<any>>
    %c0_i32_131 = arith.constant 0 : i32
    %294 = tpu.memref_slice %arg3[%c32_i32_128, %c0_i32_131] : memref<64x128xf32, #tpu.memory_space<vmem>> -> memref<1x128xf32, #tpu.memory_space<vmem>>
    %295 = tpu.memref_squeeze %294 : memref<1x128xf32, #tpu.memory_space<vmem>> -> memref<128xf32, #tpu.memory_space<vmem>>
    %296 = tpu.memref_slice %arg4[%c32_i32_129] : memref<64x!tpu.dma_semaphore, #tpu.memory_space<semaphore_mem>> -> memref<1x!tpu.dma_semaphore, #tpu.memory_space<semaphore_mem>>
    %297 = tpu.memref_squeeze %296 : memref<1x!tpu.dma_semaphore, #tpu.memory_space<semaphore_mem>> -> memref<!tpu.dma_semaphore, #tpu.memory_space<semaphore_mem>>
    tpu.enqueue_dma source(%293 : memref<128xf32, #tpu.memory_space<any>>) target(%295 : memref<128xf32, #tpu.memory_space<vmem>>) target_semaphore(%297 : memref<!tpu.dma_semaphore, #tpu.memory_space<semaphore_mem>>)
    %c33_i32 = arith.constant 33 : i32
    %298 = arith.addi %0, %c33_i32 : i32
    %299 = arith.index_cast %298 : i32 to index
    %300 = memref.load %arg1[%299] : memref<64xi32, #tpu.memory_space<smem>>
    %c33_i32_132 = arith.constant 33 : i32
    %c33_i32_133 = arith.constant 33 : i32
    %c0_i32_134 = arith.constant 0 : i32
    %301 = tpu.memref_slice %arg2[%300, %c0_i32_134] : memref<50x128xf32, #tpu.memory_space<any>> -> memref<1x128xf32, #tpu.memory_space<any>>
    %302 = tpu.memref_squeeze %301 : memref<1x128xf32, #tpu.memory_space<any>> -> memref<128xf32, #tpu.memory_space<any>>
    %c0_i32_135 = arith.constant 0 : i32
    %303 = tpu.memref_slice %arg3[%c33_i32_132, %c0_i32_135] : memref<64x128xf32, #tpu.memory_space<vmem>> -> memref<1x128xf32, #tpu.memory_space<vmem>>
    %304 = tpu.memref_squeeze %303 : memref<1x128xf32, #tpu.memory_space<vmem>> -> memref<128xf32, #tpu.memory_space<vmem>>
    %305 = tpu.memref_slice %arg4[%c33_i32_133] : memref<64x!tpu.dma_semaphore, #tpu.memory_space<semaphore_mem>> -> memref<1x!tpu.dma_semaphore, #tpu.memory_space<semaphore_mem>>
    %306 = tpu.memref_squeeze %305 : memref<1x!tpu.dma_semaphore, #tpu.memory_space<semaphore_mem>> -> memref<!tpu.dma_semaphore, #tpu.memory_space<semaphore_mem>>
    tpu.enqueue_dma source(%302 : memref<128xf32, #tpu.memory_space<any>>) target(%304 : memref<128xf32, #tpu.memory_space<vmem>>) target_semaphore(%306 : memref<!tpu.dma_semaphore, #tpu.memory_space<semaphore_mem>>)
    %c34_i32 = arith.constant 34 : i32
    %307 = arith.addi %0, %c34_i32 : i32
    %308 = arith.index_cast %307 : i32 to index
    %309 = memref.load %arg1[%308] : memref<64xi32, #tpu.memory_space<smem>>
    %c34_i32_136 = arith.constant 34 : i32
    %c34_i32_137 = arith.constant 34 : i32
    %c0_i32_138 = arith.constant 0 : i32
    %310 = tpu.memref_slice %arg2[%309, %c0_i32_138] : memref<50x128xf32, #tpu.memory_space<any>> -> memref<1x128xf32, #tpu.memory_space<any>>
    %311 = tpu.memref_squeeze %310 : memref<1x128xf32, #tpu.memory_space<any>> -> memref<128xf32, #tpu.memory_space<any>>
    %c0_i32_139 = arith.constant 0 : i32
    %312 = tpu.memref_slice %arg3[%c34_i32_136, %c0_i32_139] : memref<64x128xf32, #tpu.memory_space<vmem>> -> memref<1x128xf32, #tpu.memory_space<vmem>>
    %313 = tpu.memref_squeeze %312 : memref<1x128xf32, #tpu.memory_space<vmem>> -> memref<128xf32, #tpu.memory_space<vmem>>
    %314 = tpu.memref_slice %arg4[%c34_i32_137] : memref<64x!tpu.dma_semaphore, #tpu.memory_space<semaphore_mem>> -> memref<1x!tpu.dma_semaphore, #tpu.memory_space<semaphore_mem>>
    %315 = tpu.memref_squeeze %314 : memref<1x!tpu.dma_semaphore, #tpu.memory_space<semaphore_mem>> -> memref<!tpu.dma_semaphore, #tpu.memory_space<semaphore_mem>>
    tpu.enqueue_dma source(%311 : memref<128xf32, #tpu.memory_space<any>>) target(%313 : memref<128xf32, #tpu.memory_space<vmem>>) target_semaphore(%315 : memref<!tpu.dma_semaphore, #tpu.memory_space<semaphore_mem>>)
    %c35_i32 = arith.constant 35 : i32
    %316 = arith.addi %0, %c35_i32 : i32
    %317 = arith.index_cast %316 : i32 to index
    %318 = memref.load %arg1[%317] : memref<64xi32, #tpu.memory_space<smem>>
    %c35_i32_140 = arith.constant 35 : i32
    %c35_i32_141 = arith.constant 35 : i32
    %c0_i32_142 = arith.constant 0 : i32
    %319 = tpu.memref_slice %arg2[%318, %c0_i32_142] : memref<50x128xf32, #tpu.memory_space<any>> -> memref<1x128xf32, #tpu.memory_space<any>>
    %320 = tpu.memref_squeeze %319 : memref<1x128xf32, #tpu.memory_space<any>> -> memref<128xf32, #tpu.memory_space<any>>
    %c0_i32_143 = arith.constant 0 : i32
    %321 = tpu.memref_slice %arg3[%c35_i32_140, %c0_i32_143] : memref<64x128xf32, #tpu.memory_space<vmem>> -> memref<1x128xf32, #tpu.memory_space<vmem>>
    %322 = tpu.memref_squeeze %321 : memref<1x128xf32, #tpu.memory_space<vmem>> -> memref<128xf32, #tpu.memory_space<vmem>>
    %323 = tpu.memref_slice %arg4[%c35_i32_141] : memref<64x!tpu.dma_semaphore, #tpu.memory_space<semaphore_mem>> -> memref<1x!tpu.dma_semaphore, #tpu.memory_space<semaphore_mem>>
    %324 = tpu.memref_squeeze %323 : memref<1x!tpu.dma_semaphore, #tpu.memory_space<semaphore_mem>> -> memref<!tpu.dma_semaphore, #tpu.memory_space<semaphore_mem>>
    tpu.enqueue_dma source(%320 : memref<128xf32, #tpu.memory_space<any>>) target(%322 : memref<128xf32, #tpu.memory_space<vmem>>) target_semaphore(%324 : memref<!tpu.dma_semaphore, #tpu.memory_space<semaphore_mem>>)
    %c36_i32 = arith.constant 36 : i32
    %325 = arith.addi %0, %c36_i32 : i32
    %326 = arith.index_cast %325 : i32 to index
    %327 = memref.load %arg1[%326] : memref<64xi32, #tpu.memory_space<smem>>
    %c36_i32_144 = arith.constant 36 : i32
    %c36_i32_145 = arith.constant 36 : i32
    %c0_i32_146 = arith.constant 0 : i32
    %328 = tpu.memref_slice %arg2[%327, %c0_i32_146] : memref<50x128xf32, #tpu.memory_space<any>> -> memref<1x128xf32, #tpu.memory_space<any>>
    %329 = tpu.memref_squeeze %328 : memref<1x128xf32, #tpu.memory_space<any>> -> memref<128xf32, #tpu.memory_space<any>>
    %c0_i32_147 = arith.constant 0 : i32
    %330 = tpu.memref_slice %arg3[%c36_i32_144, %c0_i32_147] : memref<64x128xf32, #tpu.memory_space<vmem>> -> memref<1x128xf32, #tpu.memory_space<vmem>>
    %331 = tpu.memref_squeeze %330 : memref<1x128xf32, #tpu.memory_space<vmem>> -> memref<128xf32, #tpu.memory_space<vmem>>
    %332 = tpu.memref_slice %arg4[%c36_i32_145] : memref<64x!tpu.dma_semaphore, #tpu.memory_space<semaphore_mem>> -> memref<1x!tpu.dma_semaphore, #tpu.memory_space<semaphore_mem>>
    %333 = tpu.memref_squeeze %332 : memref<1x!tpu.dma_semaphore, #tpu.memory_space<semaphore_mem>> -> memref<!tpu.dma_semaphore, #tpu.memory_space<semaphore_mem>>
    tpu.enqueue_dma source(%329 : memref<128xf32, #tpu.memory_space<any>>) target(%331 : memref<128xf32, #tpu.memory_space<vmem>>) target_semaphore(%333 : memref<!tpu.dma_semaphore, #tpu.memory_space<semaphore_mem>>)
    %c37_i32 = arith.constant 37 : i32
    %334 = arith.addi %0, %c37_i32 : i32
    %335 = arith.index_cast %334 : i32 to index
    %336 = memref.load %arg1[%335] : memref<64xi32, #tpu.memory_space<smem>>
    %c37_i32_148 = arith.constant 37 : i32
    %c37_i32_149 = arith.constant 37 : i32
    %c0_i32_150 = arith.constant 0 : i32
    %337 = tpu.memref_slice %arg2[%336, %c0_i32_150] : memref<50x128xf32, #tpu.memory_space<any>> -> memref<1x128xf32, #tpu.memory_space<any>>
    %338 = tpu.memref_squeeze %337 : memref<1x128xf32, #tpu.memory_space<any>> -> memref<128xf32, #tpu.memory_space<any>>
    %c0_i32_151 = arith.constant 0 : i32
    %339 = tpu.memref_slice %arg3[%c37_i32_148, %c0_i32_151] : memref<64x128xf32, #tpu.memory_space<vmem>> -> memref<1x128xf32, #tpu.memory_space<vmem>>
    %340 = tpu.memref_squeeze %339 : memref<1x128xf32, #tpu.memory_space<vmem>> -> memref<128xf32, #tpu.memory_space<vmem>>
    %341 = tpu.memref_slice %arg4[%c37_i32_149] : memref<64x!tpu.dma_semaphore, #tpu.memory_space<semaphore_mem>> -> memref<1x!tpu.dma_semaphore, #tpu.memory_space<semaphore_mem>>
    %342 = tpu.memref_squeeze %341 : memref<1x!tpu.dma_semaphore, #tpu.memory_space<semaphore_mem>> -> memref<!tpu.dma_semaphore, #tpu.memory_space<semaphore_mem>>
    tpu.enqueue_dma source(%338 : memref<128xf32, #tpu.memory_space<any>>) target(%340 : memref<128xf32, #tpu.memory_space<vmem>>) target_semaphore(%342 : memref<!tpu.dma_semaphore, #tpu.memory_space<semaphore_mem>>)
    %c38_i32 = arith.constant 38 : i32
    %343 = arith.addi %0, %c38_i32 : i32
    %344 = arith.index_cast %343 : i32 to index
    %345 = memref.load %arg1[%344] : memref<64xi32, #tpu.memory_space<smem>>
    %c38_i32_152 = arith.constant 38 : i32
    %c38_i32_153 = arith.constant 38 : i32
    %c0_i32_154 = arith.constant 0 : i32
    %346 = tpu.memref_slice %arg2[%345, %c0_i32_154] : memref<50x128xf32, #tpu.memory_space<any>> -> memref<1x128xf32, #tpu.memory_space<any>>
    %347 = tpu.memref_squeeze %346 : memref<1x128xf32, #tpu.memory_space<any>> -> memref<128xf32, #tpu.memory_space<any>>
    %c0_i32_155 = arith.constant 0 : i32
    %348 = tpu.memref_slice %arg3[%c38_i32_152, %c0_i32_155] : memref<64x128xf32, #tpu.memory_space<vmem>> -> memref<1x128xf32, #tpu.memory_space<vmem>>
    %349 = tpu.memref_squeeze %348 : memref<1x128xf32, #tpu.memory_space<vmem>> -> memref<128xf32, #tpu.memory_space<vmem>>
    %350 = tpu.memref_slice %arg4[%c38_i32_153] : memref<64x!tpu.dma_semaphore, #tpu.memory_space<semaphore_mem>> -> memref<1x!tpu.dma_semaphore, #tpu.memory_space<semaphore_mem>>
    %351 = tpu.memref_squeeze %350 : memref<1x!tpu.dma_semaphore, #tpu.memory_space<semaphore_mem>> -> memref<!tpu.dma_semaphore, #tpu.memory_space<semaphore_mem>>
    tpu.enqueue_dma source(%347 : memref<128xf32, #tpu.memory_space<any>>) target(%349 : memref<128xf32, #tpu.memory_space<vmem>>) target_semaphore(%351 : memref<!tpu.dma_semaphore, #tpu.memory_space<semaphore_mem>>)
    %c39_i32 = arith.constant 39 : i32
    %352 = arith.addi %0, %c39_i32 : i32
    %353 = arith.index_cast %352 : i32 to index
    %354 = memref.load %arg1[%353] : memref<64xi32, #tpu.memory_space<smem>>
    %c39_i32_156 = arith.constant 39 : i32
    %c39_i32_157 = arith.constant 39 : i32
    %c0_i32_158 = arith.constant 0 : i32
    %355 = tpu.memref_slice %arg2[%354, %c0_i32_158] : memref<50x128xf32, #tpu.memory_space<any>> -> memref<1x128xf32, #tpu.memory_space<any>>
    %356 = tpu.memref_squeeze %355 : memref<1x128xf32, #tpu.memory_space<any>> -> memref<128xf32, #tpu.memory_space<any>>
    %c0_i32_159 = arith.constant 0 : i32
    %357 = tpu.memref_slice %arg3[%c39_i32_156, %c0_i32_159] : memref<64x128xf32, #tpu.memory_space<vmem>> -> memref<1x128xf32, #tpu.memory_space<vmem>>
    %358 = tpu.memref_squeeze %357 : memref<1x128xf32, #tpu.memory_space<vmem>> -> memref<128xf32, #tpu.memory_space<vmem>>
    %359 = tpu.memref_slice %arg4[%c39_i32_157] : memref<64x!tpu.dma_semaphore, #tpu.memory_space<semaphore_mem>> -> memref<1x!tpu.dma_semaphore, #tpu.memory_space<semaphore_mem>>
    %360 = tpu.memref_squeeze %359 : memref<1x!tpu.dma_semaphore, #tpu.memory_space<semaphore_mem>> -> memref<!tpu.dma_semaphore, #tpu.memory_space<semaphore_mem>>
    tpu.enqueue_dma source(%356 : memref<128xf32, #tpu.memory_space<any>>) target(%358 : memref<128xf32, #tpu.memory_space<vmem>>) target_semaphore(%360 : memref<!tpu.dma_semaphore, #tpu.memory_space<semaphore_mem>>)
    %c40_i32 = arith.constant 40 : i32
    %361 = arith.addi %0, %c40_i32 : i32
    %362 = arith.index_cast %361 : i32 to index
    %363 = memref.load %arg1[%362] : memref<64xi32, #tpu.memory_space<smem>>
    %c40_i32_160 = arith.constant 40 : i32
    %c40_i32_161 = arith.constant 40 : i32
    %c0_i32_162 = arith.constant 0 : i32
    %364 = tpu.memref_slice %arg2[%363, %c0_i32_162] : memref<50x128xf32, #tpu.memory_space<any>> -> memref<1x128xf32, #tpu.memory_space<any>>
    %365 = tpu.memref_squeeze %364 : memref<1x128xf32, #tpu.memory_space<any>> -> memref<128xf32, #tpu.memory_space<any>>
    %c0_i32_163 = arith.constant 0 : i32
    %366 = tpu.memref_slice %arg3[%c40_i32_160, %c0_i32_163] : memref<64x128xf32, #tpu.memory_space<vmem>> -> memref<1x128xf32, #tpu.memory_space<vmem>>
    %367 = tpu.memref_squeeze %366 : memref<1x128xf32, #tpu.memory_space<vmem>> -> memref<128xf32, #tpu.memory_space<vmem>>
    %368 = tpu.memref_slice %arg4[%c40_i32_161] : memref<64x!tpu.dma_semaphore, #tpu.memory_space<semaphore_mem>> -> memref<1x!tpu.dma_semaphore, #tpu.memory_space<semaphore_mem>>
    %369 = tpu.memref_squeeze %368 : memref<1x!tpu.dma_semaphore, #tpu.memory_space<semaphore_mem>> -> memref<!tpu.dma_semaphore, #tpu.memory_space<semaphore_mem>>
    tpu.enqueue_dma source(%365 : memref<128xf32, #tpu.memory_space<any>>) target(%367 : memref<128xf32, #tpu.memory_space<vmem>>) target_semaphore(%369 : memref<!tpu.dma_semaphore, #tpu.memory_space<semaphore_mem>>)
    %c41_i32 = arith.constant 41 : i32
    %370 = arith.addi %0, %c41_i32 : i32
    %371 = arith.index_cast %370 : i32 to index
    %372 = memref.load %arg1[%371] : memref<64xi32, #tpu.memory_space<smem>>
    %c41_i32_164 = arith.constant 41 : i32
    %c41_i32_165 = arith.constant 41 : i32
    %c0_i32_166 = arith.constant 0 : i32
    %373 = tpu.memref_slice %arg2[%372, %c0_i32_166] : memref<50x128xf32, #tpu.memory_space<any>> -> memref<1x128xf32, #tpu.memory_space<any>>
    %374 = tpu.memref_squeeze %373 : memref<1x128xf32, #tpu.memory_space<any>> -> memref<128xf32, #tpu.memory_space<any>>
    %c0_i32_167 = arith.constant 0 : i32
    %375 = tpu.memref_slice %arg3[%c41_i32_164, %c0_i32_167] : memref<64x128xf32, #tpu.memory_space<vmem>> -> memref<1x128xf32, #tpu.memory_space<vmem>>
    %376 = tpu.memref_squeeze %375 : memref<1x128xf32, #tpu.memory_space<vmem>> -> memref<128xf32, #tpu.memory_space<vmem>>
    %377 = tpu.memref_slice %arg4[%c41_i32_165] : memref<64x!tpu.dma_semaphore, #tpu.memory_space<semaphore_mem>> -> memref<1x!tpu.dma_semaphore, #tpu.memory_space<semaphore_mem>>
    %378 = tpu.memref_squeeze %377 : memref<1x!tpu.dma_semaphore, #tpu.memory_space<semaphore_mem>> -> memref<!tpu.dma_semaphore, #tpu.memory_space<semaphore_mem>>
    tpu.enqueue_dma source(%374 : memref<128xf32, #tpu.memory_space<any>>) target(%376 : memref<128xf32, #tpu.memory_space<vmem>>) target_semaphore(%378 : memref<!tpu.dma_semaphore, #tpu.memory_space<semaphore_mem>>)
    %c42_i32 = arith.constant 42 : i32
    %379 = arith.addi %0, %c42_i32 : i32
    %380 = arith.index_cast %379 : i32 to index
    %381 = memref.load %arg1[%380] : memref<64xi32, #tpu.memory_space<smem>>
    %c42_i32_168 = arith.constant 42 : i32
    %c42_i32_169 = arith.constant 42 : i32
    %c0_i32_170 = arith.constant 0 : i32
    %382 = tpu.memref_slice %arg2[%381, %c0_i32_170] : memref<50x128xf32, #tpu.memory_space<any>> -> memref<1x128xf32, #tpu.memory_space<any>>
    %383 = tpu.memref_squeeze %382 : memref<1x128xf32, #tpu.memory_space<any>> -> memref<128xf32, #tpu.memory_space<any>>
    %c0_i32_171 = arith.constant 0 : i32
    %384 = tpu.memref_slice %arg3[%c42_i32_168, %c0_i32_171] : memref<64x128xf32, #tpu.memory_space<vmem>> -> memref<1x128xf32, #tpu.memory_space<vmem>>
    %385 = tpu.memref_squeeze %384 : memref<1x128xf32, #tpu.memory_space<vmem>> -> memref<128xf32, #tpu.memory_space<vmem>>
    %386 = tpu.memref_slice %arg4[%c42_i32_169] : memref<64x!tpu.dma_semaphore, #tpu.memory_space<semaphore_mem>> -> memref<1x!tpu.dma_semaphore, #tpu.memory_space<semaphore_mem>>
    %387 = tpu.memref_squeeze %386 : memref<1x!tpu.dma_semaphore, #tpu.memory_space<semaphore_mem>> -> memref<!tpu.dma_semaphore, #tpu.memory_space<semaphore_mem>>
    tpu.enqueue_dma source(%383 : memref<128xf32, #tpu.memory_space<any>>) target(%385 : memref<128xf32, #tpu.memory_space<vmem>>) target_semaphore(%387 : memref<!tpu.dma_semaphore, #tpu.memory_space<semaphore_mem>>)
    %c43_i32 = arith.constant 43 : i32
    %388 = arith.addi %0, %c43_i32 : i32
    %389 = arith.index_cast %388 : i32 to index
    %390 = memref.load %arg1[%389] : memref<64xi32, #tpu.memory_space<smem>>
    %c43_i32_172 = arith.constant 43 : i32
    %c43_i32_173 = arith.constant 43 : i32
    %c0_i32_174 = arith.constant 0 : i32
    %391 = tpu.memref_slice %arg2[%390, %c0_i32_174] : memref<50x128xf32, #tpu.memory_space<any>> -> memref<1x128xf32, #tpu.memory_space<any>>
    %392 = tpu.memref_squeeze %391 : memref<1x128xf32, #tpu.memory_space<any>> -> memref<128xf32, #tpu.memory_space<any>>
    %c0_i32_175 = arith.constant 0 : i32
    %393 = tpu.memref_slice %arg3[%c43_i32_172, %c0_i32_175] : memref<64x128xf32, #tpu.memory_space<vmem>> -> memref<1x128xf32, #tpu.memory_space<vmem>>
    %394 = tpu.memref_squeeze %393 : memref<1x128xf32, #tpu.memory_space<vmem>> -> memref<128xf32, #tpu.memory_space<vmem>>
    %395 = tpu.memref_slice %arg4[%c43_i32_173] : memref<64x!tpu.dma_semaphore, #tpu.memory_space<semaphore_mem>> -> memref<1x!tpu.dma_semaphore, #tpu.memory_space<semaphore_mem>>
    %396 = tpu.memref_squeeze %395 : memref<1x!tpu.dma_semaphore, #tpu.memory_space<semaphore_mem>> -> memref<!tpu.dma_semaphore, #tpu.memory_space<semaphore_mem>>
    tpu.enqueue_dma source(%392 : memref<128xf32, #tpu.memory_space<any>>) target(%394 : memref<128xf32, #tpu.memory_space<vmem>>) target_semaphore(%396 : memref<!tpu.dma_semaphore, #tpu.memory_space<semaphore_mem>>)
    %c44_i32 = arith.constant 44 : i32
    %397 = arith.addi %0, %c44_i32 : i32
    %398 = arith.index_cast %397 : i32 to index
    %399 = memref.load %arg1[%398] : memref<64xi32, #tpu.memory_space<smem>>
    %c44_i32_176 = arith.constant 44 : i32
    %c44_i32_177 = arith.constant 44 : i32
    %c0_i32_178 = arith.constant 0 : i32
    %400 = tpu.memref_slice %arg2[%399, %c0_i32_178] : memref<50x128xf32, #tpu.memory_space<any>> -> memref<1x128xf32, #tpu.memory_space<any>>
    %401 = tpu.memref_squeeze %400 : memref<1x128xf32, #tpu.memory_space<any>> -> memref<128xf32, #tpu.memory_space<any>>
    %c0_i32_179 = arith.constant 0 : i32
    %402 = tpu.memref_slice %arg3[%c44_i32_176, %c0_i32_179] : memref<64x128xf32, #tpu.memory_space<vmem>> -> memref<1x128xf32, #tpu.memory_space<vmem>>
    %403 = tpu.memref_squeeze %402 : memref<1x128xf32, #tpu.memory_space<vmem>> -> memref<128xf32, #tpu.memory_space<vmem>>
    %404 = tpu.memref_slice %arg4[%c44_i32_177] : memref<64x!tpu.dma_semaphore, #tpu.memory_space<semaphore_mem>> -> memref<1x!tpu.dma_semaphore, #tpu.memory_space<semaphore_mem>>
    %405 = tpu.memref_squeeze %404 : memref<1x!tpu.dma_semaphore, #tpu.memory_space<semaphore_mem>> -> memref<!tpu.dma_semaphore, #tpu.memory_space<semaphore_mem>>
    tpu.enqueue_dma source(%401 : memref<128xf32, #tpu.memory_space<any>>) target(%403 : memref<128xf32, #tpu.memory_space<vmem>>) target_semaphore(%405 : memref<!tpu.dma_semaphore, #tpu.memory_space<semaphore_mem>>)
    %c45_i32 = arith.constant 45 : i32
    %406 = arith.addi %0, %c45_i32 : i32
    %407 = arith.index_cast %406 : i32 to index
    %408 = memref.load %arg1[%407] : memref<64xi32, #tpu.memory_space<smem>>
    %c45_i32_180 = arith.constant 45 : i32
    %c45_i32_181 = arith.constant 45 : i32
    %c0_i32_182 = arith.constant 0 : i32
    %409 = tpu.memref_slice %arg2[%408, %c0_i32_182] : memref<50x128xf32, #tpu.memory_space<any>> -> memref<1x128xf32, #tpu.memory_space<any>>
    %410 = tpu.memref_squeeze %409 : memref<1x128xf32, #tpu.memory_space<any>> -> memref<128xf32, #tpu.memory_space<any>>
    %c0_i32_183 = arith.constant 0 : i32
    %411 = tpu.memref_slice %arg3[%c45_i32_180, %c0_i32_183] : memref<64x128xf32, #tpu.memory_space<vmem>> -> memref<1x128xf32, #tpu.memory_space<vmem>>
    %412 = tpu.memref_squeeze %411 : memref<1x128xf32, #tpu.memory_space<vmem>> -> memref<128xf32, #tpu.memory_space<vmem>>
    %413 = tpu.memref_slice %arg4[%c45_i32_181] : memref<64x!tpu.dma_semaphore, #tpu.memory_space<semaphore_mem>> -> memref<1x!tpu.dma_semaphore, #tpu.memory_space<semaphore_mem>>
    %414 = tpu.memref_squeeze %413 : memref<1x!tpu.dma_semaphore, #tpu.memory_space<semaphore_mem>> -> memref<!tpu.dma_semaphore, #tpu.memory_space<semaphore_mem>>
    tpu.enqueue_dma source(%410 : memref<128xf32, #tpu.memory_space<any>>) target(%412 : memref<128xf32, #tpu.memory_space<vmem>>) target_semaphore(%414 : memref<!tpu.dma_semaphore, #tpu.memory_space<semaphore_mem>>)
    %c46_i32 = arith.constant 46 : i32
    %415 = arith.addi %0, %c46_i32 : i32
    %416 = arith.index_cast %415 : i32 to index
    %417 = memref.load %arg1[%416] : memref<64xi32, #tpu.memory_space<smem>>
    %c46_i32_184 = arith.constant 46 : i32
    %c46_i32_185 = arith.constant 46 : i32
    %c0_i32_186 = arith.constant 0 : i32
    %418 = tpu.memref_slice %arg2[%417, %c0_i32_186] : memref<50x128xf32, #tpu.memory_space<any>> -> memref<1x128xf32, #tpu.memory_space<any>>
    %419 = tpu.memref_squeeze %418 : memref<1x128xf32, #tpu.memory_space<any>> -> memref<128xf32, #tpu.memory_space<any>>
    %c0_i32_187 = arith.constant 0 : i32
    %420 = tpu.memref_slice %arg3[%c46_i32_184, %c0_i32_187] : memref<64x128xf32, #tpu.memory_space<vmem>> -> memref<1x128xf32, #tpu.memory_space<vmem>>
    %421 = tpu.memref_squeeze %420 : memref<1x128xf32, #tpu.memory_space<vmem>> -> memref<128xf32, #tpu.memory_space<vmem>>
    %422 = tpu.memref_slice %arg4[%c46_i32_185] : memref<64x!tpu.dma_semaphore, #tpu.memory_space<semaphore_mem>> -> memref<1x!tpu.dma_semaphore, #tpu.memory_space<semaphore_mem>>
    %423 = tpu.memref_squeeze %422 : memref<1x!tpu.dma_semaphore, #tpu.memory_space<semaphore_mem>> -> memref<!tpu.dma_semaphore, #tpu.memory_space<semaphore_mem>>
    tpu.enqueue_dma source(%419 : memref<128xf32, #tpu.memory_space<any>>) target(%421 : memref<128xf32, #tpu.memory_space<vmem>>) target_semaphore(%423 : memref<!tpu.dma_semaphore, #tpu.memory_space<semaphore_mem>>)
    %c47_i32 = arith.constant 47 : i32
    %424 = arith.addi %0, %c47_i32 : i32
    %425 = arith.index_cast %424 : i32 to index
    %426 = memref.load %arg1[%425] : memref<64xi32, #tpu.memory_space<smem>>
    %c47_i32_188 = arith.constant 47 : i32
    %c47_i32_189 = arith.constant 47 : i32
    %c0_i32_190 = arith.constant 0 : i32
    %427 = tpu.memref_slice %arg2[%426, %c0_i32_190] : memref<50x128xf32, #tpu.memory_space<any>> -> memref<1x128xf32, #tpu.memory_space<any>>
    %428 = tpu.memref_squeeze %427 : memref<1x128xf32, #tpu.memory_space<any>> -> memref<128xf32, #tpu.memory_space<any>>
    %c0_i32_191 = arith.constant 0 : i32
    %429 = tpu.memref_slice %arg3[%c47_i32_188, %c0_i32_191] : memref<64x128xf32, #tpu.memory_space<vmem>> -> memref<1x128xf32, #tpu.memory_space<vmem>>
    %430 = tpu.memref_squeeze %429 : memref<1x128xf32, #tpu.memory_space<vmem>> -> memref<128xf32, #tpu.memory_space<vmem>>
    %431 = tpu.memref_slice %arg4[%c47_i32_189] : memref<64x!tpu.dma_semaphore, #tpu.memory_space<semaphore_mem>> -> memref<1x!tpu.dma_semaphore, #tpu.memory_space<semaphore_mem>>
    %432 = tpu.memref_squeeze %431 : memref<1x!tpu.dma_semaphore, #tpu.memory_space<semaphore_mem>> -> memref<!tpu.dma_semaphore, #tpu.memory_space<semaphore_mem>>
    tpu.enqueue_dma source(%428 : memref<128xf32, #tpu.memory_space<any>>) target(%430 : memref<128xf32, #tpu.memory_space<vmem>>) target_semaphore(%432 : memref<!tpu.dma_semaphore, #tpu.memory_space<semaphore_mem>>)
    %c48_i32 = arith.constant 48 : i32
    %433 = arith.addi %0, %c48_i32 : i32
    %434 = arith.index_cast %433 : i32 to index
    %435 = memref.load %arg1[%434] : memref<64xi32, #tpu.memory_space<smem>>
    %c48_i32_192 = arith.constant 48 : i32
    %c48_i32_193 = arith.constant 48 : i32
    %c0_i32_194 = arith.constant 0 : i32
    %436 = tpu.memref_slice %arg2[%435, %c0_i32_194] : memref<50x128xf32, #tpu.memory_space<any>> -> memref<1x128xf32, #tpu.memory_space<any>>
    %437 = tpu.memref_squeeze %436 : memref<1x128xf32, #tpu.memory_space<any>> -> memref<128xf32, #tpu.memory_space<any>>
    %c0_i32_195 = arith.constant 0 : i32
    %438 = tpu.memref_slice %arg3[%c48_i32_192, %c0_i32_195] : memref<64x128xf32, #tpu.memory_space<vmem>> -> memref<1x128xf32, #tpu.memory_space<vmem>>
    %439 = tpu.memref_squeeze %438 : memref<1x128xf32, #tpu.memory_space<vmem>> -> memref<128xf32, #tpu.memory_space<vmem>>
    %440 = tpu.memref_slice %arg4[%c48_i32_193] : memref<64x!tpu.dma_semaphore, #tpu.memory_space<semaphore_mem>> -> memref<1x!tpu.dma_semaphore, #tpu.memory_space<semaphore_mem>>
    %441 = tpu.memref_squeeze %440 : memref<1x!tpu.dma_semaphore, #tpu.memory_space<semaphore_mem>> -> memref<!tpu.dma_semaphore, #tpu.memory_space<semaphore_mem>>
    tpu.enqueue_dma source(%437 : memref<128xf32, #tpu.memory_space<any>>) target(%439 : memref<128xf32, #tpu.memory_space<vmem>>) target_semaphore(%441 : memref<!tpu.dma_semaphore, #tpu.memory_space<semaphore_mem>>)
    %c49_i32 = arith.constant 49 : i32
    %442 = arith.addi %0, %c49_i32 : i32
    %443 = arith.index_cast %442 : i32 to index
    %444 = memref.load %arg1[%443] : memref<64xi32, #tpu.memory_space<smem>>
    %c49_i32_196 = arith.constant 49 : i32
    %c49_i32_197 = arith.constant 49 : i32
    %c0_i32_198 = arith.constant 0 : i32
    %445 = tpu.memref_slice %arg2[%444, %c0_i32_198] : memref<50x128xf32, #tpu.memory_space<any>> -> memref<1x128xf32, #tpu.memory_space<any>>
    %446 = tpu.memref_squeeze %445 : memref<1x128xf32, #tpu.memory_space<any>> -> memref<128xf32, #tpu.memory_space<any>>
    %c0_i32_199 = arith.constant 0 : i32
    %447 = tpu.memref_slice %arg3[%c49_i32_196, %c0_i32_199] : memref<64x128xf32, #tpu.memory_space<vmem>> -> memref<1x128xf32, #tpu.memory_space<vmem>>
    %448 = tpu.memref_squeeze %447 : memref<1x128xf32, #tpu.memory_space<vmem>> -> memref<128xf32, #tpu.memory_space<vmem>>
    %449 = tpu.memref_slice %arg4[%c49_i32_197] : memref<64x!tpu.dma_semaphore, #tpu.memory_space<semaphore_mem>> -> memref<1x!tpu.dma_semaphore, #tpu.memory_space<semaphore_mem>>
    %450 = tpu.memref_squeeze %449 : memref<1x!tpu.dma_semaphore, #tpu.memory_space<semaphore_mem>> -> memref<!tpu.dma_semaphore, #tpu.memory_space<semaphore_mem>>
    tpu.enqueue_dma source(%446 : memref<128xf32, #tpu.memory_space<any>>) target(%448 : memref<128xf32, #tpu.memory_space<vmem>>) target_semaphore(%450 : memref<!tpu.dma_semaphore, #tpu.memory_space<semaphore_mem>>)
    %c50_i32 = arith.constant 50 : i32
    %451 = arith.addi %0, %c50_i32 : i32
    %452 = arith.index_cast %451 : i32 to index
    %453 = memref.load %arg1[%452] : memref<64xi32, #tpu.memory_space<smem>>
    %c50_i32_200 = arith.constant 50 : i32
    %c50_i32_201 = arith.constant 50 : i32
    %c0_i32_202 = arith.constant 0 : i32
    %454 = tpu.memref_slice %arg2[%453, %c0_i32_202] : memref<50x128xf32, #tpu.memory_space<any>> -> memref<1x128xf32, #tpu.memory_space<any>>
    %455 = tpu.memref_squeeze %454 : memref<1x128xf32, #tpu.memory_space<any>> -> memref<128xf32, #tpu.memory_space<any>>
    %c0_i32_203 = arith.constant 0 : i32
    %456 = tpu.memref_slice %arg3[%c50_i32_200, %c0_i32_203] : memref<64x128xf32, #tpu.memory_space<vmem>> -> memref<1x128xf32, #tpu.memory_space<vmem>>
    %457 = tpu.memref_squeeze %456 : memref<1x128xf32, #tpu.memory_space<vmem>> -> memref<128xf32, #tpu.memory_space<vmem>>
    %458 = tpu.memref_slice %arg4[%c50_i32_201] : memref<64x!tpu.dma_semaphore, #tpu.memory_space<semaphore_mem>> -> memref<1x!tpu.dma_semaphore, #tpu.memory_space<semaphore_mem>>
    %459 = tpu.memref_squeeze %458 : memref<1x!tpu.dma_semaphore, #tpu.memory_space<semaphore_mem>> -> memref<!tpu.dma_semaphore, #tpu.memory_space<semaphore_mem>>
    tpu.enqueue_dma source(%455 : memref<128xf32, #tpu.memory_space<any>>) target(%457 : memref<128xf32, #tpu.memory_space<vmem>>) target_semaphore(%459 : memref<!tpu.dma_semaphore, #tpu.memory_space<semaphore_mem>>)
    %c51_i32 = arith.constant 51 : i32
    %460 = arith.addi %0, %c51_i32 : i32
    %461 = arith.index_cast %460 : i32 to index
    %462 = memref.load %arg1[%461] : memref<64xi32, #tpu.memory_space<smem>>
    %c51_i32_204 = arith.constant 51 : i32
    %c51_i32_205 = arith.constant 51 : i32
    %c0_i32_206 = arith.constant 0 : i32
    %463 = tpu.memref_slice %arg2[%462, %c0_i32_206] : memref<50x128xf32, #tpu.memory_space<any>> -> memref<1x128xf32, #tpu.memory_space<any>>
    %464 = tpu.memref_squeeze %463 : memref<1x128xf32, #tpu.memory_space<any>> -> memref<128xf32, #tpu.memory_space<any>>
    %c0_i32_207 = arith.constant 0 : i32
    %465 = tpu.memref_slice %arg3[%c51_i32_204, %c0_i32_207] : memref<64x128xf32, #tpu.memory_space<vmem>> -> memref<1x128xf32, #tpu.memory_space<vmem>>
    %466 = tpu.memref_squeeze %465 : memref<1x128xf32, #tpu.memory_space<vmem>> -> memref<128xf32, #tpu.memory_space<vmem>>
    %467 = tpu.memref_slice %arg4[%c51_i32_205] : memref<64x!tpu.dma_semaphore, #tpu.memory_space<semaphore_mem>> -> memref<1x!tpu.dma_semaphore, #tpu.memory_space<semaphore_mem>>
    %468 = tpu.memref_squeeze %467 : memref<1x!tpu.dma_semaphore, #tpu.memory_space<semaphore_mem>> -> memref<!tpu.dma_semaphore, #tpu.memory_space<semaphore_mem>>
    tpu.enqueue_dma source(%464 : memref<128xf32, #tpu.memory_space<any>>) target(%466 : memref<128xf32, #tpu.memory_space<vmem>>) target_semaphore(%468 : memref<!tpu.dma_semaphore, #tpu.memory_space<semaphore_mem>>)
    %c52_i32 = arith.constant 52 : i32
    %469 = arith.addi %0, %c52_i32 : i32
    %470 = arith.index_cast %469 : i32 to index
    %471 = memref.load %arg1[%470] : memref<64xi32, #tpu.memory_space<smem>>
    %c52_i32_208 = arith.constant 52 : i32
    %c52_i32_209 = arith.constant 52 : i32
    %c0_i32_210 = arith.constant 0 : i32
    %472 = tpu.memref_slice %arg2[%471, %c0_i32_210] : memref<50x128xf32, #tpu.memory_space<any>> -> memref<1x128xf32, #tpu.memory_space<any>>
    %473 = tpu.memref_squeeze %472 : memref<1x128xf32, #tpu.memory_space<any>> -> memref<128xf32, #tpu.memory_space<any>>
    %c0_i32_211 = arith.constant 0 : i32
    %474 = tpu.memref_slice %arg3[%c52_i32_208, %c0_i32_211] : memref<64x128xf32, #tpu.memory_space<vmem>> -> memref<1x128xf32, #tpu.memory_space<vmem>>
    %475 = tpu.memref_squeeze %474 : memref<1x128xf32, #tpu.memory_space<vmem>> -> memref<128xf32, #tpu.memory_space<vmem>>
    %476 = tpu.memref_slice %arg4[%c52_i32_209] : memref<64x!tpu.dma_semaphore, #tpu.memory_space<semaphore_mem>> -> memref<1x!tpu.dma_semaphore, #tpu.memory_space<semaphore_mem>>
    %477 = tpu.memref_squeeze %476 : memref<1x!tpu.dma_semaphore, #tpu.memory_space<semaphore_mem>> -> memref<!tpu.dma_semaphore, #tpu.memory_space<semaphore_mem>>
    tpu.enqueue_dma source(%473 : memref<128xf32, #tpu.memory_space<any>>) target(%475 : memref<128xf32, #tpu.memory_space<vmem>>) target_semaphore(%477 : memref<!tpu.dma_semaphore, #tpu.memory_space<semaphore_mem>>)
    %c53_i32 = arith.constant 53 : i32
    %478 = arith.addi %0, %c53_i32 : i32
    %479 = arith.index_cast %478 : i32 to index
    %480 = memref.load %arg1[%479] : memref<64xi32, #tpu.memory_space<smem>>
    %c53_i32_212 = arith.constant 53 : i32
    %c53_i32_213 = arith.constant 53 : i32
    %c0_i32_214 = arith.constant 0 : i32
    %481 = tpu.memref_slice %arg2[%480, %c0_i32_214] : memref<50x128xf32, #tpu.memory_space<any>> -> memref<1x128xf32, #tpu.memory_space<any>>
    %482 = tpu.memref_squeeze %481 : memref<1x128xf32, #tpu.memory_space<any>> -> memref<128xf32, #tpu.memory_space<any>>
    %c0_i32_215 = arith.constant 0 : i32
    %483 = tpu.memref_slice %arg3[%c53_i32_212, %c0_i32_215] : memref<64x128xf32, #tpu.memory_space<vmem>> -> memref<1x128xf32, #tpu.memory_space<vmem>>
    %484 = tpu.memref_squeeze %483 : memref<1x128xf32, #tpu.memory_space<vmem>> -> memref<128xf32, #tpu.memory_space<vmem>>
    %485 = tpu.memref_slice %arg4[%c53_i32_213] : memref<64x!tpu.dma_semaphore, #tpu.memory_space<semaphore_mem>> -> memref<1x!tpu.dma_semaphore, #tpu.memory_space<semaphore_mem>>
    %486 = tpu.memref_squeeze %485 : memref<1x!tpu.dma_semaphore, #tpu.memory_space<semaphore_mem>> -> memref<!tpu.dma_semaphore, #tpu.memory_space<semaphore_mem>>
    tpu.enqueue_dma source(%482 : memref<128xf32, #tpu.memory_space<any>>) target(%484 : memref<128xf32, #tpu.memory_space<vmem>>) target_semaphore(%486 : memref<!tpu.dma_semaphore, #tpu.memory_space<semaphore_mem>>)
    %c54_i32 = arith.constant 54 : i32
    %487 = arith.addi %0, %c54_i32 : i32
    %488 = arith.index_cast %487 : i32 to index
    %489 = memref.load %arg1[%488] : memref<64xi32, #tpu.memory_space<smem>>
    %c54_i32_216 = arith.constant 54 : i32
    %c54_i32_217 = arith.constant 54 : i32
    %c0_i32_218 = arith.constant 0 : i32
    %490 = tpu.memref_slice %arg2[%489, %c0_i32_218] : memref<50x128xf32, #tpu.memory_space<any>> -> memref<1x128xf32, #tpu.memory_space<any>>
    %491 = tpu.memref_squeeze %490 : memref<1x128xf32, #tpu.memory_space<any>> -> memref<128xf32, #tpu.memory_space<any>>
    %c0_i32_219 = arith.constant 0 : i32
    %492 = tpu.memref_slice %arg3[%c54_i32_216, %c0_i32_219] : memref<64x128xf32, #tpu.memory_space<vmem>> -> memref<1x128xf32, #tpu.memory_space<vmem>>
    %493 = tpu.memref_squeeze %492 : memref<1x128xf32, #tpu.memory_space<vmem>> -> memref<128xf32, #tpu.memory_space<vmem>>
    %494 = tpu.memref_slice %arg4[%c54_i32_217] : memref<64x!tpu.dma_semaphore, #tpu.memory_space<semaphore_mem>> -> memref<1x!tpu.dma_semaphore, #tpu.memory_space<semaphore_mem>>
    %495 = tpu.memref_squeeze %494 : memref<1x!tpu.dma_semaphore, #tpu.memory_space<semaphore_mem>> -> memref<!tpu.dma_semaphore, #tpu.memory_space<semaphore_mem>>
    tpu.enqueue_dma source(%491 : memref<128xf32, #tpu.memory_space<any>>) target(%493 : memref<128xf32, #tpu.memory_space<vmem>>) target_semaphore(%495 : memref<!tpu.dma_semaphore, #tpu.memory_space<semaphore_mem>>)
    %c55_i32 = arith.constant 55 : i32
    %496 = arith.addi %0, %c55_i32 : i32
    %497 = arith.index_cast %496 : i32 to index
    %498 = memref.load %arg1[%497] : memref<64xi32, #tpu.memory_space<smem>>
    %c55_i32_220 = arith.constant 55 : i32
    %c55_i32_221 = arith.constant 55 : i32
    %c0_i32_222 = arith.constant 0 : i32
    %499 = tpu.memref_slice %arg2[%498, %c0_i32_222] : memref<50x128xf32, #tpu.memory_space<any>> -> memref<1x128xf32, #tpu.memory_space<any>>
    %500 = tpu.memref_squeeze %499 : memref<1x128xf32, #tpu.memory_space<any>> -> memref<128xf32, #tpu.memory_space<any>>
    %c0_i32_223 = arith.constant 0 : i32
    %501 = tpu.memref_slice %arg3[%c55_i32_220, %c0_i32_223] : memref<64x128xf32, #tpu.memory_space<vmem>> -> memref<1x128xf32, #tpu.memory_space<vmem>>
    %502 = tpu.memref_squeeze %501 : memref<1x128xf32, #tpu.memory_space<vmem>> -> memref<128xf32, #tpu.memory_space<vmem>>
    %503 = tpu.memref_slice %arg4[%c55_i32_221] : memref<64x!tpu.dma_semaphore, #tpu.memory_space<semaphore_mem>> -> memref<1x!tpu.dma_semaphore, #tpu.memory_space<semaphore_mem>>
    %504 = tpu.memref_squeeze %503 : memref<1x!tpu.dma_semaphore, #tpu.memory_space<semaphore_mem>> -> memref<!tpu.dma_semaphore, #tpu.memory_space<semaphore_mem>>
    tpu.enqueue_dma source(%500 : memref<128xf32, #tpu.memory_space<any>>) target(%502 : memref<128xf32, #tpu.memory_space<vmem>>) target_semaphore(%504 : memref<!tpu.dma_semaphore, #tpu.memory_space<semaphore_mem>>)
    %c56_i32 = arith.constant 56 : i32
    %505 = arith.addi %0, %c56_i32 : i32
    %506 = arith.index_cast %505 : i32 to index
    %507 = memref.load %arg1[%506] : memref<64xi32, #tpu.memory_space<smem>>
    %c56_i32_224 = arith.constant 56 : i32
    %c56_i32_225 = arith.constant 56 : i32
    %c0_i32_226 = arith.constant 0 : i32
    %508 = tpu.memref_slice %arg2[%507, %c0_i32_226] : memref<50x128xf32, #tpu.memory_space<any>> -> memref<1x128xf32, #tpu.memory_space<any>>
    %509 = tpu.memref_squeeze %508 : memref<1x128xf32, #tpu.memory_space<any>> -> memref<128xf32, #tpu.memory_space<any>>
    %c0_i32_227 = arith.constant 0 : i32
    %510 = tpu.memref_slice %arg3[%c56_i32_224, %c0_i32_227] : memref<64x128xf32, #tpu.memory_space<vmem>> -> memref<1x128xf32, #tpu.memory_space<vmem>>
    %511 = tpu.memref_squeeze %510 : memref<1x128xf32, #tpu.memory_space<vmem>> -> memref<128xf32, #tpu.memory_space<vmem>>
    %512 = tpu.memref_slice %arg4[%c56_i32_225] : memref<64x!tpu.dma_semaphore, #tpu.memory_space<semaphore_mem>> -> memref<1x!tpu.dma_semaphore, #tpu.memory_space<semaphore_mem>>
    %513 = tpu.memref_squeeze %512 : memref<1x!tpu.dma_semaphore, #tpu.memory_space<semaphore_mem>> -> memref<!tpu.dma_semaphore, #tpu.memory_space<semaphore_mem>>
    tpu.enqueue_dma source(%509 : memref<128xf32, #tpu.memory_space<any>>) target(%511 : memref<128xf32, #tpu.memory_space<vmem>>) target_semaphore(%513 : memref<!tpu.dma_semaphore, #tpu.memory_space<semaphore_mem>>)
    %c57_i32 = arith.constant 57 : i32
    %514 = arith.addi %0, %c57_i32 : i32
    %515 = arith.index_cast %514 : i32 to index
    %516 = memref.load %arg1[%515] : memref<64xi32, #tpu.memory_space<smem>>
    %c57_i32_228 = arith.constant 57 : i32
    %c57_i32_229 = arith.constant 57 : i32
    %c0_i32_230 = arith.constant 0 : i32
    %517 = tpu.memref_slice %arg2[%516, %c0_i32_230] : memref<50x128xf32, #tpu.memory_space<any>> -> memref<1x128xf32, #tpu.memory_space<any>>
    %518 = tpu.memref_squeeze %517 : memref<1x128xf32, #tpu.memory_space<any>> -> memref<128xf32, #tpu.memory_space<any>>
    %c0_i32_231 = arith.constant 0 : i32
    %519 = tpu.memref_slice %arg3[%c57_i32_228, %c0_i32_231] : memref<64x128xf32, #tpu.memory_space<vmem>> -> memref<1x128xf32, #tpu.memory_space<vmem>>
    %520 = tpu.memref_squeeze %519 : memref<1x128xf32, #tpu.memory_space<vmem>> -> memref<128xf32, #tpu.memory_space<vmem>>
    %521 = tpu.memref_slice %arg4[%c57_i32_229] : memref<64x!tpu.dma_semaphore, #tpu.memory_space<semaphore_mem>> -> memref<1x!tpu.dma_semaphore, #tpu.memory_space<semaphore_mem>>
    %522 = tpu.memref_squeeze %521 : memref<1x!tpu.dma_semaphore, #tpu.memory_space<semaphore_mem>> -> memref<!tpu.dma_semaphore, #tpu.memory_space<semaphore_mem>>
    tpu.enqueue_dma source(%518 : memref<128xf32, #tpu.memory_space<any>>) target(%520 : memref<128xf32, #tpu.memory_space<vmem>>) target_semaphore(%522 : memref<!tpu.dma_semaphore, #tpu.memory_space<semaphore_mem>>)
    %c58_i32 = arith.constant 58 : i32
    %523 = arith.addi %0, %c58_i32 : i32
    %524 = arith.index_cast %523 : i32 to index
    %525 = memref.load %arg1[%524] : memref<64xi32, #tpu.memory_space<smem>>
    %c58_i32_232 = arith.constant 58 : i32
    %c58_i32_233 = arith.constant 58 : i32
    %c0_i32_234 = arith.constant 0 : i32
    %526 = tpu.memref_slice %arg2[%525, %c0_i32_234] : memref<50x128xf32, #tpu.memory_space<any>> -> memref<1x128xf32, #tpu.memory_space<any>>
    %527 = tpu.memref_squeeze %526 : memref<1x128xf32, #tpu.memory_space<any>> -> memref<128xf32, #tpu.memory_space<any>>
    %c0_i32_235 = arith.constant 0 : i32
    %528 = tpu.memref_slice %arg3[%c58_i32_232, %c0_i32_235] : memref<64x128xf32, #tpu.memory_space<vmem>> -> memref<1x128xf32, #tpu.memory_space<vmem>>
    %529 = tpu.memref_squeeze %528 : memref<1x128xf32, #tpu.memory_space<vmem>> -> memref<128xf32, #tpu.memory_space<vmem>>
    %530 = tpu.memref_slice %arg4[%c58_i32_233] : memref<64x!tpu.dma_semaphore, #tpu.memory_space<semaphore_mem>> -> memref<1x!tpu.dma_semaphore, #tpu.memory_space<semaphore_mem>>
    %531 = tpu.memref_squeeze %530 : memref<1x!tpu.dma_semaphore, #tpu.memory_space<semaphore_mem>> -> memref<!tpu.dma_semaphore, #tpu.memory_space<semaphore_mem>>
    tpu.enqueue_dma source(%527 : memref<128xf32, #tpu.memory_space<any>>) target(%529 : memref<128xf32, #tpu.memory_space<vmem>>) target_semaphore(%531 : memref<!tpu.dma_semaphore, #tpu.memory_space<semaphore_mem>>)
    %c59_i32 = arith.constant 59 : i32
    %532 = arith.addi %0, %c59_i32 : i32
    %533 = arith.index_cast %532 : i32 to index
    %534 = memref.load %arg1[%533] : memref<64xi32, #tpu.memory_space<smem>>
    %c59_i32_236 = arith.constant 59 : i32
    %c59_i32_237 = arith.constant 59 : i32
    %c0_i32_238 = arith.constant 0 : i32
    %535 = tpu.memref_slice %arg2[%534, %c0_i32_238] : memref<50x128xf32, #tpu.memory_space<any>> -> memref<1x128xf32, #tpu.memory_space<any>>
    %536 = tpu.memref_squeeze %535 : memref<1x128xf32, #tpu.memory_space<any>> -> memref<128xf32, #tpu.memory_space<any>>
    %c0_i32_239 = arith.constant 0 : i32
    %537 = tpu.memref_slice %arg3[%c59_i32_236, %c0_i32_239] : memref<64x128xf32, #tpu.memory_space<vmem>> -> memref<1x128xf32, #tpu.memory_space<vmem>>
    %538 = tpu.memref_squeeze %537 : memref<1x128xf32, #tpu.memory_space<vmem>> -> memref<128xf32, #tpu.memory_space<vmem>>
    %539 = tpu.memref_slice %arg4[%c59_i32_237] : memref<64x!tpu.dma_semaphore, #tpu.memory_space<semaphore_mem>> -> memref<1x!tpu.dma_semaphore, #tpu.memory_space<semaphore_mem>>
    %540 = tpu.memref_squeeze %539 : memref<1x!tpu.dma_semaphore, #tpu.memory_space<semaphore_mem>> -> memref<!tpu.dma_semaphore, #tpu.memory_space<semaphore_mem>>
    tpu.enqueue_dma source(%536 : memref<128xf32, #tpu.memory_space<any>>) target(%538 : memref<128xf32, #tpu.memory_space<vmem>>) target_semaphore(%540 : memref<!tpu.dma_semaphore, #tpu.memory_space<semaphore_mem>>)
    %c60_i32 = arith.constant 60 : i32
    %541 = arith.addi %0, %c60_i32 : i32
    %542 = arith.index_cast %541 : i32 to index
    %543 = memref.load %arg1[%542] : memref<64xi32, #tpu.memory_space<smem>>
    %c60_i32_240 = arith.constant 60 : i32
    %c60_i32_241 = arith.constant 60 : i32
    %c0_i32_242 = arith.constant 0 : i32
    %544 = tpu.memref_slice %arg2[%543, %c0_i32_242] : memref<50x128xf32, #tpu.memory_space<any>> -> memref<1x128xf32, #tpu.memory_space<any>>
    %545 = tpu.memref_squeeze %544 : memref<1x128xf32, #tpu.memory_space<any>> -> memref<128xf32, #tpu.memory_space<any>>
    %c0_i32_243 = arith.constant 0 : i32
    %546 = tpu.memref_slice %arg3[%c60_i32_240, %c0_i32_243] : memref<64x128xf32, #tpu.memory_space<vmem>> -> memref<1x128xf32, #tpu.memory_space<vmem>>
    %547 = tpu.memref_squeeze %546 : memref<1x128xf32, #tpu.memory_space<vmem>> -> memref<128xf32, #tpu.memory_space<vmem>>
    %548 = tpu.memref_slice %arg4[%c60_i32_241] : memref<64x!tpu.dma_semaphore, #tpu.memory_space<semaphore_mem>> -> memref<1x!tpu.dma_semaphore, #tpu.memory_space<semaphore_mem>>
    %549 = tpu.memref_squeeze %548 : memref<1x!tpu.dma_semaphore, #tpu.memory_space<semaphore_mem>> -> memref<!tpu.dma_semaphore, #tpu.memory_space<semaphore_mem>>
    tpu.enqueue_dma source(%545 : memref<128xf32, #tpu.memory_space<any>>) target(%547 : memref<128xf32, #tpu.memory_space<vmem>>) target_semaphore(%549 : memref<!tpu.dma_semaphore, #tpu.memory_space<semaphore_mem>>)
    %c61_i32 = arith.constant 61 : i32
    %550 = arith.addi %0, %c61_i32 : i32
    %551 = arith.index_cast %550 : i32 to index
    %552 = memref.load %arg1[%551] : memref<64xi32, #tpu.memory_space<smem>>
    %c61_i32_244 = arith.constant 61 : i32
    %c61_i32_245 = arith.constant 61 : i32
    %c0_i32_246 = arith.constant 0 : i32
    %553 = tpu.memref_slice %arg2[%552, %c0_i32_246] : memref<50x128xf32, #tpu.memory_space<any>> -> memref<1x128xf32, #tpu.memory_space<any>>
    %554 = tpu.memref_squeeze %553 : memref<1x128xf32, #tpu.memory_space<any>> -> memref<128xf32, #tpu.memory_space<any>>
    %c0_i32_247 = arith.constant 0 : i32
    %555 = tpu.memref_slice %arg3[%c61_i32_244, %c0_i32_247] : memref<64x128xf32, #tpu.memory_space<vmem>> -> memref<1x128xf32, #tpu.memory_space<vmem>>
    %556 = tpu.memref_squeeze %555 : memref<1x128xf32, #tpu.memory_space<vmem>> -> memref<128xf32, #tpu.memory_space<vmem>>
    %557 = tpu.memref_slice %arg4[%c61_i32_245] : memref<64x!tpu.dma_semaphore, #tpu.memory_space<semaphore_mem>> -> memref<1x!tpu.dma_semaphore, #tpu.memory_space<semaphore_mem>>
    %558 = tpu.memref_squeeze %557 : memref<1x!tpu.dma_semaphore, #tpu.memory_space<semaphore_mem>> -> memref<!tpu.dma_semaphore, #tpu.memory_space<semaphore_mem>>
    tpu.enqueue_dma source(%554 : memref<128xf32, #tpu.memory_space<any>>) target(%556 : memref<128xf32, #tpu.memory_space<vmem>>) target_semaphore(%558 : memref<!tpu.dma_semaphore, #tpu.memory_space<semaphore_mem>>)
    %c62_i32 = arith.constant 62 : i32
    %559 = arith.addi %0, %c62_i32 : i32
    %560 = arith.index_cast %559 : i32 to index
    %561 = memref.load %arg1[%560] : memref<64xi32, #tpu.memory_space<smem>>
    %c62_i32_248 = arith.constant 62 : i32
    %c62_i32_249 = arith.constant 62 : i32
    %c0_i32_250 = arith.constant 0 : i32
    %562 = tpu.memref_slice %arg2[%561, %c0_i32_250] : memref<50x128xf32, #tpu.memory_space<any>> -> memref<1x128xf32, #tpu.memory_space<any>>
    %563 = tpu.memref_squeeze %562 : memref<1x128xf32, #tpu.memory_space<any>> -> memref<128xf32, #tpu.memory_space<any>>
    %c0_i32_251 = arith.constant 0 : i32
    %564 = tpu.memref_slice %arg3[%c62_i32_248, %c0_i32_251] : memref<64x128xf32, #tpu.memory_space<vmem>> -> memref<1x128xf32, #tpu.memory_space<vmem>>
    %565 = tpu.memref_squeeze %564 : memref<1x128xf32, #tpu.memory_space<vmem>> -> memref<128xf32, #tpu.memory_space<vmem>>
    %566 = tpu.memref_slice %arg4[%c62_i32_249] : memref<64x!tpu.dma_semaphore, #tpu.memory_space<semaphore_mem>> -> memref<1x!tpu.dma_semaphore, #tpu.memory_space<semaphore_mem>>
    %567 = tpu.memref_squeeze %566 : memref<1x!tpu.dma_semaphore, #tpu.memory_space<semaphore_mem>> -> memref<!tpu.dma_semaphore, #tpu.memory_space<semaphore_mem>>
    tpu.enqueue_dma source(%563 : memref<128xf32, #tpu.memory_space<any>>) target(%565 : memref<128xf32, #tpu.memory_space<vmem>>) target_semaphore(%567 : memref<!tpu.dma_semaphore, #tpu.memory_space<semaphore_mem>>)
    %c63_i32 = arith.constant 63 : i32
    %568 = arith.addi %0, %c63_i32 : i32
    %569 = arith.index_cast %568 : i32 to index
    %570 = memref.load %arg1[%569] : memref<64xi32, #tpu.memory_space<smem>>
    %c63_i32_252 = arith.constant 63 : i32
    %c63_i32_253 = arith.constant 63 : i32
    %c0_i32_254 = arith.constant 0 : i32
    %571 = tpu.memref_slice %arg2[%570, %c0_i32_254] : memref<50x128xf32, #tpu.memory_space<any>> -> memref<1x128xf32, #tpu.memory_space<any>>
    %572 = tpu.memref_squeeze %571 : memref<1x128xf32, #tpu.memory_space<any>> -> memref<128xf32, #tpu.memory_space<any>>
    %c0_i32_255 = arith.constant 0 : i32
    %573 = tpu.memref_slice %arg3[%c63_i32_252, %c0_i32_255] : memref<64x128xf32, #tpu.memory_space<vmem>> -> memref<1x128xf32, #tpu.memory_space<vmem>>
    %574 = tpu.memref_squeeze %573 : memref<1x128xf32, #tpu.memory_space<vmem>> -> memref<128xf32, #tpu.memory_space<vmem>>
    %575 = tpu.memref_slice %arg4[%c63_i32_253] : memref<64x!tpu.dma_semaphore, #tpu.memory_space<semaphore_mem>> -> memref<1x!tpu.dma_semaphore, #tpu.memory_space<semaphore_mem>>
    %576 = tpu.memref_squeeze %575 : memref<1x!tpu.dma_semaphore, #tpu.memory_space<semaphore_mem>> -> memref<!tpu.dma_semaphore, #tpu.memory_space<semaphore_mem>>
    tpu.enqueue_dma source(%572 : memref<128xf32, #tpu.memory_space<any>>) target(%574 : memref<128xf32, #tpu.memory_space<vmem>>) target_semaphore(%576 : memref<!tpu.dma_semaphore, #tpu.memory_space<semaphore_mem>>)
    %c0_i32_256 = arith.constant 0 : i32
    %577 = arith.addi %0, %c0_i32_256 : i32
    %578 = arith.index_cast %577 : i32 to index
    %579 = memref.load %arg1[%578] : memref<64xi32, #tpu.memory_space<smem>>
    %c0_i32_257 = arith.constant 0 : i32
    %c0_i32_258 = arith.constant 0 : i32
    %c0_i32_259 = arith.constant 0 : i32
    %580 = tpu.memref_slice %arg2[%579, %c0_i32_259] : memref<50x128xf32, #tpu.memory_space<any>> -> memref<1x128xf32, #tpu.memory_space<any>>
    %581 = tpu.memref_squeeze %580 : memref<1x128xf32, #tpu.memory_space<any>> -> memref<128xf32, #tpu.memory_space<any>>
    %c0_i32_260 = arith.constant 0 : i32
    %582 = tpu.memref_slice %arg3[%c0_i32_257, %c0_i32_260] : memref<64x128xf32, #tpu.memory_space<vmem>> -> memref<1x128xf32, #tpu.memory_space<vmem>>
    %583 = tpu.memref_squeeze %582 : memref<1x128xf32, #tpu.memory_space<vmem>> -> memref<128xf32, #tpu.memory_space<vmem>>
    %584 = tpu.memref_slice %arg4[%c0_i32_258] : memref<64x!tpu.dma_semaphore, #tpu.memory_space<semaphore_mem>> -> memref<1x!tpu.dma_semaphore, #tpu.memory_space<semaphore_mem>>
    %585 = tpu.memref_squeeze %584 : memref<1x!tpu.dma_semaphore, #tpu.memory_space<semaphore_mem>> -> memref<!tpu.dma_semaphore, #tpu.memory_space<semaphore_mem>>
    tpu.wait_dma2 semaphore(%585 : memref<!tpu.dma_semaphore, #tpu.memory_space<semaphore_mem>>) src(%581 : memref<128xf32, #tpu.memory_space<any>>) dst(%583 : memref<128xf32, #tpu.memory_space<vmem>>)
    %c1_i32_261 = arith.constant 1 : i32
    %586 = arith.addi %0, %c1_i32_261 : i32
    %587 = arith.index_cast %586 : i32 to index
    %588 = memref.load %arg1[%587] : memref<64xi32, #tpu.memory_space<smem>>
    %c1_i32_262 = arith.constant 1 : i32
    %c1_i32_263 = arith.constant 1 : i32
    %c0_i32_264 = arith.constant 0 : i32
    %589 = tpu.memref_slice %arg2[%588, %c0_i32_264] : memref<50x128xf32, #tpu.memory_space<any>> -> memref<1x128xf32, #tpu.memory_space<any>>
    %590 = tpu.memref_squeeze %589 : memref<1x128xf32, #tpu.memory_space<any>> -> memref<128xf32, #tpu.memory_space<any>>
    %c0_i32_265 = arith.constant 0 : i32
    %591 = tpu.memref_slice %arg3[%c1_i32_262, %c0_i32_265] : memref<64x128xf32, #tpu.memory_space<vmem>> -> memref<1x128xf32, #tpu.memory_space<vmem>>
    %592 = tpu.memref_squeeze %591 : memref<1x128xf32, #tpu.memory_space<vmem>> -> memref<128xf32, #tpu.memory_space<vmem>>
    %593 = tpu.memref_slice %arg4[%c1_i32_263] : memref<64x!tpu.dma_semaphore, #tpu.memory_space<semaphore_mem>> -> memref<1x!tpu.dma_semaphore, #tpu.memory_space<semaphore_mem>>
    %594 = tpu.memref_squeeze %593 : memref<1x!tpu.dma_semaphore, #tpu.memory_space<semaphore_mem>> -> memref<!tpu.dma_semaphore, #tpu.memory_space<semaphore_mem>>
    tpu.wait_dma2 semaphore(%594 : memref<!tpu.dma_semaphore, #tpu.memory_space<semaphore_mem>>) src(%590 : memref<128xf32, #tpu.memory_space<any>>) dst(%592 : memref<128xf32, #tpu.memory_space<vmem>>)
    %c2_i32_266 = arith.constant 2 : i32
    %595 = arith.addi %0, %c2_i32_266 : i32
    %596 = arith.index_cast %595 : i32 to index
    %597 = memref.load %arg1[%596] : memref<64xi32, #tpu.memory_space<smem>>
    %c2_i32_267 = arith.constant 2 : i32
    %c2_i32_268 = arith.constant 2 : i32
    %c0_i32_269 = arith.constant 0 : i32
    %598 = tpu.memref_slice %arg2[%597, %c0_i32_269] : memref<50x128xf32, #tpu.memory_space<any>> -> memref<1x128xf32, #tpu.memory_space<any>>
    %599 = tpu.memref_squeeze %598 : memref<1x128xf32, #tpu.memory_space<any>> -> memref<128xf32, #tpu.memory_space<any>>
    %c0_i32_270 = arith.constant 0 : i32
    %600 = tpu.memref_slice %arg3[%c2_i32_267, %c0_i32_270] : memref<64x128xf32, #tpu.memory_space<vmem>> -> memref<1x128xf32, #tpu.memory_space<vmem>>
    %601 = tpu.memref_squeeze %600 : memref<1x128xf32, #tpu.memory_space<vmem>> -> memref<128xf32, #tpu.memory_space<vmem>>
    %602 = tpu.memref_slice %arg4[%c2_i32_268] : memref<64x!tpu.dma_semaphore, #tpu.memory_space<semaphore_mem>> -> memref<1x!tpu.dma_semaphore, #tpu.memory_space<semaphore_mem>>
    %603 = tpu.memref_squeeze %602 : memref<1x!tpu.dma_semaphore, #tpu.memory_space<semaphore_mem>> -> memref<!tpu.dma_semaphore, #tpu.memory_space<semaphore_mem>>
    tpu.wait_dma2 semaphore(%603 : memref<!tpu.dma_semaphore, #tpu.memory_space<semaphore_mem>>) src(%599 : memref<128xf32, #tpu.memory_space<any>>) dst(%601 : memref<128xf32, #tpu.memory_space<vmem>>)
    %c3_i32_271 = arith.constant 3 : i32
    %604 = arith.addi %0, %c3_i32_271 : i32
    %605 = arith.index_cast %604 : i32 to index
    %606 = memref.load %arg1[%605] : memref<64xi32, #tpu.memory_space<smem>>
    %c3_i32_272 = arith.constant 3 : i32
    %c3_i32_273 = arith.constant 3 : i32
    %c0_i32_274 = arith.constant 0 : i32
    %607 = tpu.memref_slice %arg2[%606, %c0_i32_274] : memref<50x128xf32, #tpu.memory_space<any>> -> memref<1x128xf32, #tpu.memory_space<any>>
    %608 = tpu.memref_squeeze %607 : memref<1x128xf32, #tpu.memory_space<any>> -> memref<128xf32, #tpu.memory_space<any>>
    %c0_i32_275 = arith.constant 0 : i32
    %609 = tpu.memref_slice %arg3[%c3_i32_272, %c0_i32_275] : memref<64x128xf32, #tpu.memory_space<vmem>> -> memref<1x128xf32, #tpu.memory_space<vmem>>
    %610 = tpu.memref_squeeze %609 : memref<1x128xf32, #tpu.memory_space<vmem>> -> memref<128xf32, #tpu.memory_space<vmem>>
    %611 = tpu.memref_slice %arg4[%c3_i32_273] : memref<64x!tpu.dma_semaphore, #tpu.memory_space<semaphore_mem>> -> memref<1x!tpu.dma_semaphore, #tpu.memory_space<semaphore_mem>>
    %612 = tpu.memref_squeeze %611 : memref<1x!tpu.dma_semaphore, #tpu.memory_space<semaphore_mem>> -> memref<!tpu.dma_semaphore, #tpu.memory_space<semaphore_mem>>
    tpu.wait_dma2 semaphore(%612 : memref<!tpu.dma_semaphore, #tpu.memory_space<semaphore_mem>>) src(%608 : memref<128xf32, #tpu.memory_space<any>>) dst(%610 : memref<128xf32, #tpu.memory_space<vmem>>)
    %c4_i32_276 = arith.constant 4 : i32
    %613 = arith.addi %0, %c4_i32_276 : i32
    %614 = arith.index_cast %613 : i32 to index
    %615 = memref.load %arg1[%614] : memref<64xi32, #tpu.memory_space<smem>>
    %c4_i32_277 = arith.constant 4 : i32
    %c4_i32_278 = arith.constant 4 : i32
    %c0_i32_279 = arith.constant 0 : i32
    %616 = tpu.memref_slice %arg2[%615, %c0_i32_279] : memref<50x128xf32, #tpu.memory_space<any>> -> memref<1x128xf32, #tpu.memory_space<any>>
    %617 = tpu.memref_squeeze %616 : memref<1x128xf32, #tpu.memory_space<any>> -> memref<128xf32, #tpu.memory_space<any>>
    %c0_i32_280 = arith.constant 0 : i32
    %618 = tpu.memref_slice %arg3[%c4_i32_277, %c0_i32_280] : memref<64x128xf32, #tpu.memory_space<vmem>> -> memref<1x128xf32, #tpu.memory_space<vmem>>
    %619 = tpu.memref_squeeze %618 : memref<1x128xf32, #tpu.memory_space<vmem>> -> memref<128xf32, #tpu.memory_space<vmem>>
    %620 = tpu.memref_slice %arg4[%c4_i32_278] : memref<64x!tpu.dma_semaphore, #tpu.memory_space<semaphore_mem>> -> memref<1x!tpu.dma_semaphore, #tpu.memory_space<semaphore_mem>>
    %621 = tpu.memref_squeeze %620 : memref<1x!tpu.dma_semaphore, #tpu.memory_space<semaphore_mem>> -> memref<!tpu.dma_semaphore, #tpu.memory_space<semaphore_mem>>
    tpu.wait_dma2 semaphore(%621 : memref<!tpu.dma_semaphore, #tpu.memory_space<semaphore_mem>>) src(%617 : memref<128xf32, #tpu.memory_space<any>>) dst(%619 : memref<128xf32, #tpu.memory_space<vmem>>)
    %c5_i32_281 = arith.constant 5 : i32
    %622 = arith.addi %0, %c5_i32_281 : i32
    %623 = arith.index_cast %622 : i32 to index
    %624 = memref.load %arg1[%623] : memref<64xi32, #tpu.memory_space<smem>>
    %c5_i32_282 = arith.constant 5 : i32
    %c5_i32_283 = arith.constant 5 : i32
    %c0_i32_284 = arith.constant 0 : i32
    %625 = tpu.memref_slice %arg2[%624, %c0_i32_284] : memref<50x128xf32, #tpu.memory_space<any>> -> memref<1x128xf32, #tpu.memory_space<any>>
    %626 = tpu.memref_squeeze %625 : memref<1x128xf32, #tpu.memory_space<any>> -> memref<128xf32, #tpu.memory_space<any>>
    %c0_i32_285 = arith.constant 0 : i32
    %627 = tpu.memref_slice %arg3[%c5_i32_282, %c0_i32_285] : memref<64x128xf32, #tpu.memory_space<vmem>> -> memref<1x128xf32, #tpu.memory_space<vmem>>
    %628 = tpu.memref_squeeze %627 : memref<1x128xf32, #tpu.memory_space<vmem>> -> memref<128xf32, #tpu.memory_space<vmem>>
    %629 = tpu.memref_slice %arg4[%c5_i32_283] : memref<64x!tpu.dma_semaphore, #tpu.memory_space<semaphore_mem>> -> memref<1x!tpu.dma_semaphore, #tpu.memory_space<semaphore_mem>>
    %630 = tpu.memref_squeeze %629 : memref<1x!tpu.dma_semaphore, #tpu.memory_space<semaphore_mem>> -> memref<!tpu.dma_semaphore, #tpu.memory_space<semaphore_mem>>
    tpu.wait_dma2 semaphore(%630 : memref<!tpu.dma_semaphore, #tpu.memory_space<semaphore_mem>>) src(%626 : memref<128xf32, #tpu.memory_space<any>>) dst(%628 : memref<128xf32, #tpu.memory_space<vmem>>)
    %c6_i32_286 = arith.constant 6 : i32
    %631 = arith.addi %0, %c6_i32_286 : i32
    %632 = arith.index_cast %631 : i32 to index
    %633 = memref.load %arg1[%632] : memref<64xi32, #tpu.memory_space<smem>>
    %c6_i32_287 = arith.constant 6 : i32
    %c6_i32_288 = arith.constant 6 : i32
    %c0_i32_289 = arith.constant 0 : i32
    %634 = tpu.memref_slice %arg2[%633, %c0_i32_289] : memref<50x128xf32, #tpu.memory_space<any>> -> memref<1x128xf32, #tpu.memory_space<any>>
    %635 = tpu.memref_squeeze %634 : memref<1x128xf32, #tpu.memory_space<any>> -> memref<128xf32, #tpu.memory_space<any>>
    %c0_i32_290 = arith.constant 0 : i32
    %636 = tpu.memref_slice %arg3[%c6_i32_287, %c0_i32_290] : memref<64x128xf32, #tpu.memory_space<vmem>> -> memref<1x128xf32, #tpu.memory_space<vmem>>
    %637 = tpu.memref_squeeze %636 : memref<1x128xf32, #tpu.memory_space<vmem>> -> memref<128xf32, #tpu.memory_space<vmem>>
    %638 = tpu.memref_slice %arg4[%c6_i32_288] : memref<64x!tpu.dma_semaphore, #tpu.memory_space<semaphore_mem>> -> memref<1x!tpu.dma_semaphore, #tpu.memory_space<semaphore_mem>>
    %639 = tpu.memref_squeeze %638 : memref<1x!tpu.dma_semaphore, #tpu.memory_space<semaphore_mem>> -> memref<!tpu.dma_semaphore, #tpu.memory_space<semaphore_mem>>
    tpu.wait_dma2 semaphore(%639 : memref<!tpu.dma_semaphore, #tpu.memory_space<semaphore_mem>>) src(%635 : memref<128xf32, #tpu.memory_space<any>>) dst(%637 : memref<128xf32, #tpu.memory_space<vmem>>)
    %c7_i32_291 = arith.constant 7 : i32
    %640 = arith.addi %0, %c7_i32_291 : i32
    %641 = arith.index_cast %640 : i32 to index
    %642 = memref.load %arg1[%641] : memref<64xi32, #tpu.memory_space<smem>>
    %c7_i32_292 = arith.constant 7 : i32
    %c7_i32_293 = arith.constant 7 : i32
    %c0_i32_294 = arith.constant 0 : i32
    %643 = tpu.memref_slice %arg2[%642, %c0_i32_294] : memref<50x128xf32, #tpu.memory_space<any>> -> memref<1x128xf32, #tpu.memory_space<any>>
    %644 = tpu.memref_squeeze %643 : memref<1x128xf32, #tpu.memory_space<any>> -> memref<128xf32, #tpu.memory_space<any>>
    %c0_i32_295 = arith.constant 0 : i32
    %645 = tpu.memref_slice %arg3[%c7_i32_292, %c0_i32_295] : memref<64x128xf32, #tpu.memory_space<vmem>> -> memref<1x128xf32, #tpu.memory_space<vmem>>
    %646 = tpu.memref_squeeze %645 : memref<1x128xf32, #tpu.memory_space<vmem>> -> memref<128xf32, #tpu.memory_space<vmem>>
    %647 = tpu.memref_slice %arg4[%c7_i32_293] : memref<64x!tpu.dma_semaphore, #tpu.memory_space<semaphore_mem>> -> memref<1x!tpu.dma_semaphore, #tpu.memory_space<semaphore_mem>>
    %648 = tpu.memref_squeeze %647 : memref<1x!tpu.dma_semaphore, #tpu.memory_space<semaphore_mem>> -> memref<!tpu.dma_semaphore, #tpu.memory_space<semaphore_mem>>
    tpu.wait_dma2 semaphore(%648 : memref<!tpu.dma_semaphore, #tpu.memory_space<semaphore_mem>>) src(%644 : memref<128xf32, #tpu.memory_space<any>>) dst(%646 : memref<128xf32, #tpu.memory_space<vmem>>)
    %c8_i32_296 = arith.constant 8 : i32
    %649 = arith.addi %0, %c8_i32_296 : i32
    %650 = arith.index_cast %649 : i32 to index
    %651 = memref.load %arg1[%650] : memref<64xi32, #tpu.memory_space<smem>>
    %c8_i32_297 = arith.constant 8 : i32
    %c8_i32_298 = arith.constant 8 : i32
    %c0_i32_299 = arith.constant 0 : i32
    %652 = tpu.memref_slice %arg2[%651, %c0_i32_299] : memref<50x128xf32, #tpu.memory_space<any>> -> memref<1x128xf32, #tpu.memory_space<any>>
    %653 = tpu.memref_squeeze %652 : memref<1x128xf32, #tpu.memory_space<any>> -> memref<128xf32, #tpu.memory_space<any>>
    %c0_i32_300 = arith.constant 0 : i32
    %654 = tpu.memref_slice %arg3[%c8_i32_297, %c0_i32_300] : memref<64x128xf32, #tpu.memory_space<vmem>> -> memref<1x128xf32, #tpu.memory_space<vmem>>
    %655 = tpu.memref_squeeze %654 : memref<1x128xf32, #tpu.memory_space<vmem>> -> memref<128xf32, #tpu.memory_space<vmem>>
    %656 = tpu.memref_slice %arg4[%c8_i32_298] : memref<64x!tpu.dma_semaphore, #tpu.memory_space<semaphore_mem>> -> memref<1x!tpu.dma_semaphore, #tpu.memory_space<semaphore_mem>>
    %657 = tpu.memref_squeeze %656 : memref<1x!tpu.dma_semaphore, #tpu.memory_space<semaphore_mem>> -> memref<!tpu.dma_semaphore, #tpu.memory_space<semaphore_mem>>
    tpu.wait_dma2 semaphore(%657 : memref<!tpu.dma_semaphore, #tpu.memory_space<semaphore_mem>>) src(%653 : memref<128xf32, #tpu.memory_space<any>>) dst(%655 : memref<128xf32, #tpu.memory_space<vmem>>)
    %c9_i32_301 = arith.constant 9 : i32
    %658 = arith.addi %0, %c9_i32_301 : i32
    %659 = arith.index_cast %658 : i32 to index
    %660 = memref.load %arg1[%659] : memref<64xi32, #tpu.memory_space<smem>>
    %c9_i32_302 = arith.constant 9 : i32
    %c9_i32_303 = arith.constant 9 : i32
    %c0_i32_304 = arith.constant 0 : i32
    %661 = tpu.memref_slice %arg2[%660, %c0_i32_304] : memref<50x128xf32, #tpu.memory_space<any>> -> memref<1x128xf32, #tpu.memory_space<any>>
    %662 = tpu.memref_squeeze %661 : memref<1x128xf32, #tpu.memory_space<any>> -> memref<128xf32, #tpu.memory_space<any>>
    %c0_i32_305 = arith.constant 0 : i32
    %663 = tpu.memref_slice %arg3[%c9_i32_302, %c0_i32_305] : memref<64x128xf32, #tpu.memory_space<vmem>> -> memref<1x128xf32, #tpu.memory_space<vmem>>
    %664 = tpu.memref_squeeze %663 : memref<1x128xf32, #tpu.memory_space<vmem>> -> memref<128xf32, #tpu.memory_space<vmem>>
    %665 = tpu.memref_slice %arg4[%c9_i32_303] : memref<64x!tpu.dma_semaphore, #tpu.memory_space<semaphore_mem>> -> memref<1x!tpu.dma_semaphore, #tpu.memory_space<semaphore_mem>>
    %666 = tpu.memref_squeeze %665 : memref<1x!tpu.dma_semaphore, #tpu.memory_space<semaphore_mem>> -> memref<!tpu.dma_semaphore, #tpu.memory_space<semaphore_mem>>
    tpu.wait_dma2 semaphore(%666 : memref<!tpu.dma_semaphore, #tpu.memory_space<semaphore_mem>>) src(%662 : memref<128xf32, #tpu.memory_space<any>>) dst(%664 : memref<128xf32, #tpu.memory_space<vmem>>)
    %c10_i32_306 = arith.constant 10 : i32
    %667 = arith.addi %0, %c10_i32_306 : i32
    %668 = arith.index_cast %667 : i32 to index
    %669 = memref.load %arg1[%668] : memref<64xi32, #tpu.memory_space<smem>>
    %c10_i32_307 = arith.constant 10 : i32
    %c10_i32_308 = arith.constant 10 : i32
    %c0_i32_309 = arith.constant 0 : i32
    %670 = tpu.memref_slice %arg2[%669, %c0_i32_309] : memref<50x128xf32, #tpu.memory_space<any>> -> memref<1x128xf32, #tpu.memory_space<any>>
    %671 = tpu.memref_squeeze %670 : memref<1x128xf32, #tpu.memory_space<any>> -> memref<128xf32, #tpu.memory_space<any>>
    %c0_i32_310 = arith.constant 0 : i32
    %672 = tpu.memref_slice %arg3[%c10_i32_307, %c0_i32_310] : memref<64x128xf32, #tpu.memory_space<vmem>> -> memref<1x128xf32, #tpu.memory_space<vmem>>
    %673 = tpu.memref_squeeze %672 : memref<1x128xf32, #tpu.memory_space<vmem>> -> memref<128xf32, #tpu.memory_space<vmem>>
    %674 = tpu.memref_slice %arg4[%c10_i32_308] : memref<64x!tpu.dma_semaphore, #tpu.memory_space<semaphore_mem>> -> memref<1x!tpu.dma_semaphore, #tpu.memory_space<semaphore_mem>>
    %675 = tpu.memref_squeeze %674 : memref<1x!tpu.dma_semaphore, #tpu.memory_space<semaphore_mem>> -> memref<!tpu.dma_semaphore, #tpu.memory_space<semaphore_mem>>
    tpu.wait_dma2 semaphore(%675 : memref<!tpu.dma_semaphore, #tpu.memory_space<semaphore_mem>>) src(%671 : memref<128xf32, #tpu.memory_space<any>>) dst(%673 : memref<128xf32, #tpu.memory_space<vmem>>)
    %c11_i32_311 = arith.constant 11 : i32
    %676 = arith.addi %0, %c11_i32_311 : i32
    %677 = arith.index_cast %676 : i32 to index
    %678 = memref.load %arg1[%677] : memref<64xi32, #tpu.memory_space<smem>>
    %c11_i32_312 = arith.constant 11 : i32
    %c11_i32_313 = arith.constant 11 : i32
    %c0_i32_314 = arith.constant 0 : i32
    %679 = tpu.memref_slice %arg2[%678, %c0_i32_314] : memref<50x128xf32, #tpu.memory_space<any>> -> memref<1x128xf32, #tpu.memory_space<any>>
    %680 = tpu.memref_squeeze %679 : memref<1x128xf32, #tpu.memory_space<any>> -> memref<128xf32, #tpu.memory_space<any>>
    %c0_i32_315 = arith.constant 0 : i32
    %681 = tpu.memref_slice %arg3[%c11_i32_312, %c0_i32_315] : memref<64x128xf32, #tpu.memory_space<vmem>> -> memref<1x128xf32, #tpu.memory_space<vmem>>
    %682 = tpu.memref_squeeze %681 : memref<1x128xf32, #tpu.memory_space<vmem>> -> memref<128xf32, #tpu.memory_space<vmem>>
    %683 = tpu.memref_slice %arg4[%c11_i32_313] : memref<64x!tpu.dma_semaphore, #tpu.memory_space<semaphore_mem>> -> memref<1x!tpu.dma_semaphore, #tpu.memory_space<semaphore_mem>>
    %684 = tpu.memref_squeeze %683 : memref<1x!tpu.dma_semaphore, #tpu.memory_space<semaphore_mem>> -> memref<!tpu.dma_semaphore, #tpu.memory_space<semaphore_mem>>
    tpu.wait_dma2 semaphore(%684 : memref<!tpu.dma_semaphore, #tpu.memory_space<semaphore_mem>>) src(%680 : memref<128xf32, #tpu.memory_space<any>>) dst(%682 : memref<128xf32, #tpu.memory_space<vmem>>)
    %c12_i32_316 = arith.constant 12 : i32
    %685 = arith.addi %0, %c12_i32_316 : i32
    %686 = arith.index_cast %685 : i32 to index
    %687 = memref.load %arg1[%686] : memref<64xi32, #tpu.memory_space<smem>>
    %c12_i32_317 = arith.constant 12 : i32
    %c12_i32_318 = arith.constant 12 : i32
    %c0_i32_319 = arith.constant 0 : i32
    %688 = tpu.memref_slice %arg2[%687, %c0_i32_319] : memref<50x128xf32, #tpu.memory_space<any>> -> memref<1x128xf32, #tpu.memory_space<any>>
    %689 = tpu.memref_squeeze %688 : memref<1x128xf32, #tpu.memory_space<any>> -> memref<128xf32, #tpu.memory_space<any>>
    %c0_i32_320 = arith.constant 0 : i32
    %690 = tpu.memref_slice %arg3[%c12_i32_317, %c0_i32_320] : memref<64x128xf32, #tpu.memory_space<vmem>> -> memref<1x128xf32, #tpu.memory_space<vmem>>
    %691 = tpu.memref_squeeze %690 : memref<1x128xf32, #tpu.memory_space<vmem>> -> memref<128xf32, #tpu.memory_space<vmem>>
    %692 = tpu.memref_slice %arg4[%c12_i32_318] : memref<64x!tpu.dma_semaphore, #tpu.memory_space<semaphore_mem>> -> memref<1x!tpu.dma_semaphore, #tpu.memory_space<semaphore_mem>>
    %693 = tpu.memref_squeeze %692 : memref<1x!tpu.dma_semaphore, #tpu.memory_space<semaphore_mem>> -> memref<!tpu.dma_semaphore, #tpu.memory_space<semaphore_mem>>
    tpu.wait_dma2 semaphore(%693 : memref<!tpu.dma_semaphore, #tpu.memory_space<semaphore_mem>>) src(%689 : memref<128xf32, #tpu.memory_space<any>>) dst(%691 : memref<128xf32, #tpu.memory_space<vmem>>)
    %c13_i32_321 = arith.constant 13 : i32
    %694 = arith.addi %0, %c13_i32_321 : i32
    %695 = arith.index_cast %694 : i32 to index
    %696 = memref.load %arg1[%695] : memref<64xi32, #tpu.memory_space<smem>>
    %c13_i32_322 = arith.constant 13 : i32
    %c13_i32_323 = arith.constant 13 : i32
    %c0_i32_324 = arith.constant 0 : i32
    %697 = tpu.memref_slice %arg2[%696, %c0_i32_324] : memref<50x128xf32, #tpu.memory_space<any>> -> memref<1x128xf32, #tpu.memory_space<any>>
    %698 = tpu.memref_squeeze %697 : memref<1x128xf32, #tpu.memory_space<any>> -> memref<128xf32, #tpu.memory_space<any>>
    %c0_i32_325 = arith.constant 0 : i32
    %699 = tpu.memref_slice %arg3[%c13_i32_322, %c0_i32_325] : memref<64x128xf32, #tpu.memory_space<vmem>> -> memref<1x128xf32, #tpu.memory_space<vmem>>
    %700 = tpu.memref_squeeze %699 : memref<1x128xf32, #tpu.memory_space<vmem>> -> memref<128xf32, #tpu.memory_space<vmem>>
    %701 = tpu.memref_slice %arg4[%c13_i32_323] : memref<64x!tpu.dma_semaphore, #tpu.memory_space<semaphore_mem>> -> memref<1x!tpu.dma_semaphore, #tpu.memory_space<semaphore_mem>>
    %702 = tpu.memref_squeeze %701 : memref<1x!tpu.dma_semaphore, #tpu.memory_space<semaphore_mem>> -> memref<!tpu.dma_semaphore, #tpu.memory_space<semaphore_mem>>
    tpu.wait_dma2 semaphore(%702 : memref<!tpu.dma_semaphore, #tpu.memory_space<semaphore_mem>>) src(%698 : memref<128xf32, #tpu.memory_space<any>>) dst(%700 : memref<128xf32, #tpu.memory_space<vmem>>)
    %c14_i32_326 = arith.constant 14 : i32
    %703 = arith.addi %0, %c14_i32_326 : i32
    %704 = arith.index_cast %703 : i32 to index
    %705 = memref.load %arg1[%704] : memref<64xi32, #tpu.memory_space<smem>>
    %c14_i32_327 = arith.constant 14 : i32
    %c14_i32_328 = arith.constant 14 : i32
    %c0_i32_329 = arith.constant 0 : i32
    %706 = tpu.memref_slice %arg2[%705, %c0_i32_329] : memref<50x128xf32, #tpu.memory_space<any>> -> memref<1x128xf32, #tpu.memory_space<any>>
    %707 = tpu.memref_squeeze %706 : memref<1x128xf32, #tpu.memory_space<any>> -> memref<128xf32, #tpu.memory_space<any>>
    %c0_i32_330 = arith.constant 0 : i32
    %708 = tpu.memref_slice %arg3[%c14_i32_327, %c0_i32_330] : memref<64x128xf32, #tpu.memory_space<vmem>> -> memref<1x128xf32, #tpu.memory_space<vmem>>
    %709 = tpu.memref_squeeze %708 : memref<1x128xf32, #tpu.memory_space<vmem>> -> memref<128xf32, #tpu.memory_space<vmem>>
    %710 = tpu.memref_slice %arg4[%c14_i32_328] : memref<64x!tpu.dma_semaphore, #tpu.memory_space<semaphore_mem>> -> memref<1x!tpu.dma_semaphore, #tpu.memory_space<semaphore_mem>>
    %711 = tpu.memref_squeeze %710 : memref<1x!tpu.dma_semaphore, #tpu.memory_space<semaphore_mem>> -> memref<!tpu.dma_semaphore, #tpu.memory_space<semaphore_mem>>
    tpu.wait_dma2 semaphore(%711 : memref<!tpu.dma_semaphore, #tpu.memory_space<semaphore_mem>>) src(%707 : memref<128xf32, #tpu.memory_space<any>>) dst(%709 : memref<128xf32, #tpu.memory_space<vmem>>)
    %c15_i32_331 = arith.constant 15 : i32
    %712 = arith.addi %0, %c15_i32_331 : i32
    %713 = arith.index_cast %712 : i32 to index
    %714 = memref.load %arg1[%713] : memref<64xi32, #tpu.memory_space<smem>>
    %c15_i32_332 = arith.constant 15 : i32
    %c15_i32_333 = arith.constant 15 : i32
    %c0_i32_334 = arith.constant 0 : i32
    %715 = tpu.memref_slice %arg2[%714, %c0_i32_334] : memref<50x128xf32, #tpu.memory_space<any>> -> memref<1x128xf32, #tpu.memory_space<any>>
    %716 = tpu.memref_squeeze %715 : memref<1x128xf32, #tpu.memory_space<any>> -> memref<128xf32, #tpu.memory_space<any>>
    %c0_i32_335 = arith.constant 0 : i32
    %717 = tpu.memref_slice %arg3[%c15_i32_332, %c0_i32_335] : memref<64x128xf32, #tpu.memory_space<vmem>> -> memref<1x128xf32, #tpu.memory_space<vmem>>
    %718 = tpu.memref_squeeze %717 : memref<1x128xf32, #tpu.memory_space<vmem>> -> memref<128xf32, #tpu.memory_space<vmem>>
    %719 = tpu.memref_slice %arg4[%c15_i32_333] : memref<64x!tpu.dma_semaphore, #tpu.memory_space<semaphore_mem>> -> memref<1x!tpu.dma_semaphore, #tpu.memory_space<semaphore_mem>>
    %720 = tpu.memref_squeeze %719 : memref<1x!tpu.dma_semaphore, #tpu.memory_space<semaphore_mem>> -> memref<!tpu.dma_semaphore, #tpu.memory_space<semaphore_mem>>
    tpu.wait_dma2 semaphore(%720 : memref<!tpu.dma_semaphore, #tpu.memory_space<semaphore_mem>>) src(%716 : memref<128xf32, #tpu.memory_space<any>>) dst(%718 : memref<128xf32, #tpu.memory_space<vmem>>)
    %c16_i32_336 = arith.constant 16 : i32
    %721 = arith.addi %0, %c16_i32_336 : i32
    %722 = arith.index_cast %721 : i32 to index
    %723 = memref.load %arg1[%722] : memref<64xi32, #tpu.memory_space<smem>>
    %c16_i32_337 = arith.constant 16 : i32
    %c16_i32_338 = arith.constant 16 : i32
    %c0_i32_339 = arith.constant 0 : i32
    %724 = tpu.memref_slice %arg2[%723, %c0_i32_339] : memref<50x128xf32, #tpu.memory_space<any>> -> memref<1x128xf32, #tpu.memory_space<any>>
    %725 = tpu.memref_squeeze %724 : memref<1x128xf32, #tpu.memory_space<any>> -> memref<128xf32, #tpu.memory_space<any>>
    %c0_i32_340 = arith.constant 0 : i32
    %726 = tpu.memref_slice %arg3[%c16_i32_337, %c0_i32_340] : memref<64x128xf32, #tpu.memory_space<vmem>> -> memref<1x128xf32, #tpu.memory_space<vmem>>
    %727 = tpu.memref_squeeze %726 : memref<1x128xf32, #tpu.memory_space<vmem>> -> memref<128xf32, #tpu.memory_space<vmem>>
    %728 = tpu.memref_slice %arg4[%c16_i32_338] : memref<64x!tpu.dma_semaphore, #tpu.memory_space<semaphore_mem>> -> memref<1x!tpu.dma_semaphore, #tpu.memory_space<semaphore_mem>>
    %729 = tpu.memref_squeeze %728 : memref<1x!tpu.dma_semaphore, #tpu.memory_space<semaphore_mem>> -> memref<!tpu.dma_semaphore, #tpu.memory_space<semaphore_mem>>
    tpu.wait_dma2 semaphore(%729 : memref<!tpu.dma_semaphore, #tpu.memory_space<semaphore_mem>>) src(%725 : memref<128xf32, #tpu.memory_space<any>>) dst(%727 : memref<128xf32, #tpu.memory_space<vmem>>)
    %c17_i32_341 = arith.constant 17 : i32
    %730 = arith.addi %0, %c17_i32_341 : i32
    %731 = arith.index_cast %730 : i32 to index
    %732 = memref.load %arg1[%731] : memref<64xi32, #tpu.memory_space<smem>>
    %c17_i32_342 = arith.constant 17 : i32
    %c17_i32_343 = arith.constant 17 : i32
    %c0_i32_344 = arith.constant 0 : i32
    %733 = tpu.memref_slice %arg2[%732, %c0_i32_344] : memref<50x128xf32, #tpu.memory_space<any>> -> memref<1x128xf32, #tpu.memory_space<any>>
    %734 = tpu.memref_squeeze %733 : memref<1x128xf32, #tpu.memory_space<any>> -> memref<128xf32, #tpu.memory_space<any>>
    %c0_i32_345 = arith.constant 0 : i32
    %735 = tpu.memref_slice %arg3[%c17_i32_342, %c0_i32_345] : memref<64x128xf32, #tpu.memory_space<vmem>> -> memref<1x128xf32, #tpu.memory_space<vmem>>
    %736 = tpu.memref_squeeze %735 : memref<1x128xf32, #tpu.memory_space<vmem>> -> memref<128xf32, #tpu.memory_space<vmem>>
    %737 = tpu.memref_slice %arg4[%c17_i32_343] : memref<64x!tpu.dma_semaphore, #tpu.memory_space<semaphore_mem>> -> memref<1x!tpu.dma_semaphore, #tpu.memory_space<semaphore_mem>>
    %738 = tpu.memref_squeeze %737 : memref<1x!tpu.dma_semaphore, #tpu.memory_space<semaphore_mem>> -> memref<!tpu.dma_semaphore, #tpu.memory_space<semaphore_mem>>
    tpu.wait_dma2 semaphore(%738 : memref<!tpu.dma_semaphore, #tpu.memory_space<semaphore_mem>>) src(%734 : memref<128xf32, #tpu.memory_space<any>>) dst(%736 : memref<128xf32, #tpu.memory_space<vmem>>)
    %c18_i32_346 = arith.constant 18 : i32
    %739 = arith.addi %0, %c18_i32_346 : i32
    %740 = arith.index_cast %739 : i32 to index
    %741 = memref.load %arg1[%740] : memref<64xi32, #tpu.memory_space<smem>>
    %c18_i32_347 = arith.constant 18 : i32
    %c18_i32_348 = arith.constant 18 : i32
    %c0_i32_349 = arith.constant 0 : i32
    %742 = tpu.memref_slice %arg2[%741, %c0_i32_349] : memref<50x128xf32, #tpu.memory_space<any>> -> memref<1x128xf32, #tpu.memory_space<any>>
    %743 = tpu.memref_squeeze %742 : memref<1x128xf32, #tpu.memory_space<any>> -> memref<128xf32, #tpu.memory_space<any>>
    %c0_i32_350 = arith.constant 0 : i32
    %744 = tpu.memref_slice %arg3[%c18_i32_347, %c0_i32_350] : memref<64x128xf32, #tpu.memory_space<vmem>> -> memref<1x128xf32, #tpu.memory_space<vmem>>
    %745 = tpu.memref_squeeze %744 : memref<1x128xf32, #tpu.memory_space<vmem>> -> memref<128xf32, #tpu.memory_space<vmem>>
    %746 = tpu.memref_slice %arg4[%c18_i32_348] : memref<64x!tpu.dma_semaphore, #tpu.memory_space<semaphore_mem>> -> memref<1x!tpu.dma_semaphore, #tpu.memory_space<semaphore_mem>>
    %747 = tpu.memref_squeeze %746 : memref<1x!tpu.dma_semaphore, #tpu.memory_space<semaphore_mem>> -> memref<!tpu.dma_semaphore, #tpu.memory_space<semaphore_mem>>
    tpu.wait_dma2 semaphore(%747 : memref<!tpu.dma_semaphore, #tpu.memory_space<semaphore_mem>>) src(%743 : memref<128xf32, #tpu.memory_space<any>>) dst(%745 : memref<128xf32, #tpu.memory_space<vmem>>)
    %c19_i32_351 = arith.constant 19 : i32
    %748 = arith.addi %0, %c19_i32_351 : i32
    %749 = arith.index_cast %748 : i32 to index
    %750 = memref.load %arg1[%749] : memref<64xi32, #tpu.memory_space<smem>>
    %c19_i32_352 = arith.constant 19 : i32
    %c19_i32_353 = arith.constant 19 : i32
    %c0_i32_354 = arith.constant 0 : i32
    %751 = tpu.memref_slice %arg2[%750, %c0_i32_354] : memref<50x128xf32, #tpu.memory_space<any>> -> memref<1x128xf32, #tpu.memory_space<any>>
    %752 = tpu.memref_squeeze %751 : memref<1x128xf32, #tpu.memory_space<any>> -> memref<128xf32, #tpu.memory_space<any>>
    %c0_i32_355 = arith.constant 0 : i32
    %753 = tpu.memref_slice %arg3[%c19_i32_352, %c0_i32_355] : memref<64x128xf32, #tpu.memory_space<vmem>> -> memref<1x128xf32, #tpu.memory_space<vmem>>
    %754 = tpu.memref_squeeze %753 : memref<1x128xf32, #tpu.memory_space<vmem>> -> memref<128xf32, #tpu.memory_space<vmem>>
    %755 = tpu.memref_slice %arg4[%c19_i32_353] : memref<64x!tpu.dma_semaphore, #tpu.memory_space<semaphore_mem>> -> memref<1x!tpu.dma_semaphore, #tpu.memory_space<semaphore_mem>>
    %756 = tpu.memref_squeeze %755 : memref<1x!tpu.dma_semaphore, #tpu.memory_space<semaphore_mem>> -> memref<!tpu.dma_semaphore, #tpu.memory_space<semaphore_mem>>
    tpu.wait_dma2 semaphore(%756 : memref<!tpu.dma_semaphore, #tpu.memory_space<semaphore_mem>>) src(%752 : memref<128xf32, #tpu.memory_space<any>>) dst(%754 : memref<128xf32, #tpu.memory_space<vmem>>)
    %c20_i32_356 = arith.constant 20 : i32
    %757 = arith.addi %0, %c20_i32_356 : i32
    %758 = arith.index_cast %757 : i32 to index
    %759 = memref.load %arg1[%758] : memref<64xi32, #tpu.memory_space<smem>>
    %c20_i32_357 = arith.constant 20 : i32
    %c20_i32_358 = arith.constant 20 : i32
    %c0_i32_359 = arith.constant 0 : i32
    %760 = tpu.memref_slice %arg2[%759, %c0_i32_359] : memref<50x128xf32, #tpu.memory_space<any>> -> memref<1x128xf32, #tpu.memory_space<any>>
    %761 = tpu.memref_squeeze %760 : memref<1x128xf32, #tpu.memory_space<any>> -> memref<128xf32, #tpu.memory_space<any>>
    %c0_i32_360 = arith.constant 0 : i32
    %762 = tpu.memref_slice %arg3[%c20_i32_357, %c0_i32_360] : memref<64x128xf32, #tpu.memory_space<vmem>> -> memref<1x128xf32, #tpu.memory_space<vmem>>
    %763 = tpu.memref_squeeze %762 : memref<1x128xf32, #tpu.memory_space<vmem>> -> memref<128xf32, #tpu.memory_space<vmem>>
    %764 = tpu.memref_slice %arg4[%c20_i32_358] : memref<64x!tpu.dma_semaphore, #tpu.memory_space<semaphore_mem>> -> memref<1x!tpu.dma_semaphore, #tpu.memory_space<semaphore_mem>>
    %765 = tpu.memref_squeeze %764 : memref<1x!tpu.dma_semaphore, #tpu.memory_space<semaphore_mem>> -> memref<!tpu.dma_semaphore, #tpu.memory_space<semaphore_mem>>
    tpu.wait_dma2 semaphore(%765 : memref<!tpu.dma_semaphore, #tpu.memory_space<semaphore_mem>>) src(%761 : memref<128xf32, #tpu.memory_space<any>>) dst(%763 : memref<128xf32, #tpu.memory_space<vmem>>)
    %c21_i32_361 = arith.constant 21 : i32
    %766 = arith.addi %0, %c21_i32_361 : i32
    %767 = arith.index_cast %766 : i32 to index
    %768 = memref.load %arg1[%767] : memref<64xi32, #tpu.memory_space<smem>>
    %c21_i32_362 = arith.constant 21 : i32
    %c21_i32_363 = arith.constant 21 : i32
    %c0_i32_364 = arith.constant 0 : i32
    %769 = tpu.memref_slice %arg2[%768, %c0_i32_364] : memref<50x128xf32, #tpu.memory_space<any>> -> memref<1x128xf32, #tpu.memory_space<any>>
    %770 = tpu.memref_squeeze %769 : memref<1x128xf32, #tpu.memory_space<any>> -> memref<128xf32, #tpu.memory_space<any>>
    %c0_i32_365 = arith.constant 0 : i32
    %771 = tpu.memref_slice %arg3[%c21_i32_362, %c0_i32_365] : memref<64x128xf32, #tpu.memory_space<vmem>> -> memref<1x128xf32, #tpu.memory_space<vmem>>
    %772 = tpu.memref_squeeze %771 : memref<1x128xf32, #tpu.memory_space<vmem>> -> memref<128xf32, #tpu.memory_space<vmem>>
    %773 = tpu.memref_slice %arg4[%c21_i32_363] : memref<64x!tpu.dma_semaphore, #tpu.memory_space<semaphore_mem>> -> memref<1x!tpu.dma_semaphore, #tpu.memory_space<semaphore_mem>>
    %774 = tpu.memref_squeeze %773 : memref<1x!tpu.dma_semaphore, #tpu.memory_space<semaphore_mem>> -> memref<!tpu.dma_semaphore, #tpu.memory_space<semaphore_mem>>
    tpu.wait_dma2 semaphore(%774 : memref<!tpu.dma_semaphore, #tpu.memory_space<semaphore_mem>>) src(%770 : memref<128xf32, #tpu.memory_space<any>>) dst(%772 : memref<128xf32, #tpu.memory_space<vmem>>)
    %c22_i32_366 = arith.constant 22 : i32
    %775 = arith.addi %0, %c22_i32_366 : i32
    %776 = arith.index_cast %775 : i32 to index
    %777 = memref.load %arg1[%776] : memref<64xi32, #tpu.memory_space<smem>>
    %c22_i32_367 = arith.constant 22 : i32
    %c22_i32_368 = arith.constant 22 : i32
    %c0_i32_369 = arith.constant 0 : i32
    %778 = tpu.memref_slice %arg2[%777, %c0_i32_369] : memref<50x128xf32, #tpu.memory_space<any>> -> memref<1x128xf32, #tpu.memory_space<any>>
    %779 = tpu.memref_squeeze %778 : memref<1x128xf32, #tpu.memory_space<any>> -> memref<128xf32, #tpu.memory_space<any>>
    %c0_i32_370 = arith.constant 0 : i32
    %780 = tpu.memref_slice %arg3[%c22_i32_367, %c0_i32_370] : memref<64x128xf32, #tpu.memory_space<vmem>> -> memref<1x128xf32, #tpu.memory_space<vmem>>
    %781 = tpu.memref_squeeze %780 : memref<1x128xf32, #tpu.memory_space<vmem>> -> memref<128xf32, #tpu.memory_space<vmem>>
    %782 = tpu.memref_slice %arg4[%c22_i32_368] : memref<64x!tpu.dma_semaphore, #tpu.memory_space<semaphore_mem>> -> memref<1x!tpu.dma_semaphore, #tpu.memory_space<semaphore_mem>>
    %783 = tpu.memref_squeeze %782 : memref<1x!tpu.dma_semaphore, #tpu.memory_space<semaphore_mem>> -> memref<!tpu.dma_semaphore, #tpu.memory_space<semaphore_mem>>
    tpu.wait_dma2 semaphore(%783 : memref<!tpu.dma_semaphore, #tpu.memory_space<semaphore_mem>>) src(%779 : memref<128xf32, #tpu.memory_space<any>>) dst(%781 : memref<128xf32, #tpu.memory_space<vmem>>)
    %c23_i32_371 = arith.constant 23 : i32
    %784 = arith.addi %0, %c23_i32_371 : i32
    %785 = arith.index_cast %784 : i32 to index
    %786 = memref.load %arg1[%785] : memref<64xi32, #tpu.memory_space<smem>>
    %c23_i32_372 = arith.constant 23 : i32
    %c23_i32_373 = arith.constant 23 : i32
    %c0_i32_374 = arith.constant 0 : i32
    %787 = tpu.memref_slice %arg2[%786, %c0_i32_374] : memref<50x128xf32, #tpu.memory_space<any>> -> memref<1x128xf32, #tpu.memory_space<any>>
    %788 = tpu.memref_squeeze %787 : memref<1x128xf32, #tpu.memory_space<any>> -> memref<128xf32, #tpu.memory_space<any>>
    %c0_i32_375 = arith.constant 0 : i32
    %789 = tpu.memref_slice %arg3[%c23_i32_372, %c0_i32_375] : memref<64x128xf32, #tpu.memory_space<vmem>> -> memref<1x128xf32, #tpu.memory_space<vmem>>
    %790 = tpu.memref_squeeze %789 : memref<1x128xf32, #tpu.memory_space<vmem>> -> memref<128xf32, #tpu.memory_space<vmem>>
    %791 = tpu.memref_slice %arg4[%c23_i32_373] : memref<64x!tpu.dma_semaphore, #tpu.memory_space<semaphore_mem>> -> memref<1x!tpu.dma_semaphore, #tpu.memory_space<semaphore_mem>>
    %792 = tpu.memref_squeeze %791 : memref<1x!tpu.dma_semaphore, #tpu.memory_space<semaphore_mem>> -> memref<!tpu.dma_semaphore, #tpu.memory_space<semaphore_mem>>
    tpu.wait_dma2 semaphore(%792 : memref<!tpu.dma_semaphore, #tpu.memory_space<semaphore_mem>>) src(%788 : memref<128xf32, #tpu.memory_space<any>>) dst(%790 : memref<128xf32, #tpu.memory_space<vmem>>)
    %c24_i32_376 = arith.constant 24 : i32
    %793 = arith.addi %0, %c24_i32_376 : i32
    %794 = arith.index_cast %793 : i32 to index
    %795 = memref.load %arg1[%794] : memref<64xi32, #tpu.memory_space<smem>>
    %c24_i32_377 = arith.constant 24 : i32
    %c24_i32_378 = arith.constant 24 : i32
    %c0_i32_379 = arith.constant 0 : i32
    %796 = tpu.memref_slice %arg2[%795, %c0_i32_379] : memref<50x128xf32, #tpu.memory_space<any>> -> memref<1x128xf32, #tpu.memory_space<any>>
    %797 = tpu.memref_squeeze %796 : memref<1x128xf32, #tpu.memory_space<any>> -> memref<128xf32, #tpu.memory_space<any>>
    %c0_i32_380 = arith.constant 0 : i32
    %798 = tpu.memref_slice %arg3[%c24_i32_377, %c0_i32_380] : memref<64x128xf32, #tpu.memory_space<vmem>> -> memref<1x128xf32, #tpu.memory_space<vmem>>
    %799 = tpu.memref_squeeze %798 : memref<1x128xf32, #tpu.memory_space<vmem>> -> memref<128xf32, #tpu.memory_space<vmem>>
    %800 = tpu.memref_slice %arg4[%c24_i32_378] : memref<64x!tpu.dma_semaphore, #tpu.memory_space<semaphore_mem>> -> memref<1x!tpu.dma_semaphore, #tpu.memory_space<semaphore_mem>>
    %801 = tpu.memref_squeeze %800 : memref<1x!tpu.dma_semaphore, #tpu.memory_space<semaphore_mem>> -> memref<!tpu.dma_semaphore, #tpu.memory_space<semaphore_mem>>
    tpu.wait_dma2 semaphore(%801 : memref<!tpu.dma_semaphore, #tpu.memory_space<semaphore_mem>>) src(%797 : memref<128xf32, #tpu.memory_space<any>>) dst(%799 : memref<128xf32, #tpu.memory_space<vmem>>)
    %c25_i32_381 = arith.constant 25 : i32
    %802 = arith.addi %0, %c25_i32_381 : i32
    %803 = arith.index_cast %802 : i32 to index
    %804 = memref.load %arg1[%803] : memref<64xi32, #tpu.memory_space<smem>>
    %c25_i32_382 = arith.constant 25 : i32
    %c25_i32_383 = arith.constant 25 : i32
    %c0_i32_384 = arith.constant 0 : i32
    %805 = tpu.memref_slice %arg2[%804, %c0_i32_384] : memref<50x128xf32, #tpu.memory_space<any>> -> memref<1x128xf32, #tpu.memory_space<any>>
    %806 = tpu.memref_squeeze %805 : memref<1x128xf32, #tpu.memory_space<any>> -> memref<128xf32, #tpu.memory_space<any>>
    %c0_i32_385 = arith.constant 0 : i32
    %807 = tpu.memref_slice %arg3[%c25_i32_382, %c0_i32_385] : memref<64x128xf32, #tpu.memory_space<vmem>> -> memref<1x128xf32, #tpu.memory_space<vmem>>
    %808 = tpu.memref_squeeze %807 : memref<1x128xf32, #tpu.memory_space<vmem>> -> memref<128xf32, #tpu.memory_space<vmem>>
    %809 = tpu.memref_slice %arg4[%c25_i32_383] : memref<64x!tpu.dma_semaphore, #tpu.memory_space<semaphore_mem>> -> memref<1x!tpu.dma_semaphore, #tpu.memory_space<semaphore_mem>>
    %810 = tpu.memref_squeeze %809 : memref<1x!tpu.dma_semaphore, #tpu.memory_space<semaphore_mem>> -> memref<!tpu.dma_semaphore, #tpu.memory_space<semaphore_mem>>
    tpu.wait_dma2 semaphore(%810 : memref<!tpu.dma_semaphore, #tpu.memory_space<semaphore_mem>>) src(%806 : memref<128xf32, #tpu.memory_space<any>>) dst(%808 : memref<128xf32, #tpu.memory_space<vmem>>)
    %c26_i32_386 = arith.constant 26 : i32
    %811 = arith.addi %0, %c26_i32_386 : i32
    %812 = arith.index_cast %811 : i32 to index
    %813 = memref.load %arg1[%812] : memref<64xi32, #tpu.memory_space<smem>>
    %c26_i32_387 = arith.constant 26 : i32
    %c26_i32_388 = arith.constant 26 : i32
    %c0_i32_389 = arith.constant 0 : i32
    %814 = tpu.memref_slice %arg2[%813, %c0_i32_389] : memref<50x128xf32, #tpu.memory_space<any>> -> memref<1x128xf32, #tpu.memory_space<any>>
    %815 = tpu.memref_squeeze %814 : memref<1x128xf32, #tpu.memory_space<any>> -> memref<128xf32, #tpu.memory_space<any>>
    %c0_i32_390 = arith.constant 0 : i32
    %816 = tpu.memref_slice %arg3[%c26_i32_387, %c0_i32_390] : memref<64x128xf32, #tpu.memory_space<vmem>> -> memref<1x128xf32, #tpu.memory_space<vmem>>
    %817 = tpu.memref_squeeze %816 : memref<1x128xf32, #tpu.memory_space<vmem>> -> memref<128xf32, #tpu.memory_space<vmem>>
    %818 = tpu.memref_slice %arg4[%c26_i32_388] : memref<64x!tpu.dma_semaphore, #tpu.memory_space<semaphore_mem>> -> memref<1x!tpu.dma_semaphore, #tpu.memory_space<semaphore_mem>>
    %819 = tpu.memref_squeeze %818 : memref<1x!tpu.dma_semaphore, #tpu.memory_space<semaphore_mem>> -> memref<!tpu.dma_semaphore, #tpu.memory_space<semaphore_mem>>
    tpu.wait_dma2 semaphore(%819 : memref<!tpu.dma_semaphore, #tpu.memory_space<semaphore_mem>>) src(%815 : memref<128xf32, #tpu.memory_space<any>>) dst(%817 : memref<128xf32, #tpu.memory_space<vmem>>)
    %c27_i32_391 = arith.constant 27 : i32
    %820 = arith.addi %0, %c27_i32_391 : i32
    %821 = arith.index_cast %820 : i32 to index
    %822 = memref.load %arg1[%821] : memref<64xi32, #tpu.memory_space<smem>>
    %c27_i32_392 = arith.constant 27 : i32
    %c27_i32_393 = arith.constant 27 : i32
    %c0_i32_394 = arith.constant 0 : i32
    %823 = tpu.memref_slice %arg2[%822, %c0_i32_394] : memref<50x128xf32, #tpu.memory_space<any>> -> memref<1x128xf32, #tpu.memory_space<any>>
    %824 = tpu.memref_squeeze %823 : memref<1x128xf32, #tpu.memory_space<any>> -> memref<128xf32, #tpu.memory_space<any>>
    %c0_i32_395 = arith.constant 0 : i32
    %825 = tpu.memref_slice %arg3[%c27_i32_392, %c0_i32_395] : memref<64x128xf32, #tpu.memory_space<vmem>> -> memref<1x128xf32, #tpu.memory_space<vmem>>
    %826 = tpu.memref_squeeze %825 : memref<1x128xf32, #tpu.memory_space<vmem>> -> memref<128xf32, #tpu.memory_space<vmem>>
    %827 = tpu.memref_slice %arg4[%c27_i32_393] : memref<64x!tpu.dma_semaphore, #tpu.memory_space<semaphore_mem>> -> memref<1x!tpu.dma_semaphore, #tpu.memory_space<semaphore_mem>>
    %828 = tpu.memref_squeeze %827 : memref<1x!tpu.dma_semaphore, #tpu.memory_space<semaphore_mem>> -> memref<!tpu.dma_semaphore, #tpu.memory_space<semaphore_mem>>
    tpu.wait_dma2 semaphore(%828 : memref<!tpu.dma_semaphore, #tpu.memory_space<semaphore_mem>>) src(%824 : memref<128xf32, #tpu.memory_space<any>>) dst(%826 : memref<128xf32, #tpu.memory_space<vmem>>)
    %c28_i32_396 = arith.constant 28 : i32
    %829 = arith.addi %0, %c28_i32_396 : i32
    %830 = arith.index_cast %829 : i32 to index
    %831 = memref.load %arg1[%830] : memref<64xi32, #tpu.memory_space<smem>>
    %c28_i32_397 = arith.constant 28 : i32
    %c28_i32_398 = arith.constant 28 : i32
    %c0_i32_399 = arith.constant 0 : i32
    %832 = tpu.memref_slice %arg2[%831, %c0_i32_399] : memref<50x128xf32, #tpu.memory_space<any>> -> memref<1x128xf32, #tpu.memory_space<any>>
    %833 = tpu.memref_squeeze %832 : memref<1x128xf32, #tpu.memory_space<any>> -> memref<128xf32, #tpu.memory_space<any>>
    %c0_i32_400 = arith.constant 0 : i32
    %834 = tpu.memref_slice %arg3[%c28_i32_397, %c0_i32_400] : memref<64x128xf32, #tpu.memory_space<vmem>> -> memref<1x128xf32, #tpu.memory_space<vmem>>
    %835 = tpu.memref_squeeze %834 : memref<1x128xf32, #tpu.memory_space<vmem>> -> memref<128xf32, #tpu.memory_space<vmem>>
    %836 = tpu.memref_slice %arg4[%c28_i32_398] : memref<64x!tpu.dma_semaphore, #tpu.memory_space<semaphore_mem>> -> memref<1x!tpu.dma_semaphore, #tpu.memory_space<semaphore_mem>>
    %837 = tpu.memref_squeeze %836 : memref<1x!tpu.dma_semaphore, #tpu.memory_space<semaphore_mem>> -> memref<!tpu.dma_semaphore, #tpu.memory_space<semaphore_mem>>
    tpu.wait_dma2 semaphore(%837 : memref<!tpu.dma_semaphore, #tpu.memory_space<semaphore_mem>>) src(%833 : memref<128xf32, #tpu.memory_space<any>>) dst(%835 : memref<128xf32, #tpu.memory_space<vmem>>)
    %c29_i32_401 = arith.constant 29 : i32
    %838 = arith.addi %0, %c29_i32_401 : i32
    %839 = arith.index_cast %838 : i32 to index
    %840 = memref.load %arg1[%839] : memref<64xi32, #tpu.memory_space<smem>>
    %c29_i32_402 = arith.constant 29 : i32
    %c29_i32_403 = arith.constant 29 : i32
    %c0_i32_404 = arith.constant 0 : i32
    %841 = tpu.memref_slice %arg2[%840, %c0_i32_404] : memref<50x128xf32, #tpu.memory_space<any>> -> memref<1x128xf32, #tpu.memory_space<any>>
    %842 = tpu.memref_squeeze %841 : memref<1x128xf32, #tpu.memory_space<any>> -> memref<128xf32, #tpu.memory_space<any>>
    %c0_i32_405 = arith.constant 0 : i32
    %843 = tpu.memref_slice %arg3[%c29_i32_402, %c0_i32_405] : memref<64x128xf32, #tpu.memory_space<vmem>> -> memref<1x128xf32, #tpu.memory_space<vmem>>
    %844 = tpu.memref_squeeze %843 : memref<1x128xf32, #tpu.memory_space<vmem>> -> memref<128xf32, #tpu.memory_space<vmem>>
    %845 = tpu.memref_slice %arg4[%c29_i32_403] : memref<64x!tpu.dma_semaphore, #tpu.memory_space<semaphore_mem>> -> memref<1x!tpu.dma_semaphore, #tpu.memory_space<semaphore_mem>>
    %846 = tpu.memref_squeeze %845 : memref<1x!tpu.dma_semaphore, #tpu.memory_space<semaphore_mem>> -> memref<!tpu.dma_semaphore, #tpu.memory_space<semaphore_mem>>
    tpu.wait_dma2 semaphore(%846 : memref<!tpu.dma_semaphore, #tpu.memory_space<semaphore_mem>>) src(%842 : memref<128xf32, #tpu.memory_space<any>>) dst(%844 : memref<128xf32, #tpu.memory_space<vmem>>)
    %c30_i32_406 = arith.constant 30 : i32
    %847 = arith.addi %0, %c30_i32_406 : i32
    %848 = arith.index_cast %847 : i32 to index
    %849 = memref.load %arg1[%848] : memref<64xi32, #tpu.memory_space<smem>>
    %c30_i32_407 = arith.constant 30 : i32
    %c30_i32_408 = arith.constant 30 : i32
    %c0_i32_409 = arith.constant 0 : i32
    %850 = tpu.memref_slice %arg2[%849, %c0_i32_409] : memref<50x128xf32, #tpu.memory_space<any>> -> memref<1x128xf32, #tpu.memory_space<any>>
    %851 = tpu.memref_squeeze %850 : memref<1x128xf32, #tpu.memory_space<any>> -> memref<128xf32, #tpu.memory_space<any>>
    %c0_i32_410 = arith.constant 0 : i32
    %852 = tpu.memref_slice %arg3[%c30_i32_407, %c0_i32_410] : memref<64x128xf32, #tpu.memory_space<vmem>> -> memref<1x128xf32, #tpu.memory_space<vmem>>
    %853 = tpu.memref_squeeze %852 : memref<1x128xf32, #tpu.memory_space<vmem>> -> memref<128xf32, #tpu.memory_space<vmem>>
    %854 = tpu.memref_slice %arg4[%c30_i32_408] : memref<64x!tpu.dma_semaphore, #tpu.memory_space<semaphore_mem>> -> memref<1x!tpu.dma_semaphore, #tpu.memory_space<semaphore_mem>>
    %855 = tpu.memref_squeeze %854 : memref<1x!tpu.dma_semaphore, #tpu.memory_space<semaphore_mem>> -> memref<!tpu.dma_semaphore, #tpu.memory_space<semaphore_mem>>
    tpu.wait_dma2 semaphore(%855 : memref<!tpu.dma_semaphore, #tpu.memory_space<semaphore_mem>>) src(%851 : memref<128xf32, #tpu.memory_space<any>>) dst(%853 : memref<128xf32, #tpu.memory_space<vmem>>)
    %c31_i32_411 = arith.constant 31 : i32
    %856 = arith.addi %0, %c31_i32_411 : i32
    %857 = arith.index_cast %856 : i32 to index
    %858 = memref.load %arg1[%857] : memref<64xi32, #tpu.memory_space<smem>>
    %c31_i32_412 = arith.constant 31 : i32
    %c31_i32_413 = arith.constant 31 : i32
    %c0_i32_414 = arith.constant 0 : i32
    %859 = tpu.memref_slice %arg2[%858, %c0_i32_414] : memref<50x128xf32, #tpu.memory_space<any>> -> memref<1x128xf32, #tpu.memory_space<any>>
    %860 = tpu.memref_squeeze %859 : memref<1x128xf32, #tpu.memory_space<any>> -> memref<128xf32, #tpu.memory_space<any>>
    %c0_i32_415 = arith.constant 0 : i32
    %861 = tpu.memref_slice %arg3[%c31_i32_412, %c0_i32_415] : memref<64x128xf32, #tpu.memory_space<vmem>> -> memref<1x128xf32, #tpu.memory_space<vmem>>
    %862 = tpu.memref_squeeze %861 : memref<1x128xf32, #tpu.memory_space<vmem>> -> memref<128xf32, #tpu.memory_space<vmem>>
    %863 = tpu.memref_slice %arg4[%c31_i32_413] : memref<64x!tpu.dma_semaphore, #tpu.memory_space<semaphore_mem>> -> memref<1x!tpu.dma_semaphore, #tpu.memory_space<semaphore_mem>>
    %864 = tpu.memref_squeeze %863 : memref<1x!tpu.dma_semaphore, #tpu.memory_space<semaphore_mem>> -> memref<!tpu.dma_semaphore, #tpu.memory_space<semaphore_mem>>
    tpu.wait_dma2 semaphore(%864 : memref<!tpu.dma_semaphore, #tpu.memory_space<semaphore_mem>>) src(%860 : memref<128xf32, #tpu.memory_space<any>>) dst(%862 : memref<128xf32, #tpu.memory_space<vmem>>)
    %c32_i32_416 = arith.constant 32 : i32
    %865 = arith.addi %0, %c32_i32_416 : i32
    %866 = arith.index_cast %865 : i32 to index
    %867 = memref.load %arg1[%866] : memref<64xi32, #tpu.memory_space<smem>>
    %c32_i32_417 = arith.constant 32 : i32
    %c32_i32_418 = arith.constant 32 : i32
    %c0_i32_419 = arith.constant 0 : i32
    %868 = tpu.memref_slice %arg2[%867, %c0_i32_419] : memref<50x128xf32, #tpu.memory_space<any>> -> memref<1x128xf32, #tpu.memory_space<any>>
    %869 = tpu.memref_squeeze %868 : memref<1x128xf32, #tpu.memory_space<any>> -> memref<128xf32, #tpu.memory_space<any>>
    %c0_i32_420 = arith.constant 0 : i32
    %870 = tpu.memref_slice %arg3[%c32_i32_417, %c0_i32_420] : memref<64x128xf32, #tpu.memory_space<vmem>> -> memref<1x128xf32, #tpu.memory_space<vmem>>
    %871 = tpu.memref_squeeze %870 : memref<1x128xf32, #tpu.memory_space<vmem>> -> memref<128xf32, #tpu.memory_space<vmem>>
    %872 = tpu.memref_slice %arg4[%c32_i32_418] : memref<64x!tpu.dma_semaphore, #tpu.memory_space<semaphore_mem>> -> memref<1x!tpu.dma_semaphore, #tpu.memory_space<semaphore_mem>>
    %873 = tpu.memref_squeeze %872 : memref<1x!tpu.dma_semaphore, #tpu.memory_space<semaphore_mem>> -> memref<!tpu.dma_semaphore, #tpu.memory_space<semaphore_mem>>
    tpu.wait_dma2 semaphore(%873 : memref<!tpu.dma_semaphore, #tpu.memory_space<semaphore_mem>>) src(%869 : memref<128xf32, #tpu.memory_space<any>>) dst(%871 : memref<128xf32, #tpu.memory_space<vmem>>)
    %c33_i32_421 = arith.constant 33 : i32
    %874 = arith.addi %0, %c33_i32_421 : i32
    %875 = arith.index_cast %874 : i32 to index
    %876 = memref.load %arg1[%875] : memref<64xi32, #tpu.memory_space<smem>>
    %c33_i32_422 = arith.constant 33 : i32
    %c33_i32_423 = arith.constant 33 : i32
    %c0_i32_424 = arith.constant 0 : i32
    %877 = tpu.memref_slice %arg2[%876, %c0_i32_424] : memref<50x128xf32, #tpu.memory_space<any>> -> memref<1x128xf32, #tpu.memory_space<any>>
    %878 = tpu.memref_squeeze %877 : memref<1x128xf32, #tpu.memory_space<any>> -> memref<128xf32, #tpu.memory_space<any>>
    %c0_i32_425 = arith.constant 0 : i32
    %879 = tpu.memref_slice %arg3[%c33_i32_422, %c0_i32_425] : memref<64x128xf32, #tpu.memory_space<vmem>> -> memref<1x128xf32, #tpu.memory_space<vmem>>
    %880 = tpu.memref_squeeze %879 : memref<1x128xf32, #tpu.memory_space<vmem>> -> memref<128xf32, #tpu.memory_space<vmem>>
    %881 = tpu.memref_slice %arg4[%c33_i32_423] : memref<64x!tpu.dma_semaphore, #tpu.memory_space<semaphore_mem>> -> memref<1x!tpu.dma_semaphore, #tpu.memory_space<semaphore_mem>>
    %882 = tpu.memref_squeeze %881 : memref<1x!tpu.dma_semaphore, #tpu.memory_space<semaphore_mem>> -> memref<!tpu.dma_semaphore, #tpu.memory_space<semaphore_mem>>
    tpu.wait_dma2 semaphore(%882 : memref<!tpu.dma_semaphore, #tpu.memory_space<semaphore_mem>>) src(%878 : memref<128xf32, #tpu.memory_space<any>>) dst(%880 : memref<128xf32, #tpu.memory_space<vmem>>)
    %c34_i32_426 = arith.constant 34 : i32
    %883 = arith.addi %0, %c34_i32_426 : i32
    %884 = arith.index_cast %883 : i32 to index
    %885 = memref.load %arg1[%884] : memref<64xi32, #tpu.memory_space<smem>>
    %c34_i32_427 = arith.constant 34 : i32
    %c34_i32_428 = arith.constant 34 : i32
    %c0_i32_429 = arith.constant 0 : i32
    %886 = tpu.memref_slice %arg2[%885, %c0_i32_429] : memref<50x128xf32, #tpu.memory_space<any>> -> memref<1x128xf32, #tpu.memory_space<any>>
    %887 = tpu.memref_squeeze %886 : memref<1x128xf32, #tpu.memory_space<any>> -> memref<128xf32, #tpu.memory_space<any>>
    %c0_i32_430 = arith.constant 0 : i32
    %888 = tpu.memref_slice %arg3[%c34_i32_427, %c0_i32_430] : memref<64x128xf32, #tpu.memory_space<vmem>> -> memref<1x128xf32, #tpu.memory_space<vmem>>
    %889 = tpu.memref_squeeze %888 : memref<1x128xf32, #tpu.memory_space<vmem>> -> memref<128xf32, #tpu.memory_space<vmem>>
    %890 = tpu.memref_slice %arg4[%c34_i32_428] : memref<64x!tpu.dma_semaphore, #tpu.memory_space<semaphore_mem>> -> memref<1x!tpu.dma_semaphore, #tpu.memory_space<semaphore_mem>>
    %891 = tpu.memref_squeeze %890 : memref<1x!tpu.dma_semaphore, #tpu.memory_space<semaphore_mem>> -> memref<!tpu.dma_semaphore, #tpu.memory_space<semaphore_mem>>
    tpu.wait_dma2 semaphore(%891 : memref<!tpu.dma_semaphore, #tpu.memory_space<semaphore_mem>>) src(%887 : memref<128xf32, #tpu.memory_space<any>>) dst(%889 : memref<128xf32, #tpu.memory_space<vmem>>)
    %c35_i32_431 = arith.constant 35 : i32
    %892 = arith.addi %0, %c35_i32_431 : i32
    %893 = arith.index_cast %892 : i32 to index
    %894 = memref.load %arg1[%893] : memref<64xi32, #tpu.memory_space<smem>>
    %c35_i32_432 = arith.constant 35 : i32
    %c35_i32_433 = arith.constant 35 : i32
    %c0_i32_434 = arith.constant 0 : i32
    %895 = tpu.memref_slice %arg2[%894, %c0_i32_434] : memref<50x128xf32, #tpu.memory_space<any>> -> memref<1x128xf32, #tpu.memory_space<any>>
    %896 = tpu.memref_squeeze %895 : memref<1x128xf32, #tpu.memory_space<any>> -> memref<128xf32, #tpu.memory_space<any>>
    %c0_i32_435 = arith.constant 0 : i32
    %897 = tpu.memref_slice %arg3[%c35_i32_432, %c0_i32_435] : memref<64x128xf32, #tpu.memory_space<vmem>> -> memref<1x128xf32, #tpu.memory_space<vmem>>
    %898 = tpu.memref_squeeze %897 : memref<1x128xf32, #tpu.memory_space<vmem>> -> memref<128xf32, #tpu.memory_space<vmem>>
    %899 = tpu.memref_slice %arg4[%c35_i32_433] : memref<64x!tpu.dma_semaphore, #tpu.memory_space<semaphore_mem>> -> memref<1x!tpu.dma_semaphore, #tpu.memory_space<semaphore_mem>>
    %900 = tpu.memref_squeeze %899 : memref<1x!tpu.dma_semaphore, #tpu.memory_space<semaphore_mem>> -> memref<!tpu.dma_semaphore, #tpu.memory_space<semaphore_mem>>
    tpu.wait_dma2 semaphore(%900 : memref<!tpu.dma_semaphore, #tpu.memory_space<semaphore_mem>>) src(%896 : memref<128xf32, #tpu.memory_space<any>>) dst(%898 : memref<128xf32, #tpu.memory_space<vmem>>)
    %c36_i32_436 = arith.constant 36 : i32
    %901 = arith.addi %0, %c36_i32_436 : i32
    %902 = arith.index_cast %901 : i32 to index
    %903 = memref.load %arg1[%902] : memref<64xi32, #tpu.memory_space<smem>>
    %c36_i32_437 = arith.constant 36 : i32
    %c36_i32_438 = arith.constant 36 : i32
    %c0_i32_439 = arith.constant 0 : i32
    %904 = tpu.memref_slice %arg2[%903, %c0_i32_439] : memref<50x128xf32, #tpu.memory_space<any>> -> memref<1x128xf32, #tpu.memory_space<any>>
    %905 = tpu.memref_squeeze %904 : memref<1x128xf32, #tpu.memory_space<any>> -> memref<128xf32, #tpu.memory_space<any>>
    %c0_i32_440 = arith.constant 0 : i32
    %906 = tpu.memref_slice %arg3[%c36_i32_437, %c0_i32_440] : memref<64x128xf32, #tpu.memory_space<vmem>> -> memref<1x128xf32, #tpu.memory_space<vmem>>
    %907 = tpu.memref_squeeze %906 : memref<1x128xf32, #tpu.memory_space<vmem>> -> memref<128xf32, #tpu.memory_space<vmem>>
    %908 = tpu.memref_slice %arg4[%c36_i32_438] : memref<64x!tpu.dma_semaphore, #tpu.memory_space<semaphore_mem>> -> memref<1x!tpu.dma_semaphore, #tpu.memory_space<semaphore_mem>>
    %909 = tpu.memref_squeeze %908 : memref<1x!tpu.dma_semaphore, #tpu.memory_space<semaphore_mem>> -> memref<!tpu.dma_semaphore, #tpu.memory_space<semaphore_mem>>
    tpu.wait_dma2 semaphore(%909 : memref<!tpu.dma_semaphore, #tpu.memory_space<semaphore_mem>>) src(%905 : memref<128xf32, #tpu.memory_space<any>>) dst(%907 : memref<128xf32, #tpu.memory_space<vmem>>)
    %c37_i32_441 = arith.constant 37 : i32
    %910 = arith.addi %0, %c37_i32_441 : i32
    %911 = arith.index_cast %910 : i32 to index
    %912 = memref.load %arg1[%911] : memref<64xi32, #tpu.memory_space<smem>>
    %c37_i32_442 = arith.constant 37 : i32
    %c37_i32_443 = arith.constant 37 : i32
    %c0_i32_444 = arith.constant 0 : i32
    %913 = tpu.memref_slice %arg2[%912, %c0_i32_444] : memref<50x128xf32, #tpu.memory_space<any>> -> memref<1x128xf32, #tpu.memory_space<any>>
    %914 = tpu.memref_squeeze %913 : memref<1x128xf32, #tpu.memory_space<any>> -> memref<128xf32, #tpu.memory_space<any>>
    %c0_i32_445 = arith.constant 0 : i32
    %915 = tpu.memref_slice %arg3[%c37_i32_442, %c0_i32_445] : memref<64x128xf32, #tpu.memory_space<vmem>> -> memref<1x128xf32, #tpu.memory_space<vmem>>
    %916 = tpu.memref_squeeze %915 : memref<1x128xf32, #tpu.memory_space<vmem>> -> memref<128xf32, #tpu.memory_space<vmem>>
    %917 = tpu.memref_slice %arg4[%c37_i32_443] : memref<64x!tpu.dma_semaphore, #tpu.memory_space<semaphore_mem>> -> memref<1x!tpu.dma_semaphore, #tpu.memory_space<semaphore_mem>>
    %918 = tpu.memref_squeeze %917 : memref<1x!tpu.dma_semaphore, #tpu.memory_space<semaphore_mem>> -> memref<!tpu.dma_semaphore, #tpu.memory_space<semaphore_mem>>
    tpu.wait_dma2 semaphore(%918 : memref<!tpu.dma_semaphore, #tpu.memory_space<semaphore_mem>>) src(%914 : memref<128xf32, #tpu.memory_space<any>>) dst(%916 : memref<128xf32, #tpu.memory_space<vmem>>)
    %c38_i32_446 = arith.constant 38 : i32
    %919 = arith.addi %0, %c38_i32_446 : i32
    %920 = arith.index_cast %919 : i32 to index
    %921 = memref.load %arg1[%920] : memref<64xi32, #tpu.memory_space<smem>>
    %c38_i32_447 = arith.constant 38 : i32
    %c38_i32_448 = arith.constant 38 : i32
    %c0_i32_449 = arith.constant 0 : i32
    %922 = tpu.memref_slice %arg2[%921, %c0_i32_449] : memref<50x128xf32, #tpu.memory_space<any>> -> memref<1x128xf32, #tpu.memory_space<any>>
    %923 = tpu.memref_squeeze %922 : memref<1x128xf32, #tpu.memory_space<any>> -> memref<128xf32, #tpu.memory_space<any>>
    %c0_i32_450 = arith.constant 0 : i32
    %924 = tpu.memref_slice %arg3[%c38_i32_447, %c0_i32_450] : memref<64x128xf32, #tpu.memory_space<vmem>> -> memref<1x128xf32, #tpu.memory_space<vmem>>
    %925 = tpu.memref_squeeze %924 : memref<1x128xf32, #tpu.memory_space<vmem>> -> memref<128xf32, #tpu.memory_space<vmem>>
    %926 = tpu.memref_slice %arg4[%c38_i32_448] : memref<64x!tpu.dma_semaphore, #tpu.memory_space<semaphore_mem>> -> memref<1x!tpu.dma_semaphore, #tpu.memory_space<semaphore_mem>>
    %927 = tpu.memref_squeeze %926 : memref<1x!tpu.dma_semaphore, #tpu.memory_space<semaphore_mem>> -> memref<!tpu.dma_semaphore, #tpu.memory_space<semaphore_mem>>
    tpu.wait_dma2 semaphore(%927 : memref<!tpu.dma_semaphore, #tpu.memory_space<semaphore_mem>>) src(%923 : memref<128xf32, #tpu.memory_space<any>>) dst(%925 : memref<128xf32, #tpu.memory_space<vmem>>)
    %c39_i32_451 = arith.constant 39 : i32
    %928 = arith.addi %0, %c39_i32_451 : i32
    %929 = arith.index_cast %928 : i32 to index
    %930 = memref.load %arg1[%929] : memref<64xi32, #tpu.memory_space<smem>>
    %c39_i32_452 = arith.constant 39 : i32
    %c39_i32_453 = arith.constant 39 : i32
    %c0_i32_454 = arith.constant 0 : i32
    %931 = tpu.memref_slice %arg2[%930, %c0_i32_454] : memref<50x128xf32, #tpu.memory_space<any>> -> memref<1x128xf32, #tpu.memory_space<any>>
    %932 = tpu.memref_squeeze %931 : memref<1x128xf32, #tpu.memory_space<any>> -> memref<128xf32, #tpu.memory_space<any>>
    %c0_i32_455 = arith.constant 0 : i32
    %933 = tpu.memref_slice %arg3[%c39_i32_452, %c0_i32_455] : memref<64x128xf32, #tpu.memory_space<vmem>> -> memref<1x128xf32, #tpu.memory_space<vmem>>
    %934 = tpu.memref_squeeze %933 : memref<1x128xf32, #tpu.memory_space<vmem>> -> memref<128xf32, #tpu.memory_space<vmem>>
    %935 = tpu.memref_slice %arg4[%c39_i32_453] : memref<64x!tpu.dma_semaphore, #tpu.memory_space<semaphore_mem>> -> memref<1x!tpu.dma_semaphore, #tpu.memory_space<semaphore_mem>>
    %936 = tpu.memref_squeeze %935 : memref<1x!tpu.dma_semaphore, #tpu.memory_space<semaphore_mem>> -> memref<!tpu.dma_semaphore, #tpu.memory_space<semaphore_mem>>
    tpu.wait_dma2 semaphore(%936 : memref<!tpu.dma_semaphore, #tpu.memory_space<semaphore_mem>>) src(%932 : memref<128xf32, #tpu.memory_space<any>>) dst(%934 : memref<128xf32, #tpu.memory_space<vmem>>)
    %c40_i32_456 = arith.constant 40 : i32
    %937 = arith.addi %0, %c40_i32_456 : i32
    %938 = arith.index_cast %937 : i32 to index
    %939 = memref.load %arg1[%938] : memref<64xi32, #tpu.memory_space<smem>>
    %c40_i32_457 = arith.constant 40 : i32
    %c40_i32_458 = arith.constant 40 : i32
    %c0_i32_459 = arith.constant 0 : i32
    %940 = tpu.memref_slice %arg2[%939, %c0_i32_459] : memref<50x128xf32, #tpu.memory_space<any>> -> memref<1x128xf32, #tpu.memory_space<any>>
    %941 = tpu.memref_squeeze %940 : memref<1x128xf32, #tpu.memory_space<any>> -> memref<128xf32, #tpu.memory_space<any>>
    %c0_i32_460 = arith.constant 0 : i32
    %942 = tpu.memref_slice %arg3[%c40_i32_457, %c0_i32_460] : memref<64x128xf32, #tpu.memory_space<vmem>> -> memref<1x128xf32, #tpu.memory_space<vmem>>
    %943 = tpu.memref_squeeze %942 : memref<1x128xf32, #tpu.memory_space<vmem>> -> memref<128xf32, #tpu.memory_space<vmem>>
    %944 = tpu.memref_slice %arg4[%c40_i32_458] : memref<64x!tpu.dma_semaphore, #tpu.memory_space<semaphore_mem>> -> memref<1x!tpu.dma_semaphore, #tpu.memory_space<semaphore_mem>>
    %945 = tpu.memref_squeeze %944 : memref<1x!tpu.dma_semaphore, #tpu.memory_space<semaphore_mem>> -> memref<!tpu.dma_semaphore, #tpu.memory_space<semaphore_mem>>
    tpu.wait_dma2 semaphore(%945 : memref<!tpu.dma_semaphore, #tpu.memory_space<semaphore_mem>>) src(%941 : memref<128xf32, #tpu.memory_space<any>>) dst(%943 : memref<128xf32, #tpu.memory_space<vmem>>)
    %c41_i32_461 = arith.constant 41 : i32
    %946 = arith.addi %0, %c41_i32_461 : i32
    %947 = arith.index_cast %946 : i32 to index
    %948 = memref.load %arg1[%947] : memref<64xi32, #tpu.memory_space<smem>>
    %c41_i32_462 = arith.constant 41 : i32
    %c41_i32_463 = arith.constant 41 : i32
    %c0_i32_464 = arith.constant 0 : i32
    %949 = tpu.memref_slice %arg2[%948, %c0_i32_464] : memref<50x128xf32, #tpu.memory_space<any>> -> memref<1x128xf32, #tpu.memory_space<any>>
    %950 = tpu.memref_squeeze %949 : memref<1x128xf32, #tpu.memory_space<any>> -> memref<128xf32, #tpu.memory_space<any>>
    %c0_i32_465 = arith.constant 0 : i32
    %951 = tpu.memref_slice %arg3[%c41_i32_462, %c0_i32_465] : memref<64x128xf32, #tpu.memory_space<vmem>> -> memref<1x128xf32, #tpu.memory_space<vmem>>
    %952 = tpu.memref_squeeze %951 : memref<1x128xf32, #tpu.memory_space<vmem>> -> memref<128xf32, #tpu.memory_space<vmem>>
    %953 = tpu.memref_slice %arg4[%c41_i32_463] : memref<64x!tpu.dma_semaphore, #tpu.memory_space<semaphore_mem>> -> memref<1x!tpu.dma_semaphore, #tpu.memory_space<semaphore_mem>>
    %954 = tpu.memref_squeeze %953 : memref<1x!tpu.dma_semaphore, #tpu.memory_space<semaphore_mem>> -> memref<!tpu.dma_semaphore, #tpu.memory_space<semaphore_mem>>
    tpu.wait_dma2 semaphore(%954 : memref<!tpu.dma_semaphore, #tpu.memory_space<semaphore_mem>>) src(%950 : memref<128xf32, #tpu.memory_space<any>>) dst(%952 : memref<128xf32, #tpu.memory_space<vmem>>)
    %c42_i32_466 = arith.constant 42 : i32
    %955 = arith.addi %0, %c42_i32_466 : i32
    %956 = arith.index_cast %955 : i32 to index
    %957 = memref.load %arg1[%956] : memref<64xi32, #tpu.memory_space<smem>>
    %c42_i32_467 = arith.constant 42 : i32
    %c42_i32_468 = arith.constant 42 : i32
    %c0_i32_469 = arith.constant 0 : i32
    %958 = tpu.memref_slice %arg2[%957, %c0_i32_469] : memref<50x128xf32, #tpu.memory_space<any>> -> memref<1x128xf32, #tpu.memory_space<any>>
    %959 = tpu.memref_squeeze %958 : memref<1x128xf32, #tpu.memory_space<any>> -> memref<128xf32, #tpu.memory_space<any>>
    %c0_i32_470 = arith.constant 0 : i32
    %960 = tpu.memref_slice %arg3[%c42_i32_467, %c0_i32_470] : memref<64x128xf32, #tpu.memory_space<vmem>> -> memref<1x128xf32, #tpu.memory_space<vmem>>
    %961 = tpu.memref_squeeze %960 : memref<1x128xf32, #tpu.memory_space<vmem>> -> memref<128xf32, #tpu.memory_space<vmem>>
    %962 = tpu.memref_slice %arg4[%c42_i32_468] : memref<64x!tpu.dma_semaphore, #tpu.memory_space<semaphore_mem>> -> memref<1x!tpu.dma_semaphore, #tpu.memory_space<semaphore_mem>>
    %963 = tpu.memref_squeeze %962 : memref<1x!tpu.dma_semaphore, #tpu.memory_space<semaphore_mem>> -> memref<!tpu.dma_semaphore, #tpu.memory_space<semaphore_mem>>
    tpu.wait_dma2 semaphore(%963 : memref<!tpu.dma_semaphore, #tpu.memory_space<semaphore_mem>>) src(%959 : memref<128xf32, #tpu.memory_space<any>>) dst(%961 : memref<128xf32, #tpu.memory_space<vmem>>)
    %c43_i32_471 = arith.constant 43 : i32
    %964 = arith.addi %0, %c43_i32_471 : i32
    %965 = arith.index_cast %964 : i32 to index
    %966 = memref.load %arg1[%965] : memref<64xi32, #tpu.memory_space<smem>>
    %c43_i32_472 = arith.constant 43 : i32
    %c43_i32_473 = arith.constant 43 : i32
    %c0_i32_474 = arith.constant 0 : i32
    %967 = tpu.memref_slice %arg2[%966, %c0_i32_474] : memref<50x128xf32, #tpu.memory_space<any>> -> memref<1x128xf32, #tpu.memory_space<any>>
    %968 = tpu.memref_squeeze %967 : memref<1x128xf32, #tpu.memory_space<any>> -> memref<128xf32, #tpu.memory_space<any>>
    %c0_i32_475 = arith.constant 0 : i32
    %969 = tpu.memref_slice %arg3[%c43_i32_472, %c0_i32_475] : memref<64x128xf32, #tpu.memory_space<vmem>> -> memref<1x128xf32, #tpu.memory_space<vmem>>
    %970 = tpu.memref_squeeze %969 : memref<1x128xf32, #tpu.memory_space<vmem>> -> memref<128xf32, #tpu.memory_space<vmem>>
    %971 = tpu.memref_slice %arg4[%c43_i32_473] : memref<64x!tpu.dma_semaphore, #tpu.memory_space<semaphore_mem>> -> memref<1x!tpu.dma_semaphore, #tpu.memory_space<semaphore_mem>>
    %972 = tpu.memref_squeeze %971 : memref<1x!tpu.dma_semaphore, #tpu.memory_space<semaphore_mem>> -> memref<!tpu.dma_semaphore, #tpu.memory_space<semaphore_mem>>
    tpu.wait_dma2 semaphore(%972 : memref<!tpu.dma_semaphore, #tpu.memory_space<semaphore_mem>>) src(%968 : memref<128xf32, #tpu.memory_space<any>>) dst(%970 : memref<128xf32, #tpu.memory_space<vmem>>)
    %c44_i32_476 = arith.constant 44 : i32
    %973 = arith.addi %0, %c44_i32_476 : i32
    %974 = arith.index_cast %973 : i32 to index
    %975 = memref.load %arg1[%974] : memref<64xi32, #tpu.memory_space<smem>>
    %c44_i32_477 = arith.constant 44 : i32
    %c44_i32_478 = arith.constant 44 : i32
    %c0_i32_479 = arith.constant 0 : i32
    %976 = tpu.memref_slice %arg2[%975, %c0_i32_479] : memref<50x128xf32, #tpu.memory_space<any>> -> memref<1x128xf32, #tpu.memory_space<any>>
    %977 = tpu.memref_squeeze %976 : memref<1x128xf32, #tpu.memory_space<any>> -> memref<128xf32, #tpu.memory_space<any>>
    %c0_i32_480 = arith.constant 0 : i32
    %978 = tpu.memref_slice %arg3[%c44_i32_477, %c0_i32_480] : memref<64x128xf32, #tpu.memory_space<vmem>> -> memref<1x128xf32, #tpu.memory_space<vmem>>
    %979 = tpu.memref_squeeze %978 : memref<1x128xf32, #tpu.memory_space<vmem>> -> memref<128xf32, #tpu.memory_space<vmem>>
    %980 = tpu.memref_slice %arg4[%c44_i32_478] : memref<64x!tpu.dma_semaphore, #tpu.memory_space<semaphore_mem>> -> memref<1x!tpu.dma_semaphore, #tpu.memory_space<semaphore_mem>>
    %981 = tpu.memref_squeeze %980 : memref<1x!tpu.dma_semaphore, #tpu.memory_space<semaphore_mem>> -> memref<!tpu.dma_semaphore, #tpu.memory_space<semaphore_mem>>
    tpu.wait_dma2 semaphore(%981 : memref<!tpu.dma_semaphore, #tpu.memory_space<semaphore_mem>>) src(%977 : memref<128xf32, #tpu.memory_space<any>>) dst(%979 : memref<128xf32, #tpu.memory_space<vmem>>)
    %c45_i32_481 = arith.constant 45 : i32
    %982 = arith.addi %0, %c45_i32_481 : i32
    %983 = arith.index_cast %982 : i32 to index
    %984 = memref.load %arg1[%983] : memref<64xi32, #tpu.memory_space<smem>>
    %c45_i32_482 = arith.constant 45 : i32
    %c45_i32_483 = arith.constant 45 : i32
    %c0_i32_484 = arith.constant 0 : i32
    %985 = tpu.memref_slice %arg2[%984, %c0_i32_484] : memref<50x128xf32, #tpu.memory_space<any>> -> memref<1x128xf32, #tpu.memory_space<any>>
    %986 = tpu.memref_squeeze %985 : memref<1x128xf32, #tpu.memory_space<any>> -> memref<128xf32, #tpu.memory_space<any>>
    %c0_i32_485 = arith.constant 0 : i32
    %987 = tpu.memref_slice %arg3[%c45_i32_482, %c0_i32_485] : memref<64x128xf32, #tpu.memory_space<vmem>> -> memref<1x128xf32, #tpu.memory_space<vmem>>
    %988 = tpu.memref_squeeze %987 : memref<1x128xf32, #tpu.memory_space<vmem>> -> memref<128xf32, #tpu.memory_space<vmem>>
    %989 = tpu.memref_slice %arg4[%c45_i32_483] : memref<64x!tpu.dma_semaphore, #tpu.memory_space<semaphore_mem>> -> memref<1x!tpu.dma_semaphore, #tpu.memory_space<semaphore_mem>>
    %990 = tpu.memref_squeeze %989 : memref<1x!tpu.dma_semaphore, #tpu.memory_space<semaphore_mem>> -> memref<!tpu.dma_semaphore, #tpu.memory_space<semaphore_mem>>
    tpu.wait_dma2 semaphore(%990 : memref<!tpu.dma_semaphore, #tpu.memory_space<semaphore_mem>>) src(%986 : memref<128xf32, #tpu.memory_space<any>>) dst(%988 : memref<128xf32, #tpu.memory_space<vmem>>)
    %c46_i32_486 = arith.constant 46 : i32
    %991 = arith.addi %0, %c46_i32_486 : i32
    %992 = arith.index_cast %991 : i32 to index
    %993 = memref.load %arg1[%992] : memref<64xi32, #tpu.memory_space<smem>>
    %c46_i32_487 = arith.constant 46 : i32
    %c46_i32_488 = arith.constant 46 : i32
    %c0_i32_489 = arith.constant 0 : i32
    %994 = tpu.memref_slice %arg2[%993, %c0_i32_489] : memref<50x128xf32, #tpu.memory_space<any>> -> memref<1x128xf32, #tpu.memory_space<any>>
    %995 = tpu.memref_squeeze %994 : memref<1x128xf32, #tpu.memory_space<any>> -> memref<128xf32, #tpu.memory_space<any>>
    %c0_i32_490 = arith.constant 0 : i32
    %996 = tpu.memref_slice %arg3[%c46_i32_487, %c0_i32_490] : memref<64x128xf32, #tpu.memory_space<vmem>> -> memref<1x128xf32, #tpu.memory_space<vmem>>
    %997 = tpu.memref_squeeze %996 : memref<1x128xf32, #tpu.memory_space<vmem>> -> memref<128xf32, #tpu.memory_space<vmem>>
    %998 = tpu.memref_slice %arg4[%c46_i32_488] : memref<64x!tpu.dma_semaphore, #tpu.memory_space<semaphore_mem>> -> memref<1x!tpu.dma_semaphore, #tpu.memory_space<semaphore_mem>>
    %999 = tpu.memref_squeeze %998 : memref<1x!tpu.dma_semaphore, #tpu.memory_space<semaphore_mem>> -> memref<!tpu.dma_semaphore, #tpu.memory_space<semaphore_mem>>
    tpu.wait_dma2 semaphore(%999 : memref<!tpu.dma_semaphore, #tpu.memory_space<semaphore_mem>>) src(%995 : memref<128xf32, #tpu.memory_space<any>>) dst(%997 : memref<128xf32, #tpu.memory_space<vmem>>)
    %c47_i32_491 = arith.constant 47 : i32
    %1000 = arith.addi %0, %c47_i32_491 : i32
    %1001 = arith.index_cast %1000 : i32 to index
    %1002 = memref.load %arg1[%1001] : memref<64xi32, #tpu.memory_space<smem>>
    %c47_i32_492 = arith.constant 47 : i32
    %c47_i32_493 = arith.constant 47 : i32
    %c0_i32_494 = arith.constant 0 : i32
    %1003 = tpu.memref_slice %arg2[%1002, %c0_i32_494] : memref<50x128xf32, #tpu.memory_space<any>> -> memref<1x128xf32, #tpu.memory_space<any>>
    %1004 = tpu.memref_squeeze %1003 : memref<1x128xf32, #tpu.memory_space<any>> -> memref<128xf32, #tpu.memory_space<any>>
    %c0_i32_495 = arith.constant 0 : i32
    %1005 = tpu.memref_slice %arg3[%c47_i32_492, %c0_i32_495] : memref<64x128xf32, #tpu.memory_space<vmem>> -> memref<1x128xf32, #tpu.memory_space<vmem>>
    %1006 = tpu.memref_squeeze %1005 : memref<1x128xf32, #tpu.memory_space<vmem>> -> memref<128xf32, #tpu.memory_space<vmem>>
    %1007 = tpu.memref_slice %arg4[%c47_i32_493] : memref<64x!tpu.dma_semaphore, #tpu.memory_space<semaphore_mem>> -> memref<1x!tpu.dma_semaphore, #tpu.memory_space<semaphore_mem>>
    %1008 = tpu.memref_squeeze %1007 : memref<1x!tpu.dma_semaphore, #tpu.memory_space<semaphore_mem>> -> memref<!tpu.dma_semaphore, #tpu.memory_space<semaphore_mem>>
    tpu.wait_dma2 semaphore(%1008 : memref<!tpu.dma_semaphore, #tpu.memory_space<semaphore_mem>>) src(%1004 : memref<128xf32, #tpu.memory_space<any>>) dst(%1006 : memref<128xf32, #tpu.memory_space<vmem>>)
    %c48_i32_496 = arith.constant 48 : i32
    %1009 = arith.addi %0, %c48_i32_496 : i32
    %1010 = arith.index_cast %1009 : i32 to index
    %1011 = memref.load %arg1[%1010] : memref<64xi32, #tpu.memory_space<smem>>
    %c48_i32_497 = arith.constant 48 : i32
    %c48_i32_498 = arith.constant 48 : i32
    %c0_i32_499 = arith.constant 0 : i32
    %1012 = tpu.memref_slice %arg2[%1011, %c0_i32_499] : memref<50x128xf32, #tpu.memory_space<any>> -> memref<1x128xf32, #tpu.memory_space<any>>
    %1013 = tpu.memref_squeeze %1012 : memref<1x128xf32, #tpu.memory_space<any>> -> memref<128xf32, #tpu.memory_space<any>>
    %c0_i32_500 = arith.constant 0 : i32
    %1014 = tpu.memref_slice %arg3[%c48_i32_497, %c0_i32_500] : memref<64x128xf32, #tpu.memory_space<vmem>> -> memref<1x128xf32, #tpu.memory_space<vmem>>
    %1015 = tpu.memref_squeeze %1014 : memref<1x128xf32, #tpu.memory_space<vmem>> -> memref<128xf32, #tpu.memory_space<vmem>>
    %1016 = tpu.memref_slice %arg4[%c48_i32_498] : memref<64x!tpu.dma_semaphore, #tpu.memory_space<semaphore_mem>> -> memref<1x!tpu.dma_semaphore, #tpu.memory_space<semaphore_mem>>
    %1017 = tpu.memref_squeeze %1016 : memref<1x!tpu.dma_semaphore, #tpu.memory_space<semaphore_mem>> -> memref<!tpu.dma_semaphore, #tpu.memory_space<semaphore_mem>>
    tpu.wait_dma2 semaphore(%1017 : memref<!tpu.dma_semaphore, #tpu.memory_space<semaphore_mem>>) src(%1013 : memref<128xf32, #tpu.memory_space<any>>) dst(%1015 : memref<128xf32, #tpu.memory_space<vmem>>)
    %c49_i32_501 = arith.constant 49 : i32
    %1018 = arith.addi %0, %c49_i32_501 : i32
    %1019 = arith.index_cast %1018 : i32 to index
    %1020 = memref.load %arg1[%1019] : memref<64xi32, #tpu.memory_space<smem>>
    %c49_i32_502 = arith.constant 49 : i32
    %c49_i32_503 = arith.constant 49 : i32
    %c0_i32_504 = arith.constant 0 : i32
    %1021 = tpu.memref_slice %arg2[%1020, %c0_i32_504] : memref<50x128xf32, #tpu.memory_space<any>> -> memref<1x128xf32, #tpu.memory_space<any>>
    %1022 = tpu.memref_squeeze %1021 : memref<1x128xf32, #tpu.memory_space<any>> -> memref<128xf32, #tpu.memory_space<any>>
    %c0_i32_505 = arith.constant 0 : i32
    %1023 = tpu.memref_slice %arg3[%c49_i32_502, %c0_i32_505] : memref<64x128xf32, #tpu.memory_space<vmem>> -> memref<1x128xf32, #tpu.memory_space<vmem>>
    %1024 = tpu.memref_squeeze %1023 : memref<1x128xf32, #tpu.memory_space<vmem>> -> memref<128xf32, #tpu.memory_space<vmem>>
    %1025 = tpu.memref_slice %arg4[%c49_i32_503] : memref<64x!tpu.dma_semaphore, #tpu.memory_space<semaphore_mem>> -> memref<1x!tpu.dma_semaphore, #tpu.memory_space<semaphore_mem>>
    %1026 = tpu.memref_squeeze %1025 : memref<1x!tpu.dma_semaphore, #tpu.memory_space<semaphore_mem>> -> memref<!tpu.dma_semaphore, #tpu.memory_space<semaphore_mem>>
    tpu.wait_dma2 semaphore(%1026 : memref<!tpu.dma_semaphore, #tpu.memory_space<semaphore_mem>>) src(%1022 : memref<128xf32, #tpu.memory_space<any>>) dst(%1024 : memref<128xf32, #tpu.memory_space<vmem>>)
    %c50_i32_506 = arith.constant 50 : i32
    %1027 = arith.addi %0, %c50_i32_506 : i32
    %1028 = arith.index_cast %1027 : i32 to index
    %1029 = memref.load %arg1[%1028] : memref<64xi32, #tpu.memory_space<smem>>
    %c50_i32_507 = arith.constant 50 : i32
    %c50_i32_508 = arith.constant 50 : i32
    %c0_i32_509 = arith.constant 0 : i32
    %1030 = tpu.memref_slice %arg2[%1029, %c0_i32_509] : memref<50x128xf32, #tpu.memory_space<any>> -> memref<1x128xf32, #tpu.memory_space<any>>
    %1031 = tpu.memref_squeeze %1030 : memref<1x128xf32, #tpu.memory_space<any>> -> memref<128xf32, #tpu.memory_space<any>>
    %c0_i32_510 = arith.constant 0 : i32
    %1032 = tpu.memref_slice %arg3[%c50_i32_507, %c0_i32_510] : memref<64x128xf32, #tpu.memory_space<vmem>> -> memref<1x128xf32, #tpu.memory_space<vmem>>
    %1033 = tpu.memref_squeeze %1032 : memref<1x128xf32, #tpu.memory_space<vmem>> -> memref<128xf32, #tpu.memory_space<vmem>>
    %1034 = tpu.memref_slice %arg4[%c50_i32_508] : memref<64x!tpu.dma_semaphore, #tpu.memory_space<semaphore_mem>> -> memref<1x!tpu.dma_semaphore, #tpu.memory_space<semaphore_mem>>
    %1035 = tpu.memref_squeeze %1034 : memref<1x!tpu.dma_semaphore, #tpu.memory_space<semaphore_mem>> -> memref<!tpu.dma_semaphore, #tpu.memory_space<semaphore_mem>>
    tpu.wait_dma2 semaphore(%1035 : memref<!tpu.dma_semaphore, #tpu.memory_space<semaphore_mem>>) src(%1031 : memref<128xf32, #tpu.memory_space<any>>) dst(%1033 : memref<128xf32, #tpu.memory_space<vmem>>)
    %c51_i32_511 = arith.constant 51 : i32
    %1036 = arith.addi %0, %c51_i32_511 : i32
    %1037 = arith.index_cast %1036 : i32 to index
    %1038 = memref.load %arg1[%1037] : memref<64xi32, #tpu.memory_space<smem>>
    %c51_i32_512 = arith.constant 51 : i32
    %c51_i32_513 = arith.constant 51 : i32
    %c0_i32_514 = arith.constant 0 : i32
    %1039 = tpu.memref_slice %arg2[%1038, %c0_i32_514] : memref<50x128xf32, #tpu.memory_space<any>> -> memref<1x128xf32, #tpu.memory_space<any>>
    %1040 = tpu.memref_squeeze %1039 : memref<1x128xf32, #tpu.memory_space<any>> -> memref<128xf32, #tpu.memory_space<any>>
    %c0_i32_515 = arith.constant 0 : i32
    %1041 = tpu.memref_slice %arg3[%c51_i32_512, %c0_i32_515] : memref<64x128xf32, #tpu.memory_space<vmem>> -> memref<1x128xf32, #tpu.memory_space<vmem>>
    %1042 = tpu.memref_squeeze %1041 : memref<1x128xf32, #tpu.memory_space<vmem>> -> memref<128xf32, #tpu.memory_space<vmem>>
    %1043 = tpu.memref_slice %arg4[%c51_i32_513] : memref<64x!tpu.dma_semaphore, #tpu.memory_space<semaphore_mem>> -> memref<1x!tpu.dma_semaphore, #tpu.memory_space<semaphore_mem>>
    %1044 = tpu.memref_squeeze %1043 : memref<1x!tpu.dma_semaphore, #tpu.memory_space<semaphore_mem>> -> memref<!tpu.dma_semaphore, #tpu.memory_space<semaphore_mem>>
    tpu.wait_dma2 semaphore(%1044 : memref<!tpu.dma_semaphore, #tpu.memory_space<semaphore_mem>>) src(%1040 : memref<128xf32, #tpu.memory_space<any>>) dst(%1042 : memref<128xf32, #tpu.memory_space<vmem>>)
    %c52_i32_516 = arith.constant 52 : i32
    %1045 = arith.addi %0, %c52_i32_516 : i32
    %1046 = arith.index_cast %1045 : i32 to index
    %1047 = memref.load %arg1[%1046] : memref<64xi32, #tpu.memory_space<smem>>
    %c52_i32_517 = arith.constant 52 : i32
    %c52_i32_518 = arith.constant 52 : i32
    %c0_i32_519 = arith.constant 0 : i32
    %1048 = tpu.memref_slice %arg2[%1047, %c0_i32_519] : memref<50x128xf32, #tpu.memory_space<any>> -> memref<1x128xf32, #tpu.memory_space<any>>
    %1049 = tpu.memref_squeeze %1048 : memref<1x128xf32, #tpu.memory_space<any>> -> memref<128xf32, #tpu.memory_space<any>>
    %c0_i32_520 = arith.constant 0 : i32
    %1050 = tpu.memref_slice %arg3[%c52_i32_517, %c0_i32_520] : memref<64x128xf32, #tpu.memory_space<vmem>> -> memref<1x128xf32, #tpu.memory_space<vmem>>
    %1051 = tpu.memref_squeeze %1050 : memref<1x128xf32, #tpu.memory_space<vmem>> -> memref<128xf32, #tpu.memory_space<vmem>>
    %1052 = tpu.memref_slice %arg4[%c52_i32_518] : memref<64x!tpu.dma_semaphore, #tpu.memory_space<semaphore_mem>> -> memref<1x!tpu.dma_semaphore, #tpu.memory_space<semaphore_mem>>
    %1053 = tpu.memref_squeeze %1052 : memref<1x!tpu.dma_semaphore, #tpu.memory_space<semaphore_mem>> -> memref<!tpu.dma_semaphore, #tpu.memory_space<semaphore_mem>>
    tpu.wait_dma2 semaphore(%1053 : memref<!tpu.dma_semaphore, #tpu.memory_space<semaphore_mem>>) src(%1049 : memref<128xf32, #tpu.memory_space<any>>) dst(%1051 : memref<128xf32, #tpu.memory_space<vmem>>)
    %c53_i32_521 = arith.constant 53 : i32
    %1054 = arith.addi %0, %c53_i32_521 : i32
    %1055 = arith.index_cast %1054 : i32 to index
    %1056 = memref.load %arg1[%1055] : memref<64xi32, #tpu.memory_space<smem>>
    %c53_i32_522 = arith.constant 53 : i32
    %c53_i32_523 = arith.constant 53 : i32
    %c0_i32_524 = arith.constant 0 : i32
    %1057 = tpu.memref_slice %arg2[%1056, %c0_i32_524] : memref<50x128xf32, #tpu.memory_space<any>> -> memref<1x128xf32, #tpu.memory_space<any>>
    %1058 = tpu.memref_squeeze %1057 : memref<1x128xf32, #tpu.memory_space<any>> -> memref<128xf32, #tpu.memory_space<any>>
    %c0_i32_525 = arith.constant 0 : i32
    %1059 = tpu.memref_slice %arg3[%c53_i32_522, %c0_i32_525] : memref<64x128xf32, #tpu.memory_space<vmem>> -> memref<1x128xf32, #tpu.memory_space<vmem>>
    %1060 = tpu.memref_squeeze %1059 : memref<1x128xf32, #tpu.memory_space<vmem>> -> memref<128xf32, #tpu.memory_space<vmem>>
    %1061 = tpu.memref_slice %arg4[%c53_i32_523] : memref<64x!tpu.dma_semaphore, #tpu.memory_space<semaphore_mem>> -> memref<1x!tpu.dma_semaphore, #tpu.memory_space<semaphore_mem>>
    %1062 = tpu.memref_squeeze %1061 : memref<1x!tpu.dma_semaphore, #tpu.memory_space<semaphore_mem>> -> memref<!tpu.dma_semaphore, #tpu.memory_space<semaphore_mem>>
    tpu.wait_dma2 semaphore(%1062 : memref<!tpu.dma_semaphore, #tpu.memory_space<semaphore_mem>>) src(%1058 : memref<128xf32, #tpu.memory_space<any>>) dst(%1060 : memref<128xf32, #tpu.memory_space<vmem>>)
    %c54_i32_526 = arith.constant 54 : i32
    %1063 = arith.addi %0, %c54_i32_526 : i32
    %1064 = arith.index_cast %1063 : i32 to index
    %1065 = memref.load %arg1[%1064] : memref<64xi32, #tpu.memory_space<smem>>
    %c54_i32_527 = arith.constant 54 : i32
    %c54_i32_528 = arith.constant 54 : i32
    %c0_i32_529 = arith.constant 0 : i32
    %1066 = tpu.memref_slice %arg2[%1065, %c0_i32_529] : memref<50x128xf32, #tpu.memory_space<any>> -> memref<1x128xf32, #tpu.memory_space<any>>
    %1067 = tpu.memref_squeeze %1066 : memref<1x128xf32, #tpu.memory_space<any>> -> memref<128xf32, #tpu.memory_space<any>>
    %c0_i32_530 = arith.constant 0 : i32
    %1068 = tpu.memref_slice %arg3[%c54_i32_527, %c0_i32_530] : memref<64x128xf32, #tpu.memory_space<vmem>> -> memref<1x128xf32, #tpu.memory_space<vmem>>
    %1069 = tpu.memref_squeeze %1068 : memref<1x128xf32, #tpu.memory_space<vmem>> -> memref<128xf32, #tpu.memory_space<vmem>>
    %1070 = tpu.memref_slice %arg4[%c54_i32_528] : memref<64x!tpu.dma_semaphore, #tpu.memory_space<semaphore_mem>> -> memref<1x!tpu.dma_semaphore, #tpu.memory_space<semaphore_mem>>
    %1071 = tpu.memref_squeeze %1070 : memref<1x!tpu.dma_semaphore, #tpu.memory_space<semaphore_mem>> -> memref<!tpu.dma_semaphore, #tpu.memory_space<semaphore_mem>>
    tpu.wait_dma2 semaphore(%1071 : memref<!tpu.dma_semaphore, #tpu.memory_space<semaphore_mem>>) src(%1067 : memref<128xf32, #tpu.memory_space<any>>) dst(%1069 : memref<128xf32, #tpu.memory_space<vmem>>)
    %c55_i32_531 = arith.constant 55 : i32
    %1072 = arith.addi %0, %c55_i32_531 : i32
    %1073 = arith.index_cast %1072 : i32 to index
    %1074 = memref.load %arg1[%1073] : memref<64xi32, #tpu.memory_space<smem>>
    %c55_i32_532 = arith.constant 55 : i32
    %c55_i32_533 = arith.constant 55 : i32
    %c0_i32_534 = arith.constant 0 : i32
    %1075 = tpu.memref_slice %arg2[%1074, %c0_i32_534] : memref<50x128xf32, #tpu.memory_space<any>> -> memref<1x128xf32, #tpu.memory_space<any>>
    %1076 = tpu.memref_squeeze %1075 : memref<1x128xf32, #tpu.memory_space<any>> -> memref<128xf32, #tpu.memory_space<any>>
    %c0_i32_535 = arith.constant 0 : i32
    %1077 = tpu.memref_slice %arg3[%c55_i32_532, %c0_i32_535] : memref<64x128xf32, #tpu.memory_space<vmem>> -> memref<1x128xf32, #tpu.memory_space<vmem>>
    %1078 = tpu.memref_squeeze %1077 : memref<1x128xf32, #tpu.memory_space<vmem>> -> memref<128xf32, #tpu.memory_space<vmem>>
    %1079 = tpu.memref_slice %arg4[%c55_i32_533] : memref<64x!tpu.dma_semaphore, #tpu.memory_space<semaphore_mem>> -> memref<1x!tpu.dma_semaphore, #tpu.memory_space<semaphore_mem>>
    %1080 = tpu.memref_squeeze %1079 : memref<1x!tpu.dma_semaphore, #tpu.memory_space<semaphore_mem>> -> memref<!tpu.dma_semaphore, #tpu.memory_space<semaphore_mem>>
    tpu.wait_dma2 semaphore(%1080 : memref<!tpu.dma_semaphore, #tpu.memory_space<semaphore_mem>>) src(%1076 : memref<128xf32, #tpu.memory_space<any>>) dst(%1078 : memref<128xf32, #tpu.memory_space<vmem>>)
    %c56_i32_536 = arith.constant 56 : i32
    %1081 = arith.addi %0, %c56_i32_536 : i32
    %1082 = arith.index_cast %1081 : i32 to index
    %1083 = memref.load %arg1[%1082] : memref<64xi32, #tpu.memory_space<smem>>
    %c56_i32_537 = arith.constant 56 : i32
    %c56_i32_538 = arith.constant 56 : i32
    %c0_i32_539 = arith.constant 0 : i32
    %1084 = tpu.memref_slice %arg2[%1083, %c0_i32_539] : memref<50x128xf32, #tpu.memory_space<any>> -> memref<1x128xf32, #tpu.memory_space<any>>
    %1085 = tpu.memref_squeeze %1084 : memref<1x128xf32, #tpu.memory_space<any>> -> memref<128xf32, #tpu.memory_space<any>>
    %c0_i32_540 = arith.constant 0 : i32
    %1086 = tpu.memref_slice %arg3[%c56_i32_537, %c0_i32_540] : memref<64x128xf32, #tpu.memory_space<vmem>> -> memref<1x128xf32, #tpu.memory_space<vmem>>
    %1087 = tpu.memref_squeeze %1086 : memref<1x128xf32, #tpu.memory_space<vmem>> -> memref<128xf32, #tpu.memory_space<vmem>>
    %1088 = tpu.memref_slice %arg4[%c56_i32_538] : memref<64x!tpu.dma_semaphore, #tpu.memory_space<semaphore_mem>> -> memref<1x!tpu.dma_semaphore, #tpu.memory_space<semaphore_mem>>
    %1089 = tpu.memref_squeeze %1088 : memref<1x!tpu.dma_semaphore, #tpu.memory_space<semaphore_mem>> -> memref<!tpu.dma_semaphore, #tpu.memory_space<semaphore_mem>>
    tpu.wait_dma2 semaphore(%1089 : memref<!tpu.dma_semaphore, #tpu.memory_space<semaphore_mem>>) src(%1085 : memref<128xf32, #tpu.memory_space<any>>) dst(%1087 : memref<128xf32, #tpu.memory_space<vmem>>)
    %c57_i32_541 = arith.constant 57 : i32
    %1090 = arith.addi %0, %c57_i32_541 : i32
    %1091 = arith.index_cast %1090 : i32 to index
    %1092 = memref.load %arg1[%1091] : memref<64xi32, #tpu.memory_space<smem>>
    %c57_i32_542 = arith.constant 57 : i32
    %c57_i32_543 = arith.constant 57 : i32
    %c0_i32_544 = arith.constant 0 : i32
    %1093 = tpu.memref_slice %arg2[%1092, %c0_i32_544] : memref<50x128xf32, #tpu.memory_space<any>> -> memref<1x128xf32, #tpu.memory_space<any>>
    %1094 = tpu.memref_squeeze %1093 : memref<1x128xf32, #tpu.memory_space<any>> -> memref<128xf32, #tpu.memory_space<any>>
    %c0_i32_545 = arith.constant 0 : i32
    %1095 = tpu.memref_slice %arg3[%c57_i32_542, %c0_i32_545] : memref<64x128xf32, #tpu.memory_space<vmem>> -> memref<1x128xf32, #tpu.memory_space<vmem>>
    %1096 = tpu.memref_squeeze %1095 : memref<1x128xf32, #tpu.memory_space<vmem>> -> memref<128xf32, #tpu.memory_space<vmem>>
    %1097 = tpu.memref_slice %arg4[%c57_i32_543] : memref<64x!tpu.dma_semaphore, #tpu.memory_space<semaphore_mem>> -> memref<1x!tpu.dma_semaphore, #tpu.memory_space<semaphore_mem>>
    %1098 = tpu.memref_squeeze %1097 : memref<1x!tpu.dma_semaphore, #tpu.memory_space<semaphore_mem>> -> memref<!tpu.dma_semaphore, #tpu.memory_space<semaphore_mem>>
    tpu.wait_dma2 semaphore(%1098 : memref<!tpu.dma_semaphore, #tpu.memory_space<semaphore_mem>>) src(%1094 : memref<128xf32, #tpu.memory_space<any>>) dst(%1096 : memref<128xf32, #tpu.memory_space<vmem>>)
    %c58_i32_546 = arith.constant 58 : i32
    %1099 = arith.addi %0, %c58_i32_546 : i32
    %1100 = arith.index_cast %1099 : i32 to index
    %1101 = memref.load %arg1[%1100] : memref<64xi32, #tpu.memory_space<smem>>
    %c58_i32_547 = arith.constant 58 : i32
    %c58_i32_548 = arith.constant 58 : i32
    %c0_i32_549 = arith.constant 0 : i32
    %1102 = tpu.memref_slice %arg2[%1101, %c0_i32_549] : memref<50x128xf32, #tpu.memory_space<any>> -> memref<1x128xf32, #tpu.memory_space<any>>
    %1103 = tpu.memref_squeeze %1102 : memref<1x128xf32, #tpu.memory_space<any>> -> memref<128xf32, #tpu.memory_space<any>>
    %c0_i32_550 = arith.constant 0 : i32
    %1104 = tpu.memref_slice %arg3[%c58_i32_547, %c0_i32_550] : memref<64x128xf32, #tpu.memory_space<vmem>> -> memref<1x128xf32, #tpu.memory_space<vmem>>
    %1105 = tpu.memref_squeeze %1104 : memref<1x128xf32, #tpu.memory_space<vmem>> -> memref<128xf32, #tpu.memory_space<vmem>>
    %1106 = tpu.memref_slice %arg4[%c58_i32_548] : memref<64x!tpu.dma_semaphore, #tpu.memory_space<semaphore_mem>> -> memref<1x!tpu.dma_semaphore, #tpu.memory_space<semaphore_mem>>
    %1107 = tpu.memref_squeeze %1106 : memref<1x!tpu.dma_semaphore, #tpu.memory_space<semaphore_mem>> -> memref<!tpu.dma_semaphore, #tpu.memory_space<semaphore_mem>>
    tpu.wait_dma2 semaphore(%1107 : memref<!tpu.dma_semaphore, #tpu.memory_space<semaphore_mem>>) src(%1103 : memref<128xf32, #tpu.memory_space<any>>) dst(%1105 : memref<128xf32, #tpu.memory_space<vmem>>)
    %c59_i32_551 = arith.constant 59 : i32
    %1108 = arith.addi %0, %c59_i32_551 : i32
    %1109 = arith.index_cast %1108 : i32 to index
    %1110 = memref.load %arg1[%1109] : memref<64xi32, #tpu.memory_space<smem>>
    %c59_i32_552 = arith.constant 59 : i32
    %c59_i32_553 = arith.constant 59 : i32
    %c0_i32_554 = arith.constant 0 : i32
    %1111 = tpu.memref_slice %arg2[%1110, %c0_i32_554] : memref<50x128xf32, #tpu.memory_space<any>> -> memref<1x128xf32, #tpu.memory_space<any>>
    %1112 = tpu.memref_squeeze %1111 : memref<1x128xf32, #tpu.memory_space<any>> -> memref<128xf32, #tpu.memory_space<any>>
    %c0_i32_555 = arith.constant 0 : i32
    %1113 = tpu.memref_slice %arg3[%c59_i32_552, %c0_i32_555] : memref<64x128xf32, #tpu.memory_space<vmem>> -> memref<1x128xf32, #tpu.memory_space<vmem>>
    %1114 = tpu.memref_squeeze %1113 : memref<1x128xf32, #tpu.memory_space<vmem>> -> memref<128xf32, #tpu.memory_space<vmem>>
    %1115 = tpu.memref_slice %arg4[%c59_i32_553] : memref<64x!tpu.dma_semaphore, #tpu.memory_space<semaphore_mem>> -> memref<1x!tpu.dma_semaphore, #tpu.memory_space<semaphore_mem>>
    %1116 = tpu.memref_squeeze %1115 : memref<1x!tpu.dma_semaphore, #tpu.memory_space<semaphore_mem>> -> memref<!tpu.dma_semaphore, #tpu.memory_space<semaphore_mem>>
    tpu.wait_dma2 semaphore(%1116 : memref<!tpu.dma_semaphore, #tpu.memory_space<semaphore_mem>>) src(%1112 : memref<128xf32, #tpu.memory_space<any>>) dst(%1114 : memref<128xf32, #tpu.memory_space<vmem>>)
    %c60_i32_556 = arith.constant 60 : i32
    %1117 = arith.addi %0, %c60_i32_556 : i32
    %1118 = arith.index_cast %1117 : i32 to index
    %1119 = memref.load %arg1[%1118] : memref<64xi32, #tpu.memory_space<smem>>
    %c60_i32_557 = arith.constant 60 : i32
    %c60_i32_558 = arith.constant 60 : i32
    %c0_i32_559 = arith.constant 0 : i32
    %1120 = tpu.memref_slice %arg2[%1119, %c0_i32_559] : memref<50x128xf32, #tpu.memory_space<any>> -> memref<1x128xf32, #tpu.memory_space<any>>
    %1121 = tpu.memref_squeeze %1120 : memref<1x128xf32, #tpu.memory_space<any>> -> memref<128xf32, #tpu.memory_space<any>>
    %c0_i32_560 = arith.constant 0 : i32
    %1122 = tpu.memref_slice %arg3[%c60_i32_557, %c0_i32_560] : memref<64x128xf32, #tpu.memory_space<vmem>> -> memref<1x128xf32, #tpu.memory_space<vmem>>
    %1123 = tpu.memref_squeeze %1122 : memref<1x128xf32, #tpu.memory_space<vmem>> -> memref<128xf32, #tpu.memory_space<vmem>>
    %1124 = tpu.memref_slice %arg4[%c60_i32_558] : memref<64x!tpu.dma_semaphore, #tpu.memory_space<semaphore_mem>> -> memref<1x!tpu.dma_semaphore, #tpu.memory_space<semaphore_mem>>
    %1125 = tpu.memref_squeeze %1124 : memref<1x!tpu.dma_semaphore, #tpu.memory_space<semaphore_mem>> -> memref<!tpu.dma_semaphore, #tpu.memory_space<semaphore_mem>>
    tpu.wait_dma2 semaphore(%1125 : memref<!tpu.dma_semaphore, #tpu.memory_space<semaphore_mem>>) src(%1121 : memref<128xf32, #tpu.memory_space<any>>) dst(%1123 : memref<128xf32, #tpu.memory_space<vmem>>)
    %c61_i32_561 = arith.constant 61 : i32
    %1126 = arith.addi %0, %c61_i32_561 : i32
    %1127 = arith.index_cast %1126 : i32 to index
    %1128 = memref.load %arg1[%1127] : memref<64xi32, #tpu.memory_space<smem>>
    %c61_i32_562 = arith.constant 61 : i32
    %c61_i32_563 = arith.constant 61 : i32
    %c0_i32_564 = arith.constant 0 : i32
    %1129 = tpu.memref_slice %arg2[%1128, %c0_i32_564] : memref<50x128xf32, #tpu.memory_space<any>> -> memref<1x128xf32, #tpu.memory_space<any>>
    %1130 = tpu.memref_squeeze %1129 : memref<1x128xf32, #tpu.memory_space<any>> -> memref<128xf32, #tpu.memory_space<any>>
    %c0_i32_565 = arith.constant 0 : i32
    %1131 = tpu.memref_slice %arg3[%c61_i32_562, %c0_i32_565] : memref<64x128xf32, #tpu.memory_space<vmem>> -> memref<1x128xf32, #tpu.memory_space<vmem>>
    %1132 = tpu.memref_squeeze %1131 : memref<1x128xf32, #tpu.memory_space<vmem>> -> memref<128xf32, #tpu.memory_space<vmem>>
    %1133 = tpu.memref_slice %arg4[%c61_i32_563] : memref<64x!tpu.dma_semaphore, #tpu.memory_space<semaphore_mem>> -> memref<1x!tpu.dma_semaphore, #tpu.memory_space<semaphore_mem>>
    %1134 = tpu.memref_squeeze %1133 : memref<1x!tpu.dma_semaphore, #tpu.memory_space<semaphore_mem>> -> memref<!tpu.dma_semaphore, #tpu.memory_space<semaphore_mem>>
    tpu.wait_dma2 semaphore(%1134 : memref<!tpu.dma_semaphore, #tpu.memory_space<semaphore_mem>>) src(%1130 : memref<128xf32, #tpu.memory_space<any>>) dst(%1132 : memref<128xf32, #tpu.memory_space<vmem>>)
    %c62_i32_566 = arith.constant 62 : i32
    %1135 = arith.addi %0, %c62_i32_566 : i32
    %1136 = arith.index_cast %1135 : i32 to index
    %1137 = memref.load %arg1[%1136] : memref<64xi32, #tpu.memory_space<smem>>
    %c62_i32_567 = arith.constant 62 : i32
    %c62_i32_568 = arith.constant 62 : i32
    %c0_i32_569 = arith.constant 0 : i32
    %1138 = tpu.memref_slice %arg2[%1137, %c0_i32_569] : memref<50x128xf32, #tpu.memory_space<any>> -> memref<1x128xf32, #tpu.memory_space<any>>
    %1139 = tpu.memref_squeeze %1138 : memref<1x128xf32, #tpu.memory_space<any>> -> memref<128xf32, #tpu.memory_space<any>>
    %c0_i32_570 = arith.constant 0 : i32
    %1140 = tpu.memref_slice %arg3[%c62_i32_567, %c0_i32_570] : memref<64x128xf32, #tpu.memory_space<vmem>> -> memref<1x128xf32, #tpu.memory_space<vmem>>
    %1141 = tpu.memref_squeeze %1140 : memref<1x128xf32, #tpu.memory_space<vmem>> -> memref<128xf32, #tpu.memory_space<vmem>>
    %1142 = tpu.memref_slice %arg4[%c62_i32_568] : memref<64x!tpu.dma_semaphore, #tpu.memory_space<semaphore_mem>> -> memref<1x!tpu.dma_semaphore, #tpu.memory_space<semaphore_mem>>
    %1143 = tpu.memref_squeeze %1142 : memref<1x!tpu.dma_semaphore, #tpu.memory_space<semaphore_mem>> -> memref<!tpu.dma_semaphore, #tpu.memory_space<semaphore_mem>>
    tpu.wait_dma2 semaphore(%1143 : memref<!tpu.dma_semaphore, #tpu.memory_space<semaphore_mem>>) src(%1139 : memref<128xf32, #tpu.memory_space<any>>) dst(%1141 : memref<128xf32, #tpu.memory_space<vmem>>)
    %c63_i32_571 = arith.constant 63 : i32
    %1144 = arith.addi %0, %c63_i32_571 : i32
    %1145 = arith.index_cast %1144 : i32 to index
    %1146 = memref.load %arg1[%1145] : memref<64xi32, #tpu.memory_space<smem>>
    %c63_i32_572 = arith.constant 63 : i32
    %c63_i32_573 = arith.constant 63 : i32
    %c0_i32_574 = arith.constant 0 : i32
    %1147 = tpu.memref_slice %arg2[%1146, %c0_i32_574] : memref<50x128xf32, #tpu.memory_space<any>> -> memref<1x128xf32, #tpu.memory_space<any>>
    %1148 = tpu.memref_squeeze %1147 : memref<1x128xf32, #tpu.memory_space<any>> -> memref<128xf32, #tpu.memory_space<any>>
    %c0_i32_575 = arith.constant 0 : i32
    %1149 = tpu.memref_slice %arg3[%c63_i32_572, %c0_i32_575] : memref<64x128xf32, #tpu.memory_space<vmem>> -> memref<1x128xf32, #tpu.memory_space<vmem>>
    %1150 = tpu.memref_squeeze %1149 : memref<1x128xf32, #tpu.memory_space<vmem>> -> memref<128xf32, #tpu.memory_space<vmem>>
    %1151 = tpu.memref_slice %arg4[%c63_i32_573] : memref<64x!tpu.dma_semaphore, #tpu.memory_space<semaphore_mem>> -> memref<1x!tpu.dma_semaphore, #tpu.memory_space<semaphore_mem>>
    %1152 = tpu.memref_squeeze %1151 : memref<1x!tpu.dma_semaphore, #tpu.memory_space<semaphore_mem>> -> memref<!tpu.dma_semaphore, #tpu.memory_space<semaphore_mem>>
    tpu.wait_dma2 semaphore(%1152 : memref<!tpu.dma_semaphore, #tpu.memory_space<semaphore_mem>>) src(%1148 : memref<128xf32, #tpu.memory_space<any>>) dst(%1150 : memref<128xf32, #tpu.memory_space<vmem>>)
    return
  }
  func.func @transform_1(%arg0: i32, %arg1: memref<64xi32, #tpu.memory_space<smem>>) -> (i32, i32) {
    %c0_i32 = arith.constant 0 : i32
    %c0_i32_0 = arith.constant 0 : i32
    return %arg0, %c0_i32 : i32, i32
  }
}

</mosaic_0001>

<llo_original>
// kernel: tpu_custom_call.1
$region0: #{tpu_custom_call.1}
  #allocation0 [shape = 'u32[]', space=smem, size = 0x4, offset = 0x4, fixed_abs, tag = 'smem constant byte address 0x4 - core index']
  #allocation1 [shape = 'u32[144,128]{1,0:T(1,128)}', space=vmem, size = 0x12000, scoped, tag = 'internal scratch']
  #allocation2 [shape = 's32[64]{0}', space=sflag, size = 0x100, scoped, tag = 'scratch operand']
  #allocation3 [shape = 's32[1]{0}', space=sflag, size = 0x4, scoped, tag = 'scoped memory for tpu_custom_call.1']
  #allocation4 [shape = 'u8[512]{0}', space=smem, size = 0x200, scoped, tag = 'prefetched SMEM operand 0']
  #allocation7 [shape = 's32[]', space=sflag, size = 0x4, offset = 0, fixed_abs, tag = 'sflag constant byte address 0x0 - dummy sync flag']
  #allocation8 [shape = 's32[]', space=sflag, size = 0x4, offset = 0, fixed_abs, tag = 'sflag constant byte address 0x0 - dummy sync flag']
  #allocation9 [shape = 'u32[]', space=smem, size = 0x4, offset = 0x44, fixed_abs, tag = 'smem constant byte address 0x44 - assertion arg 0']
  #allocation10 [shape = 'u32[]', space=smem, size = 0x4, offset = 0x48, fixed_abs, tag = 'smem constant byte address 0x48 - assertion arg 1']
  #allocation11 [shape = 's32[]', space=sflag, size = 0x4, offset = 0, fixed_abs, tag = 'sflag constant byte address 0x0 - dummy sync flag']
  #allocation12 [shape = 's32[]', space=sflag, size = 0x4, offset = 0, fixed_abs, tag = 'sflag constant byte address 0x0 - dummy sync flag']
  #allocation13 [shape = 's32[]', space=sflag, size = 0x4, offset = 0, fixed_abs, tag = 'sflag constant byte address 0x0 - dummy sync flag']
  #allocation14 [shape = 's32[]', space=sflag, size = 0x4, offset = 0, fixed_abs, tag = 'sflag constant byte address 0x0 - dummy sync flag']
  #allocation15 [shape = 's32[]', space=sflag, size = 0x4, offset = 0, fixed_abs, tag = 'sflag constant byte address 0x0 - dummy sync flag']
  #allocation16 [shape = 's32[]', space=sflag, size = 0x4, offset = 0, fixed_abs, tag = 'sflag constant byte address 0x0 - dummy sync flag']
  #allocation17 [shape = 's32[]', space=sflag, size = 0x4, offset = 0, fixed_abs, tag = 'sflag constant byte address 0x0 - dummy sync flag']
  #allocation18 [shape = 's32[]', space=sflag, size = 0x4, offset = 0, fixed_abs, tag = 'sflag constant byte address 0x0 - dummy sync flag']
  #allocation19 [shape = 's32[]', space=sflag, size = 0x4, offset = 0, fixed_abs, tag = 'sflag constant byte address 0x0 - dummy sync flag']
  #allocation20 [shape = 's32[]', space=sflag, size = 0x4, offset = 0, fixed_abs, tag = 'sflag constant byte address 0x0 - dummy sync flag']
  #allocation21 [shape = 's32[]', space=sflag, size = 0x4, offset = 0, fixed_abs, tag = 'sflag constant byte address 0x0 - dummy sync flag']
  #allocation22 [shape = 's32[]', space=sflag, size = 0x4, offset = 0, fixed_abs, tag = 'sflag constant byte address 0x0 - dummy sync flag']
  #allocation23 [shape = 's32[]', space=sflag, size = 0x4, offset = 0, fixed_abs, tag = 'sflag constant byte address 0x0 - dummy sync flag']
  #allocation24 [shape = 's32[]', space=sflag, size = 0x4, offset = 0, fixed_abs, tag = 'sflag constant byte address 0x0 - dummy sync flag']
  #allocation25 [shape = 's32[]', space=sflag, size = 0x4, offset = 0, fixed_abs, tag = 'sflag constant byte address 0x0 - dummy sync flag']
  #allocation26 [shape = 's32[]', space=sflag, size = 0x4, offset = 0, fixed_abs, tag = 'sflag constant byte address 0x0 - dummy sync flag']
  #allocation27 [shape = 's32[]', space=sflag, size = 0x4, offset = 0, fixed_abs, tag = 'sflag constant byte address 0x0 - dummy sync flag']
  #allocation28 [shape = 's32[]', space=sflag, size = 0x4, offset = 0, fixed_abs, tag = 'sflag constant byte address 0x0 - dummy sync flag']
  #allocation29 [shape = 's32[]', space=sflag, size = 0x4, offset = 0, fixed_abs, tag = 'sflag constant byte address 0x0 - dummy sync flag']
  #allocation30 [shape = 's32[]', space=sflag, size = 0x4, offset = 0, fixed_abs, tag = 'sflag constant byte address 0x0 - dummy sync flag']
  #allocation31 [shape = 's32[]', space=sflag, size = 0x4, offset = 0, fixed_abs, tag = 'sflag constant byte address 0x0 - dummy sync flag']
  #allocation32 [shape = 's32[]', space=sflag, size = 0x4, offset = 0, fixed_abs, tag = 'sflag constant byte address 0x0 - dummy sync flag']
  #allocation33 [shape = 's32[]', space=sflag, size = 0x4, offset = 0, fixed_abs, tag = 'sflag constant byte address 0x0 - dummy sync flag']
  #allocation34 [shape = 's32[]', space=sflag, size = 0x4, offset = 0, fixed_abs, tag = 'sflag constant byte address 0x0 - dummy sync flag']
  #allocation35 [shape = 's32[]', space=sflag, size = 0x4, offset = 0, fixed_abs, tag = 'sflag constant byte address 0x0 - dummy sync flag']
  #allocation36 [shape = 's32[]', space=sflag, size = 0x4, offset = 0, fixed_abs, tag = 'sflag constant byte address 0x0 - dummy sync flag']
  #allocation37 [shape = 's32[]', space=sflag, size = 0x4, offset = 0, fixed_abs, tag = 'sflag constant byte address 0x0 - dummy sync flag']
  #allocation38 [shape = 's32[]', space=sflag, size = 0x4, offset = 0, fixed_abs, tag = 'sflag constant byte address 0x0 - dummy sync flag']
  #allocation39 [shape = 's32[]', space=sflag, size = 0x4, offset = 0, fixed_abs, tag = 'sflag constant byte address 0x0 - dummy sync flag']
  #allocation40 [shape = 's32[]', space=sflag, size = 0x4, offset = 0, fixed_abs, tag = 'sflag constant byte address 0x0 - dummy sync flag']
  #allocation41 [shape = 's32[]', space=sflag, size = 0x4, offset = 0, fixed_abs, tag = 'sflag constant byte address 0x0 - dummy sync flag']
  #allocation42 [shape = 's32[]', space=sflag, size = 0x4, offset = 0, fixed_abs, tag = 'sflag constant byte address 0x0 - dummy sync flag']
  #allocation43 [shape = 's32[]', space=sflag, size = 0x4, offset = 0, fixed_abs, tag = 'sflag constant byte address 0x0 - dummy sync flag']
  #allocation44 [shape = 's32[]', space=sflag, size = 0x4, offset = 0, fixed_abs, tag = 'sflag constant byte address 0x0 - dummy sync flag']
  #allocation45 [shape = 's32[]', space=sflag, size = 0x4, offset = 0, fixed_abs, tag = 'sflag constant byte address 0x0 - dummy sync flag']
  #allocation46 [shape = 's32[]', space=sflag, size = 0x4, offset = 0, fixed_abs, tag = 'sflag constant byte address 0x0 - dummy sync flag']
  #allocation47 [shape = 's32[]', space=sflag, size = 0x4, offset = 0, fixed_abs, tag = 'sflag constant byte address 0x0 - dummy sync flag']
  #allocation48 [shape = 's32[]', space=sflag, size = 0x4, offset = 0, fixed_abs, tag = 'sflag constant byte address 0x0 - dummy sync flag']
  #allocation49 [shape = 's32[]', space=sflag, size = 0x4, offset = 0, fixed_abs, tag = 'sflag constant byte address 0x0 - dummy sync flag']
  #allocation50 [shape = 's32[]', space=sflag, size = 0x4, offset = 0, fixed_abs, tag = 'sflag constant byte address 0x0 - dummy sync flag']
  #allocation51 [shape = 's32[]', space=sflag, size = 0x4, offset = 0, fixed_abs, tag = 'sflag constant byte address 0x0 - dummy sync flag']
  #allocation52 [shape = 's32[]', space=sflag, size = 0x4, offset = 0, fixed_abs, tag = 'sflag constant byte address 0x0 - dummy sync flag']
  #allocation53 [shape = 's32[]', space=sflag, size = 0x4, offset = 0, fixed_abs, tag = 'sflag constant byte address 0x0 - dummy sync flag']
  #allocation54 [shape = 's32[]', space=sflag, size = 0x4, offset = 0, fixed_abs, tag = 'sflag constant byte address 0x0 - dummy sync flag']
  #allocation55 [shape = 's32[]', space=sflag, size = 0x4, offset = 0, fixed_abs, tag = 'sflag constant byte address 0x0 - dummy sync flag']
  #allocation56 [shape = 's32[]', space=sflag, size = 0x4, offset = 0, fixed_abs, tag = 'sflag constant byte address 0x0 - dummy sync flag']
  #allocation57 [shape = 's32[]', space=sflag, size = 0x4, offset = 0, fixed_abs, tag = 'sflag constant byte address 0x0 - dummy sync flag']
  #allocation58 [shape = 's32[]', space=sflag, size = 0x4, offset = 0, fixed_abs, tag = 'sflag constant byte address 0x0 - dummy sync flag']
  #allocation59 [shape = 's32[]', space=sflag, size = 0x4, offset = 0, fixed_abs, tag = 'sflag constant byte address 0x0 - dummy sync flag']
  #allocation60 [shape = 's32[]', space=sflag, size = 0x4, offset = 0, fixed_abs, tag = 'sflag constant byte address 0x0 - dummy sync flag']
  #allocation61 [shape = 's32[]', space=sflag, size = 0x4, offset = 0, fixed_abs, tag = 'sflag constant byte address 0x0 - dummy sync flag']
  #allocation62 [shape = 's32[]', space=sflag, size = 0x4, offset = 0, fixed_abs, tag = 'sflag constant byte address 0x0 - dummy sync flag']
  #allocation63 [shape = 's32[]', space=sflag, size = 0x4, offset = 0, fixed_abs, tag = 'sflag constant byte address 0x0 - dummy sync flag']
  #allocation64 [shape = 's32[]', space=sflag, size = 0x4, offset = 0, fixed_abs, tag = 'sflag constant byte address 0x0 - dummy sync flag']
  #allocation65 [shape = 's32[]', space=sflag, size = 0x4, offset = 0, fixed_abs, tag = 'sflag constant byte address 0x0 - dummy sync flag']
  #allocation66 [shape = 's32[]', space=sflag, size = 0x4, offset = 0, fixed_abs, tag = 'sflag constant byte address 0x0 - dummy sync flag']
  #allocation67 [shape = 's32[]', space=sflag, size = 0x4, offset = 0, fixed_abs, tag = 'sflag constant byte address 0x0 - dummy sync flag']
  #allocation68 [shape = 's32[]', space=sflag, size = 0x4, offset = 0, fixed_abs, tag = 'sflag constant byte address 0x0 - dummy sync flag']
  #allocation69 [shape = 's32[]', space=sflag, size = 0x4, offset = 0, fixed_abs, tag = 'sflag constant byte address 0x0 - dummy sync flag']
  #allocation70 [shape = 's32[]', space=sflag, size = 0x4, offset = 0, fixed_abs, tag = 'sflag constant byte address 0x0 - dummy sync flag']
  #allocation71 [shape = 's32[]', space=sflag, size = 0x4, offset = 0, fixed_abs, tag = 'sflag constant byte address 0x0 - dummy sync flag']
  #allocation72 [shape = 's32[]', space=sflag, size = 0x4, offset = 0, fixed_abs, tag = 'sflag constant byte address 0x0 - dummy sync flag']
  #allocation73 [shape = 's32[]', space=sflag, size = 0x4, offset = 0, fixed_abs, tag = 'sflag constant byte address 0x0 - dummy sync flag']
  #allocation74 [shape = 's32[]', space=sflag, size = 0x4, offset = 0, fixed_abs, tag = 'sflag constant byte address 0x0 - dummy sync flag']
  #allocation75 [shape = 's32[]', space=sflag, size = 0x4, offset = 0, fixed_abs, tag = 'sflag constant byte address 0x0 - dummy sync flag']
  #allocation76 [shape = 's32[]', space=sflag, size = 0x4, offset = 0, fixed_abs, tag = 'sflag constant byte address 0x0 - dummy sync flag']
  #allocation77 [shape = 's32[]', space=sflag, size = 0x4, offset = 0, fixed_abs, tag = 'sflag constant byte address 0x0 - dummy sync flag']
  #allocation78 [shape = 's32[]', space=sflag, size = 0x4, offset = 0, fixed_abs, tag = 'sflag constant byte address 0x0 - dummy sync flag']
  #allocation79 [shape = 's32[]', space=sflag, size = 0x4, offset = 0, fixed_abs, tag = 'sflag constant byte address 0x0 - dummy sync flag']
  #allocation80 [shape = 's32[]', space=sflag, size = 0x4, offset = 0, fixed_abs, tag = 'sflag constant byte address 0x0 - dummy sync flag']
  #allocation81 [shape = 's32[]', space=sflag, size = 0x4, offset = 0, fixed_abs, tag = 'sflag constant byte address 0x0 - dummy sync flag']
  #allocation82 [shape = 's32[]', space=sflag, size = 0x4, offset = 0, fixed_abs, tag = 'sflag constant byte address 0x0 - dummy sync flag']
  #allocation83 [shape = 's32[]', space=sflag, size = 0x4, offset = 0, fixed_abs, tag = 'sflag constant byte address 0x0 - dummy sync flag']
  #allocation84 [shape = 's32[]', space=sflag, size = 0x4, offset = 0, fixed_abs, tag = 'sflag constant byte address 0x0 - dummy sync flag']
  #allocation85 [shape = 's32[]', space=sflag, size = 0x4, offset = 0, fixed_abs, tag = 'sflag constant byte address 0x0 - dummy sync flag']
  #allocation86 [shape = 's32[]', space=sflag, size = 0x4, offset = 0, fixed_abs, tag = 'sflag constant byte address 0x0 - dummy sync flag']
  #allocation87 [shape = 's32[]', space=sflag, size = 0x4, offset = 0, fixed_abs, tag = 'sflag constant byte address 0x0 - dummy sync flag']
  #allocation88 [shape = 's32[]', space=sflag, size = 0x4, offset = 0, fixed_abs, tag = 'sflag constant byte address 0x0 - dummy sync flag']
  #allocation89 [shape = 's32[]', space=sflag, size = 0x4, offset = 0, fixed_abs, tag = 'sflag constant byte address 0x0 - dummy sync flag']
  #allocation90 [shape = 's32[]', space=sflag, size = 0x4, offset = 0, fixed_abs, tag = 'sflag constant byte address 0x0 - dummy sync flag']
  #allocation91 [shape = 's32[]', space=sflag, size = 0x4, offset = 0, fixed_abs, tag = 'sflag constant byte address 0x0 - dummy sync flag']
  #allocation92 [shape = 's32[]', space=sflag, size = 0x4, offset = 0, fixed_abs, tag = 'sflag constant byte address 0x0 - dummy sync flag']
  #allocation93 [shape = 's32[]', space=sflag, size = 0x4, offset = 0, fixed_abs, tag = 'sflag constant byte address 0x0 - dummy sync flag']
  #allocation94 [shape = 's32[]', space=sflag, size = 0x4, offset = 0, fixed_abs, tag = 'sflag constant byte address 0x0 - dummy sync flag']
  #allocation95 [shape = 's32[]', space=sflag, size = 0x4, offset = 0, fixed_abs, tag = 'sflag constant byte address 0x0 - dummy sync flag']
  #allocation96 [shape = 's32[]', space=sflag, size = 0x4, offset = 0, fixed_abs, tag = 'sflag constant byte address 0x0 - dummy sync flag']
  #allocation97 [shape = 's32[]', space=sflag, size = 0x4, offset = 0, fixed_abs, tag = 'sflag constant byte address 0x0 - dummy sync flag']
  #allocation98 [shape = 's32[]', space=sflag, size = 0x4, offset = 0, fixed_abs, tag = 'sflag constant byte address 0x0 - dummy sync flag']
  #allocation99 [shape = 's32[]', space=sflag, size = 0x4, offset = 0, fixed_abs, tag = 'sflag constant byte address 0x0 - dummy sync flag']
  #allocation100 [shape = 's32[]', space=sflag, size = 0x4, offset = 0, fixed_abs, tag = 'sflag constant byte address 0x0 - dummy sync flag']
  #allocation101 [shape = 's32[]', space=sflag, size = 0x4, offset = 0, fixed_abs, tag = 'sflag constant byte address 0x0 - dummy sync flag']
  #allocation102 [shape = 's32[]', space=sflag, size = 0x4, offset = 0, fixed_abs, tag = 'sflag constant byte address 0x0 - dummy sync flag']
  #allocation103 [shape = 's32[]', space=sflag, size = 0x4, offset = 0, fixed_abs, tag = 'sflag constant byte address 0x0 - dummy sync flag']
  #allocation104 [shape = 's32[]', space=sflag, size = 0x4, offset = 0, fixed_abs, tag = 'sflag constant byte address 0x0 - dummy sync flag']
  #allocation105 [shape = 's32[]', space=sflag, size = 0x4, offset = 0, fixed_abs, tag = 'sflag constant byte address 0x0 - dummy sync flag']
  #allocation106 [shape = 's32[]', space=sflag, size = 0x4, offset = 0, fixed_abs, tag = 'sflag constant byte address 0x0 - dummy sync flag']
  #allocation107 [shape = 's32[]', space=sflag, size = 0x4, offset = 0, fixed_abs, tag = 'sflag constant byte address 0x0 - dummy sync flag']
  #allocation108 [shape = 's32[]', space=sflag, size = 0x4, offset = 0, fixed_abs, tag = 'sflag constant byte address 0x0 - dummy sync flag']
  #allocation109 [shape = 's32[]', space=sflag, size = 0x4, offset = 0, fixed_abs, tag = 'sflag constant byte address 0x0 - dummy sync flag']
  #allocation110 [shape = 's32[]', space=sflag, size = 0x4, offset = 0, fixed_abs, tag = 'sflag constant byte address 0x0 - dummy sync flag']
  #allocation111 [shape = 's32[]', space=sflag, size = 0x4, offset = 0, fixed_abs, tag = 'sflag constant byte address 0x0 - dummy sync flag']
  #allocation112 [shape = 's32[]', space=sflag, size = 0x4, offset = 0, fixed_abs, tag = 'sflag constant byte address 0x0 - dummy sync flag']
  #allocation113 [shape = 's32[]', space=sflag, size = 0x4, offset = 0, fixed_abs, tag = 'sflag constant byte address 0x0 - dummy sync flag']
  #allocation114 [shape = 's32[]', space=sflag, size = 0x4, offset = 0, fixed_abs, tag = 'sflag constant byte address 0x0 - dummy sync flag']
  #allocation115 [shape = 's32[]', space=sflag, size = 0x4, offset = 0, fixed_abs, tag = 'sflag constant byte address 0x0 - dummy sync flag']
  #allocation116 [shape = 's32[]', space=sflag, size = 0x4, offset = 0, fixed_abs, tag = 'sflag constant byte address 0x0 - dummy sync flag']
  #allocation117 [shape = 's32[]', space=sflag, size = 0x4, offset = 0, fixed_abs, tag = 'sflag constant byte address 0x0 - dummy sync flag']
  #allocation118 [shape = 's32[]', space=sflag, size = 0x4, offset = 0, fixed_abs, tag = 'sflag constant byte address 0x0 - dummy sync flag']
  #allocation119 [shape = 's32[]', space=sflag, size = 0x4, offset = 0, fixed_abs, tag = 'sflag constant byte address 0x0 - dummy sync flag']
  #allocation120 [shape = 's32[]', space=sflag, size = 0x4, offset = 0, fixed_abs, tag = 'sflag constant byte address 0x0 - dummy sync flag']
  #allocation121 [shape = 's32[]', space=sflag, size = 0x4, offset = 0, fixed_abs, tag = 'sflag constant byte address 0x0 - dummy sync flag']
  #allocation122 [shape = 's32[]', space=sflag, size = 0x4, offset = 0, fixed_abs, tag = 'sflag constant byte address 0x0 - dummy sync flag']
  #allocation123 [shape = 's32[]', space=sflag, size = 0x4, offset = 0, fixed_abs, tag = 'sflag constant byte address 0x0 - dummy sync flag']
  #allocation124 [shape = 's32[]', space=sflag, size = 0x4, offset = 0, fixed_abs, tag = 'sflag constant byte address 0x0 - dummy sync flag']
  #allocation125 [shape = 's32[]', space=sflag, size = 0x4, offset = 0, fixed_abs, tag = 'sflag constant byte address 0x0 - dummy sync flag']
  #allocation126 [shape = 's32[]', space=sflag, size = 0x4, offset = 0, fixed_abs, tag = 'sflag constant byte address 0x0 - dummy sync flag']
  #allocation127 [shape = 's32[]', space=sflag, size = 0x4, offset = 0, fixed_abs, tag = 'sflag constant byte address 0x0 - dummy sync flag']
  #allocation128 [shape = 's32[]', space=sflag, size = 0x4, offset = 0, fixed_abs, tag = 'sflag constant byte address 0x0 - dummy sync flag']
  #allocation129 [shape = 's32[]', space=sflag, size = 0x4, offset = 0, fixed_abs, tag = 'sflag constant byte address 0x0 - dummy sync flag']
  #allocation130 [shape = 's32[]', space=sflag, size = 0x4, offset = 0, fixed_abs, tag = 'sflag constant byte address 0x0 - dummy sync flag']
  #allocation131 [shape = 's32[]', space=sflag, size = 0x4, offset = 0, fixed_abs, tag = 'sflag constant byte address 0x0 - dummy sync flag']
  #allocation132 [shape = 's32[]', space=sflag, size = 0x4, offset = 0, fixed_abs, tag = 'sflag constant byte address 0x0 - dummy sync flag']
  #allocation133 [shape = 's32[]', space=sflag, size = 0x4, offset = 0, fixed_abs, tag = 'sflag constant byte address 0x0 - dummy sync flag']
  #allocation134 [shape = 's32[]', space=sflag, size = 0x4, offset = 0, fixed_abs, tag = 'sflag constant byte address 0x0 - dummy sync flag']
  #allocation135 [shape = 's32[]', space=sflag, size = 0x4, offset = 0, fixed_abs, tag = 'sflag constant byte address 0x0 - dummy sync flag']
  #allocation136 [shape = 's32[]', space=sflag, size = 0x4, offset = 0, fixed_abs, tag = 'sflag constant byte address 0x0 - dummy sync flag']
  %s0 = inlined_call_operand.hbm [shape: s32[64], index: 0, kind: input, shape index: {}]
  %s1 = inlined_call_operand.hbm [shape: f32[50,128], index: 1, kind: input, shape index: {}]
  %s2 = inlined_call_operand.hbm [shape: f32[64,128], index: 2, kind: output, shape index: {}]
  %s3 = sld [smem:[#allocation0]]
  $region266: #{tpu_custom_call.1} parent=0
    _
  %s5 = ssub.s32 1, %s3
  %s6 = scalar_select 0, %s5, %s3
  %8 = dma.hbm_to_smem %s0, 16, [#allocation4], [#allocation3]
  %9 = dma.done [#allocation3], 16
  %10 = sfence
  $region1: #{tpu_custom_call.1} parent=0
    #allocation5 [shape = 'u8[32768]{0}', space=vmem, size = 0x8000, scoped, tag = 'output window, operand 0, single buffered']
    #allocation6 [shape = 's32[1]{0}', space=sflag, size = 0x4, scoped, tag = 'scoped memory for tpu_custom_call.1']
    %11 = vsyncpa [#allocation6], 0
    %s12 = smul.u32 0, 64
    %s13 = sld [smem:[#allocation4 + %s12]]
    %s14 = smul.addr %s13, 16
    %s15 = scalar_lea.hbm %s1, %s14
    // Predicated region
    $region2: #{tpu_custom_call.1} parent=1 // pred_check
      _
    $region3: #{tpu_custom_call.1} parent=1 // pred_check_branch
      %17 = sbr.rel target = $region5
    $region4: #{tpu_custom_call.1} parent=1 // pred_region
      %18 = sst [smem:[#allocation9]] [#allocation8]
      %19 = sst [smem:[#allocation10]] [#allocation7]
    $region5: #{tpu_custom_call.1} parent=1 // pred_fallthru
      _
    %21 = shalt.err (0)
    %s23 = sshll.u32 [#allocation5], 4
    %s24 = int_to_ptr.vmem [resolvable:$true] %s23
    %26 = dma.hbm_to_vmem [thread:$0]  %s15, 16, %s24, [#allocation2]
    %s27 = sadd.s32 %s12, 1
    %s28 = sld [smem:[#allocation4 + %s27]]
    %s29 = smul.addr %s28, 16
    %s30 = scalar_lea.hbm %s1, %s29
    %s31 = scalar_lea.vmem [#allocation5], 1
    %s32 = scalar_lea.sflag [#allocation2], 1
    // Predicated region
    $region6: #{tpu_custom_call.1} parent=1 // pred_check
      _
    $region7: #{tpu_custom_call.1} parent=1 // pred_check_branch
      %34 = sbr.rel target = $region9
    $region8: #{tpu_custom_call.1} parent=1 // pred_region
      %35 = sst [smem:[#allocation9]] [#allocation12]
      %36 = sst [smem:[#allocation10]] [#allocation11]
    $region9: #{tpu_custom_call.1} parent=1 // pred_fallthru
      _
    %38 = shalt.err (0)
    %s40 = sshll.u32 %s31, 4
    %s41 = int_to_ptr.vmem [resolvable:$true] %s40
    %43 = dma.hbm_to_vmem [thread:$0]  %s30, 16, %s41, %s32
    %s44 = sadd.s32 %s12, 2
    %s45 = sld [smem:[#allocation4 + %s44]]
    %s46 = smul.addr %s45, 16
    %s47 = scalar_lea.hbm %s1, %s46
    %s48 = scalar_lea.vmem [#allocation5], 2
    %s49 = scalar_lea.sflag [#allocation2], 2
    // Predicated region
    $region10: #{tpu_custom_call.1} parent=1 // pred_check
      _
    $region11: #{tpu_custom_call.1} parent=1 // pred_check_branch
      %51 = sbr.rel target = $region13
    $region12: #{tpu_custom_call.1} parent=1 // pred_region
      %52 = sst [smem:[#allocation9]] [#allocation14]
      %53 = sst [smem:[#allocation10]] [#allocation13]
    $region13: #{tpu_custom_call.1} parent=1 // pred_fallthru
      _
    %55 = shalt.err (0)
    %s57 = sshll.u32 %s48, 4
    %s58 = int_to_ptr.vmem [resolvable:$true] %s57
    %60 = dma.hbm_to_vmem [thread:$0]  %s47, 16, %s58, %s49
    %s61 = sadd.s32 %s12, 3
    %s62 = sld [smem:[#allocation4 + %s61]]
    %s63 = smul.addr %s62, 16
    %s64 = scalar_lea.hbm %s1, %s63
    %s65 = scalar_lea.vmem [#allocation5], 3
    %s66 = scalar_lea.sflag [#allocation2], 3
    // Predicated region
    $region14: #{tpu_custom_call.1} parent=1 // pred_check
      _
    $region15: #{tpu_custom_call.1} parent=1 // pred_check_branch
      %68 = sbr.rel target = $region17
    $region16: #{tpu_custom_call.1} parent=1 // pred_region
      %69 = sst [smem:[#allocation9]] [#allocation16]
      %70 = sst [smem:[#allocation10]] [#allocation15]
    $region17: #{tpu_custom_call.1} parent=1 // pred_fallthru
      _
    %72 = shalt.err (0)
    %s74 = sshll.u32 %s65, 4
    %s75 = int_to_ptr.vmem [resolvable:$true] %s74
    %77 = dma.hbm_to_vmem [thread:$0]  %s64, 16, %s75, %s66
    %s78 = sadd.s32 %s12, 4
    %s79 = sld [smem:[#allocation4 + %s78]]
    %s80 = smul.addr %s79, 16
    %s81 = scalar_lea.hbm %s1, %s80
    %s82 = scalar_lea.vmem [#allocation5], 4
    %s83 = scalar_lea.sflag [#allocation2], 4
    // Predicated region
    $region18: #{tpu_custom_call.1} parent=1 // pred_check
      _
    $region19: #{tpu_custom_call.1} parent=1 // pred_check_branch
      %85 = sbr.rel target = $region21
    $region20: #{tpu_custom_call.1} parent=1 // pred_region
      %86 = sst [smem:[#allocation9]] [#allocation18]
      %87 = sst [smem:[#allocation10]] [#allocation17]
    $region21: #{tpu_custom_call.1} parent=1 // pred_fallthru
      _
    %89 = shalt.err (0)
    %s91 = sshll.u32 %s82, 4
    %s92 = int_to_ptr.vmem [resolvable:$true] %s91
    %94 = dma.hbm_to_vmem [thread:$0]  %s81, 16, %s92, %s83
    %s95 = sadd.s32 %s12, 5
    %s96 = sld [smem:[#allocation4 + %s95]]
    %s97 = smul.addr %s96, 16
    %s98 = scalar_lea.hbm %s1, %s97
    %s99 = scalar_lea.vmem [#allocation5], 5
    %s100 = scalar_lea.sflag [#allocation2], 5
    // Predicated region
    $region22: #{tpu_custom_call.1} parent=1 // pred_check
      _
    $region23: #{tpu_custom_call.1} parent=1 // pred_check_branch
      %102 = sbr.rel target = $region25
    $region24: #{tpu_custom_call.1} parent=1 // pred_region
      %103 = sst [smem:[#allocation9]] [#allocation20]
      %104 = sst [smem:[#allocation10]] [#allocation19]
    $region25: #{tpu_custom_call.1} parent=1 // pred_fallthru
      _
    %106 = shalt.err (0)
    %s108 = sshll.u32 %s99, 4
    %s109 = int_to_ptr.vmem [resolvable:$true] %s108
    %111 = dma.hbm_to_vmem [thread:$0]  %s98, 16, %s109, %s100
    %s112 = sadd.s32 %s12, 6
    %s113 = sld [smem:[#allocation4 + %s112]]
    %s114 = smul.addr %s113, 16
    %s115 = scalar_lea.hbm %s1, %s114
    %s116 = scalar_lea.vmem [#allocation5], 6
    %s117 = scalar_lea.sflag [#allocation2], 6
    // Predicated region
    $region26: #{tpu_custom_call.1} parent=1 // pred_check
      _
    $region27: #{tpu_custom_call.1} parent=1 // pred_check_branch
      %119 = sbr.rel target = $region29
    $region28: #{tpu_custom_call.1} parent=1 // pred_region
      %120 = sst [smem:[#allocation9]] [#allocation22]
      %121 = sst [smem:[#allocation10]] [#allocation21]
    $region29: #{tpu_custom_call.1} parent=1 // pred_fallthru
      _
    %123 = shalt.err (0)
    %s125 = sshll.u32 %s116, 4
    %s126 = int_to_ptr.vmem [resolvable:$true] %s125
    %128 = dma.hbm_to_vmem [thread:$0]  %s115, 16, %s126, %s117
    %s129 = sadd.s32 %s12, 7
    %s130 = sld [smem:[#allocation4 + %s129]]
    %s131 = smul.addr %s130, 16
    %s132 = scalar_lea.hbm %s1, %s131
    %s133 = scalar_lea.vmem [#allocation5], 7
    %s134 = scalar_lea.sflag [#allocation2], 7
    // Predicated region
    $region30: #{tpu_custom_call.1} parent=1 // pred_check
      _
    $region31: #{tpu_custom_call.1} parent=1 // pred_check_branch
      %136 = sbr.rel target = $region33
    $region32: #{tpu_custom_call.1} parent=1 // pred_region
      %137 = sst [smem:[#allocation9]] [#allocation24]
      %138 = sst [smem:[#allocation10]] [#allocation23]
    $region33: #{tpu_custom_call.1} parent=1 // pred_fallthru
      _
    %140 = shalt.err (0)
    %s142 = sshll.u32 %s133, 4
    %s143 = int_to_ptr.vmem [resolvable:$true] %s142
    %145 = dma.hbm_to_vmem [thread:$0]  %s132, 16, %s143, %s134
    %s146 = sadd.s32 %s12, 8
    %s147 = sld [smem:[#allocation4 + %s146]]
    %s148 = smul.addr %s147, 16
    %s149 = scalar_lea.hbm %s1, %s148
    %s150 = scalar_lea.vmem [#allocation5], 8
    %s151 = scalar_lea.sflag [#allocation2], 8
    // Predicated region
    $region34: #{tpu_custom_call.1} parent=1 // pred_check
      _
    $region35: #{tpu_custom_call.1} parent=1 // pred_check_branch
      %153 = sbr.rel target = $region37
    $region36: #{tpu_custom_call.1} parent=1 // pred_region
      %154 = sst [smem:[#allocation9]] [#allocation26]
      %155 = sst [smem:[#allocation10]] [#allocation25]
    $region37: #{tpu_custom_call.1} parent=1 // pred_fallthru
      _
    %157 = shalt.err (0)
    %s159 = sshll.u32 %s150, 4
    %s160 = int_to_ptr.vmem [resolvable:$true] %s159
    %162 = dma.hbm_to_vmem [thread:$0]  %s149, 16, %s160, %s151
    %s163 = sadd.s32 %s12, 9
    %s164 = sld [smem:[#allocation4 + %s163]]
    %s165 = smul.addr %s164, 16
    %s166 = scalar_lea.hbm %s1, %s165
    %s167 = scalar_lea.vmem [#allocation5], 9
    %s168 = scalar_lea.sflag [#allocation2], 9
    // Predicated region
    $region38: #{tpu_custom_call.1} parent=1 // pred_check
      _
    $region39: #{tpu_custom_call.1} parent=1 // pred_check_branch
      %170 = sbr.rel target = $region41
    $region40: #{tpu_custom_call.1} parent=1 // pred_region
      %171 = sst [smem:[#allocation9]] [#allocation28]
      %172 = sst [smem:[#allocation10]] [#allocation27]
    $region41: #{tpu_custom_call.1} parent=1 // pred_fallthru
      _
    %174 = shalt.err (0)
    %s176 = sshll.u32 %s167, 4
    %s177 = int_to_ptr.vmem [resolvable:$true] %s176
    %179 = dma.hbm_to_vmem [thread:$0]  %s166, 16, %s177, %s168
    %s180 = sadd.s32 %s12, 10
    %s181 = sld [smem:[#allocation4 + %s180]]
    %s182 = smul.addr %s181, 16
    %s183 = scalar_lea.hbm %s1, %s182
    %s184 = scalar_lea.vmem [#allocation5], 10
    %s185 = scalar_lea.sflag [#allocation2], 10
    // Predicated region
    $region42: #{tpu_custom_call.1} parent=1 // pred_check
      _
    $region43: #{tpu_custom_call.1} parent=1 // pred_check_branch
      %187 = sbr.rel target = $region45
    $region44: #{tpu_custom_call.1} parent=1 // pred_region
      %188 = sst [smem:[#allocation9]] [#allocation30]
      %189 = sst [smem:[#allocation10]] [#allocation29]
    $region45: #{tpu_custom_call.1} parent=1 // pred_fallthru
      _
    %191 = shalt.err (0)
    %s193 = sshll.u32 %s184, 4
    %s194 = int_to_ptr.vmem [resolvable:$true] %s193
    %196 = dma.hbm_to_vmem [thread:$0]  %s183, 16, %s194, %s185
    %s197 = sadd.s32 %s12, 11
    %s198 = sld [smem:[#allocation4 + %s197]]
    %s199 = smul.addr %s198, 16
    %s200 = scalar_lea.hbm %s1, %s199
    %s201 = scalar_lea.vmem [#allocation5], 11
    %s202 = scalar_lea.sflag [#allocation2], 11
    // Predicated region
    $region46: #{tpu_custom_call.1} parent=1 // pred_check
      _
    $region47: #{tpu_custom_call.1} parent=1 // pred_check_branch
      %204 = sbr.rel target = $region49
    $region48: #{tpu_custom_call.1} parent=1 // pred_region
      %205 = sst [smem:[#allocation9]] [#allocation32]
      %206 = sst [smem:[#allocation10]] [#allocation31]
    $region49: #{tpu_custom_call.1} parent=1 // pred_fallthru
      _
    %208 = shalt.err (0)
    %s210 = sshll.u32 %s201, 4
    %s211 = int_to_ptr.vmem [resolvable:$true] %s210
    %213 = dma.hbm_to_vmem [thread:$0]  %s200, 16, %s211, %s202
    %s214 = sadd.s32 %s12, 12
    %s215 = sld [smem:[#allocation4 + %s214]]
    %s216 = smul.addr %s215, 16
    %s217 = scalar_lea.hbm %s1, %s216
    %s218 = scalar_lea.vmem [#allocation5], 12
    %s219 = scalar_lea.sflag [#allocation2], 12
    // Predicated region
    $region50: #{tpu_custom_call.1} parent=1 // pred_check
      _
    $region51: #{tpu_custom_call.1} parent=1 // pred_check_branch
      %221 = sbr.rel target = $region53
    $region52: #{tpu_custom_call.1} parent=1 // pred_region
      %222 = sst [smem:[#allocation9]] [#allocation34]
      %223 = sst [smem:[#allocation10]] [#allocation33]
    $region53: #{tpu_custom_call.1} parent=1 // pred_fallthru
      _
    %225 = shalt.err (0)
    %s227 = sshll.u32 %s218, 4
    %s228 = int_to_ptr.vmem [resolvable:$true] %s227
    %230 = dma.hbm_to_vmem [thread:$0]  %s217, 16, %s228, %s219
    %s231 = sadd.s32 %s12, 13
    %s232 = sld [smem:[#allocation4 + %s231]]
    %s233 = smul.addr %s232, 16
    %s234 = scalar_lea.hbm %s1, %s233
    %s235 = scalar_lea.vmem [#allocation5], 13
    %s236 = scalar_lea.sflag [#allocation2], 13
    // Predicated region
    $region54: #{tpu_custom_call.1} parent=1 // pred_check
      _
    $region55: #{tpu_custom_call.1} parent=1 // pred_check_branch
      %238 = sbr.rel target = $region57
    $region56: #{tpu_custom_call.1} parent=1 // pred_region
      %239 = sst [smem:[#allocation9]] [#allocation36]
      %240 = sst [smem:[#allocation10]] [#allocation35]
    $region57: #{tpu_custom_call.1} parent=1 // pred_fallthru
      _
    %242 = shalt.err (0)
    %s244 = sshll.u32 %s235, 4
    %s245 = int_to_ptr.vmem [resolvable:$true] %s244
    %247 = dma.hbm_to_vmem [thread:$0]  %s234, 16, %s245, %s236
    %s248 = sadd.s32 %s12, 14
    %s249 = sld [smem:[#allocation4 + %s248]]
    %s250 = smul.addr %s249, 16
    %s251 = scalar_lea.hbm %s1, %s250
    %s252 = scalar_lea.vmem [#allocation5], 14
    %s253 = scalar_lea.sflag [#allocation2], 14
    // Predicated region
    $region58: #{tpu_custom_call.1} parent=1 // pred_check
      _
    $region59: #{tpu_custom_call.1} parent=1 // pred_check_branch
      %255 = sbr.rel target = $region61
    $region60: #{tpu_custom_call.1} parent=1 // pred_region
      %256 = sst [smem:[#allocation9]] [#allocation38]
      %257 = sst [smem:[#allocation10]] [#allocation37]
    $region61: #{tpu_custom_call.1} parent=1 // pred_fallthru
      _
    %259 = shalt.err (0)
    %s261 = sshll.u32 %s252, 4
    %s262 = int_to_ptr.vmem [resolvable:$true] %s261
    %264 = dma.hbm_to_vmem [thread:$0]  %s251, 16, %s262, %s253
    %s265 = sadd.s32 %s12, 15
    %s266 = sld [smem:[#allocation4 + %s265]]
    %s267 = smul.addr %s266, 16
    %s268 = scalar_lea.hbm %s1, %s267
    %s269 = scalar_lea.vmem [#allocation5], 15
    %s270 = scalar_lea.sflag [#allocation2], 15
    // Predicated region
    $region62: #{tpu_custom_call.1} parent=1 // pred_check
      _
    $region63: #{tpu_custom_call.1} parent=1 // pred_check_branch
      %272 = sbr.rel target = $region65
    $region64: #{tpu_custom_call.1} parent=1 // pred_region
      %273 = sst [smem:[#allocation9]] [#allocation40]
      %274 = sst [smem:[#allocation10]] [#allocation39]
    $region65: #{tpu_custom_call.1} parent=1 // pred_fallthru
      _
    %276 = shalt.err (0)
    %s278 = sshll.u32 %s269, 4
    %s279 = int_to_ptr.vmem [resolvable:$true] %s278
    %281 = dma.hbm_to_vmem [thread:$0]  %s268, 16, %s279, %s270
    %s282 = sadd.s32 %s12, 16
    %s283 = sld [smem:[#allocation4 + %s282]]
    %s284 = smul.addr %s283, 16
    %s285 = scalar_lea.hbm %s1, %s284
    %s286 = scalar_lea.vmem [#allocation5], 16
    %s287 = scalar_lea.sflag [#allocation2], 16
    // Predicated region
    $region66: #{tpu_custom_call.1} parent=1 // pred_check
      _
    $region67: #{tpu_custom_call.1} parent=1 // pred_check_branch
      %289 = sbr.rel target = $region69
    $region68: #{tpu_custom_call.1} parent=1 // pred_region
      %290 = sst [smem:[#allocation9]] [#allocation42]
      %291 = sst [smem:[#allocation10]] [#allocation41]
    $region69: #{tpu_custom_call.1} parent=1 // pred_fallthru
      _
    %293 = shalt.err (0)
    %s295 = sshll.u32 %s286, 4
    %s296 = int_to_ptr.vmem [resolvable:$true] %s295
    %298 = dma.hbm_to_vmem [thread:$0]  %s285, 16, %s296, %s287
    %s299 = sadd.s32 %s12, 17
    %s300 = sld [smem:[#allocation4 + %s299]]
    %s301 = smul.addr %s300, 16
    %s302 = scalar_lea.hbm %s1, %s301
    %s303 = scalar_lea.vmem [#allocation5], 17
    %s304 = scalar_lea.sflag [#allocation2], 17
    // Predicated region
    $region70: #{tpu_custom_call.1} parent=1 // pred_check
      _
    $region71: #{tpu_custom_call.1} parent=1 // pred_check_branch
      %306 = sbr.rel target = $region73
    $region72: #{tpu_custom_call.1} parent=1 // pred_region
      %307 = sst [smem:[#allocation9]] [#allocation44]
      %308 = sst [smem:[#allocation10]] [#allocation43]
    $region73: #{tpu_custom_call.1} parent=1 // pred_fallthru
      _
    %310 = shalt.err (0)
    %s312 = sshll.u32 %s303, 4
    %s313 = int_to_ptr.vmem [resolvable:$true] %s312
    %315 = dma.hbm_to_vmem [thread:$0]  %s302, 16, %s313, %s304
    %s316 = sadd.s32 %s12, 18
    %s317 = sld [smem:[#allocation4 + %s316]]
    %s318 = smul.addr %s317, 16
    %s319 = scalar_lea.hbm %s1, %s318
    %s320 = scalar_lea.vmem [#allocation5], 18
    %s321 = scalar_lea.sflag [#allocation2], 18
    // Predicated region
    $region74: #{tpu_custom_call.1} parent=1 // pred_check
      _
    $region75: #{tpu_custom_call.1} parent=1 // pred_check_branch
      %323 = sbr.rel target = $region77
    $region76: #{tpu_custom_call.1} parent=1 // pred_region
      %324 = sst [smem:[#allocation9]] [#allocation46]
      %325 = sst [smem:[#allocation10]] [#allocation45]
    $region77: #{tpu_custom_call.1} parent=1 // pred_fallthru
      _
    %327 = shalt.err (0)
    %s329 = sshll.u32 %s320, 4
    %s330 = int_to_ptr.vmem [resolvable:$true] %s329
    %332 = dma.hbm_to_vmem [thread:$0]  %s319, 16, %s330, %s321
    %s333 = sadd.s32 %s12, 19
    %s334 = sld [smem:[#allocation4 + %s333]]
    %s335 = smul.addr %s334, 16
    %s336 = scalar_lea.hbm %s1, %s335
    %s337 = scalar_lea.vmem [#allocation5], 19
    %s338 = scalar_lea.sflag [#allocation2], 19
    // Predicated region
    $region78: #{tpu_custom_call.1} parent=1 // pred_check
      _
    $region79: #{tpu_custom_call.1} parent=1 // pred_check_branch
      %340 = sbr.rel target = $region81
    $region80: #{tpu_custom_call.1} parent=1 // pred_region
      %341 = sst [smem:[#allocation9]] [#allocation48]
      %342 = sst [smem:[#allocation10]] [#allocation47]
    $region81: #{tpu_custom_call.1} parent=1 // pred_fallthru
      _
    %344 = shalt.err (0)
    %s346 = sshll.u32 %s337, 4
    %s347 = int_to_ptr.vmem [resolvable:$true] %s346
    %349 = dma.hbm_to_vmem [thread:$0]  %s336, 16, %s347, %s338
    %s350 = sadd.s32 %s12, 20
    %s351 = sld [smem:[#allocation4 + %s350]]
    %s352 = smul.addr %s351, 16
    %s353 = scalar_lea.hbm %s1, %s352
    %s354 = scalar_lea.vmem [#allocation5], 20
    %s355 = scalar_lea.sflag [#allocation2], 20
    // Predicated region
    $region82: #{tpu_custom_call.1} parent=1 // pred_check
      _
    $region83: #{tpu_custom_call.1} parent=1 // pred_check_branch
      %357 = sbr.rel target = $region85
    $region84: #{tpu_custom_call.1} parent=1 // pred_region
      %358 = sst [smem:[#allocation9]] [#allocation50]
      %359 = sst [smem:[#allocation10]] [#allocation49]
    $region85: #{tpu_custom_call.1} parent=1 // pred_fallthru
      _
    %361 = shalt.err (0)
    %s363 = sshll.u32 %s354, 4
    %s364 = int_to_ptr.vmem [resolvable:$true] %s363
    %366 = dma.hbm_to_vmem [thread:$0]  %s353, 16, %s364, %s355
    %s367 = sadd.s32 %s12, 21
    %s368 = sld [smem:[#allocation4 + %s367]]
    %s369 = smul.addr %s368, 16
    %s370 = scalar_lea.hbm %s1, %s369
    %s371 = scalar_lea.vmem [#allocation5], 21
    %s372 = scalar_lea.sflag [#allocation2], 21
    // Predicated region
    $region86: #{tpu_custom_call.1} parent=1 // pred_check
      _
    $region87: #{tpu_custom_call.1} parent=1 // pred_check_branch
      %374 = sbr.rel target = $region89
    $region88: #{tpu_custom_call.1} parent=1 // pred_region
      %375 = sst [smem:[#allocation9]] [#allocation52]
      %376 = sst [smem:[#allocation10]] [#allocation51]
    $region89: #{tpu_custom_call.1} parent=1 // pred_fallthru
      _
    %378 = shalt.err (0)
    %s380 = sshll.u32 %s371, 4
    %s381 = int_to_ptr.vmem [resolvable:$true] %s380
    %383 = dma.hbm_to_vmem [thread:$0]  %s370, 16, %s381, %s372
    %s384 = sadd.s32 %s12, 22
    %s385 = sld [smem:[#allocation4 + %s384]]
    %s386 = smul.addr %s385, 16
    %s387 = scalar_lea.hbm %s1, %s386
    %s388 = scalar_lea.vmem [#allocation5], 22
    %s389 = scalar_lea.sflag [#allocation2], 22
    // Predicated region
    $region90: #{tpu_custom_call.1} parent=1 // pred_check
      _
    $region91: #{tpu_custom_call.1} parent=1 // pred_check_branch
      %391 = sbr.rel target = $region93
    $region92: #{tpu_custom_call.1} parent=1 // pred_region
      %392 = sst [smem:[#allocation9]] [#allocation54]
      %393 = sst [smem:[#allocation10]] [#allocation53]
    $region93: #{tpu_custom_call.1} parent=1 // pred_fallthru
      _
    %395 = shalt.err (0)
    %s397 = sshll.u32 %s388, 4
    %s398 = int_to_ptr.vmem [resolvable:$true] %s397
    %400 = dma.hbm_to_vmem [thread:$0]  %s387, 16, %s398, %s389
    %s401 = sadd.s32 %s12, 23
    %s402 = sld [smem:[#allocation4 + %s401]]
    %s403 = smul.addr %s402, 16
    %s404 = scalar_lea.hbm %s1, %s403
    %s405 = scalar_lea.vmem [#allocation5], 23
    %s406 = scalar_lea.sflag [#allocation2], 23
    // Predicated region
    $region94: #{tpu_custom_call.1} parent=1 // pred_check
      _
    $region95: #{tpu_custom_call.1} parent=1 // pred_check_branch
      %408 = sbr.rel target = $region97
    $region96: #{tpu_custom_call.1} parent=1 // pred_region
      %409 = sst [smem:[#allocation9]] [#allocation56]
      %410 = sst [smem:[#allocation10]] [#allocation55]
    $region97: #{tpu_custom_call.1} parent=1 // pred_fallthru
      _
    %412 = shalt.err (0)
    %s414 = sshll.u32 %s405, 4
    %s415 = int_to_ptr.vmem [resolvable:$true] %s414
    %417 = dma.hbm_to_vmem [thread:$0]  %s404, 16, %s415, %s406
    %s418 = sadd.s32 %s12, 24
    %s419 = sld [smem:[#allocation4 + %s418]]
    %s420 = smul.addr %s419, 16
    %s421 = scalar_lea.hbm %s1, %s420
    %s422 = scalar_lea.vmem [#allocation5], 24
    %s423 = scalar_lea.sflag [#allocation2], 24
    // Predicated region
    $region98: #{tpu_custom_call.1} parent=1 // pred_check
      _
    $region99: #{tpu_custom_call.1} parent=1 // pred_check_branch
      %425 = sbr.rel target = $region101
    $region100: #{tpu_custom_call.1} parent=1 // pred_region
      %426 = sst [smem:[#allocation9]] [#allocation58]
      %427 = sst [smem:[#allocation10]] [#allocation57]
    $region101: #{tpu_custom_call.1} parent=1 // pred_fallthru
      _
    %429 = shalt.err (0)
    %s431 = sshll.u32 %s422, 4
    %s432 = int_to_ptr.vmem [resolvable:$true] %s431
    %434 = dma.hbm_to_vmem [thread:$0]  %s421, 16, %s432, %s423
    %s435 = sadd.s32 %s12, 25
    %s436 = sld [smem:[#allocation4 + %s435]]
    %s437 = smul.addr %s436, 16
    %s438 = scalar_lea.hbm %s1, %s437
    %s439 = scalar_lea.vmem [#allocation5], 25
    %s440 = scalar_lea.sflag [#allocation2], 25
    // Predicated region
    $region102: #{tpu_custom_call.1} parent=1 // pred_check
      _
    $region103: #{tpu_custom_call.1} parent=1 // pred_check_branch
      %442 = sbr.rel target = $region105
    $region104: #{tpu_custom_call.1} parent=1 // pred_region
      %443 = sst [smem:[#allocation9]] [#allocation60]
      %444 = sst [smem:[#allocation10]] [#allocation59]
    $region105: #{tpu_custom_call.1} parent=1 // pred_fallthru
      _
    %446 = shalt.err (0)
    %s448 = sshll.u32 %s439, 4
    %s449 = int_to_ptr.vmem [resolvable:$true] %s448
    %451 = dma.hbm_to_vmem [thread:$0]  %s438, 16, %s449, %s440
    %s452 = sadd.s32 %s12, 26
    %s453 = sld [smem:[#allocation4 + %s452]]
    %s454 = smul.addr %s453, 16
    %s455 = scalar_lea.hbm %s1, %s454
    %s456 = scalar_lea.vmem [#allocation5], 26
    %s457 = scalar_lea.sflag [#allocation2], 26
    // Predicated region
    $region106: #{tpu_custom_call.1} parent=1 // pred_check
      _
    $region107: #{tpu_custom_call.1} parent=1 // pred_check_branch
      %459 = sbr.rel target = $region109
    $region108: #{tpu_custom_call.1} parent=1 // pred_region
      %460 = sst [smem:[#allocation9]] [#allocation62]
      %461 = sst [smem:[#allocation10]] [#allocation61]
    $region109: #{tpu_custom_call.1} parent=1 // pred_fallthru
      _
    %463 = shalt.err (0)
    %s465 = sshll.u32 %s456, 4
    %s466 = int_to_ptr.vmem [resolvable:$true] %s465
    %468 = dma.hbm_to_vmem [thread:$0]  %s455, 16, %s466, %s457
    %s469 = sadd.s32 %s12, 27
    %s470 = sld [smem:[#allocation4 + %s469]]
    %s471 = smul.addr %s470, 16
    %s472 = scalar_lea.hbm %s1, %s471
    %s473 = scalar_lea.vmem [#allocation5], 27
    %s474 = scalar_lea.sflag [#allocation2], 27
    // Predicated region
    $region110: #{tpu_custom_call.1} parent=1 // pred_check
      _
    $region111: #{tpu_custom_call.1} parent=1 // pred_check_branch
      %476 = sbr.rel target = $region113
    $region112: #{tpu_custom_call.1} parent=1 // pred_region
      %477 = sst [smem:[#allocation9]] [#allocation64]
      %478 = sst [smem:[#allocation10]] [#allocation63]
    $region113: #{tpu_custom_call.1} parent=1 // pred_fallthru
      _
    %480 = shalt.err (0)
    %s482 = sshll.u32 %s473, 4
    %s483 = int_to_ptr.vmem [resolvable:$true] %s482
    %485 = dma.hbm_to_vmem [thread:$0]  %s472, 16, %s483, %s474
    %s486 = sadd.s32 %s12, 28
    %s487 = sld [smem:[#allocation4 + %s486]]
    %s488 = smul.addr %s487, 16
    %s489 = scalar_lea.hbm %s1, %s488
    %s490 = scalar_lea.vmem [#allocation5], 28
    %s491 = scalar_lea.sflag [#allocation2], 28
    // Predicated region
    $region114: #{tpu_custom_call.1} parent=1 // pred_check
      _
    $region115: #{tpu_custom_call.1} parent=1 // pred_check_branch
      %493 = sbr.rel target = $region117
    $region116: #{tpu_custom_call.1} parent=1 // pred_region
      %494 = sst [smem:[#allocation9]] [#allocation66]
      %495 = sst [smem:[#allocation10]] [#allocation65]
    $region117: #{tpu_custom_call.1} parent=1 // pred_fallthru
      _
    %497 = shalt.err (0)
    %s499 = sshll.u32 %s490, 4
    %s500 = int_to_ptr.vmem [resolvable:$true] %s499
    %502 = dma.hbm_to_vmem [thread:$0]  %s489, 16, %s500, %s491
    %s503 = sadd.s32 %s12, 29
    %s504 = sld [smem:[#allocation4 + %s503]]
    %s505 = smul.addr %s504, 16
    %s506 = scalar_lea.hbm %s1, %s505
    %s507 = scalar_lea.vmem [#allocation5], 29
    %s508 = scalar_lea.sflag [#allocation2], 29
    // Predicated region
    $region118: #{tpu_custom_call.1} parent=1 // pred_check
      _
    $region119: #{tpu_custom_call.1} parent=1 // pred_check_branch
      %510 = sbr.rel target = $region121
    $region120: #{tpu_custom_call.1} parent=1 // pred_region
      %511 = sst [smem:[#allocation9]] [#allocation68]
      %512 = sst [smem:[#allocation10]] [#allocation67]
    $region121: #{tpu_custom_call.1} parent=1 // pred_fallthru
      _
    %514 = shalt.err (0)
    %s516 = sshll.u32 %s507, 4
    %s517 = int_to_ptr.vmem [resolvable:$true] %s516
    %519 = dma.hbm_to_vmem [thread:$0]  %s506, 16, %s517, %s508
    %s520 = sadd.s32 %s12, 30
    %s521 = sld [smem:[#allocation4 + %s520]]
    %s522 = smul.addr %s521, 16
    %s523 = scalar_lea.hbm %s1, %s522
    %s524 = scalar_lea.vmem [#allocation5], 30
    %s525 = scalar_lea.sflag [#allocation2], 30
    // Predicated region
    $region122: #{tpu_custom_call.1} parent=1 // pred_check
      _
    $region123: #{tpu_custom_call.1} parent=1 // pred_check_branch
      %527 = sbr.rel target = $region125
    $region124: #{tpu_custom_call.1} parent=1 // pred_region
      %528 = sst [smem:[#allocation9]] [#allocation70]
      %529 = sst [smem:[#allocation10]] [#allocation69]
    $region125: #{tpu_custom_call.1} parent=1 // pred_fallthru
      _
    %531 = shalt.err (0)
    %s533 = sshll.u32 %s524, 4
    %s534 = int_to_ptr.vmem [resolvable:$true] %s533
    %536 = dma.hbm_to_vmem [thread:$0]  %s523, 16, %s534, %s525
    %s537 = sadd.s32 %s12, 31
    %s538 = sld [smem:[#allocation4 + %s537]]
    %s539 = smul.addr %s538, 16
    %s540 = scalar_lea.hbm %s1, %s539
    %s541 = scalar_lea.vmem [#allocation5], 31
    %s542 = scalar_lea.sflag [#allocation2], 31
    // Predicated region
    $region126: #{tpu_custom_call.1} parent=1 // pred_check
      _
    $region127: #{tpu_custom_call.1} parent=1 // pred_check_branch
      %544 = sbr.rel target = $region129
    $region128: #{tpu_custom_call.1} parent=1 // pred_region
      %545 = sst [smem:[#allocation9]] [#allocation72]
      %546 = sst [smem:[#allocation10]] [#allocation71]
    $region129: #{tpu_custom_call.1} parent=1 // pred_fallthru
      _
    %548 = shalt.err (0)
    %s550 = sshll.u32 %s541, 4
    %s551 = int_to_ptr.vmem [resolvable:$true] %s550
    %553 = dma.hbm_to_vmem [thread:$0]  %s540, 16, %s551, %s542
    %s554 = sadd.s32 %s12, 32
    %s555 = sld [smem:[#allocation4 + %s554]]
    %s556 = smul.addr %s555, 16
    %s557 = scalar_lea.hbm %s1, %s556
    %s558 = scalar_lea.vmem [#allocation5], 32
    %s559 = scalar_lea.sflag [#allocation2], 32
    // Predicated region
    $region130: #{tpu_custom_call.1} parent=1 // pred_check
      _
    $region131: #{tpu_custom_call.1} parent=1 // pred_check_branch
      %561 = sbr.rel target = $region133
    $region132: #{tpu_custom_call.1} parent=1 // pred_region
      %562 = sst [smem:[#allocation9]] [#allocation74]
      %563 = sst [smem:[#allocation10]] [#allocation73]
    $region133: #{tpu_custom_call.1} parent=1 // pred_fallthru
      _
    %565 = shalt.err (0)
    %s567 = sshll.u32 %s558, 4
    %s568 = int_to_ptr.vmem [resolvable:$true] %s567
    %570 = dma.hbm_to_vmem [thread:$0]  %s557, 16, %s568, %s559
    %s571 = sadd.s32 %s12, 33
    %s572 = sld [smem:[#allocation4 + %s571]]
    %s573 = smul.addr %s572, 16
    %s574 = scalar_lea.hbm %s1, %s573
    %s575 = scalar_lea.vmem [#allocation5], 33
    %s576 = scalar_lea.sflag [#allocation2], 33
    // Predicated region
    $region134: #{tpu_custom_call.1} parent=1 // pred_check
      _
    $region135: #{tpu_custom_call.1} parent=1 // pred_check_branch
      %578 = sbr.rel target = $region137
    $region136: #{tpu_custom_call.1} parent=1 // pred_region
      %579 = sst [smem:[#allocation9]] [#allocation76]
      %580 = sst [smem:[#allocation10]] [#allocation75]
    $region137: #{tpu_custom_call.1} parent=1 // pred_fallthru
      _
    %582 = shalt.err (0)
    %s584 = sshll.u32 %s575, 4
    %s585 = int_to_ptr.vmem [resolvable:$true] %s584
    %587 = dma.hbm_to_vmem [thread:$0]  %s574, 16, %s585, %s576
    %s588 = sadd.s32 %s12, 34
    %s589 = sld [smem:[#allocation4 + %s588]]
    %s590 = smul.addr %s589, 16
    %s591 = scalar_lea.hbm %s1, %s590
    %s592 = scalar_lea.vmem [#allocation5], 34
    %s593 = scalar_lea.sflag [#allocation2], 34
    // Predicated region
    $region138: #{tpu_custom_call.1} parent=1 // pred_check
      _
    $region139: #{tpu_custom_call.1} parent=1 // pred_check_branch
      %595 = sbr.rel target = $region141
    $region140: #{tpu_custom_call.1} parent=1 // pred_region
      %596 = sst [smem:[#allocation9]] [#allocation78]
      %597 = sst [smem:[#allocation10]] [#allocation77]
    $region141: #{tpu_custom_call.1} parent=1 // pred_fallthru
      _
    %599 = shalt.err (0)
    %s601 = sshll.u32 %s592, 4
    %s602 = int_to_ptr.vmem [resolvable:$true] %s601
    %604 = dma.hbm_to_vmem [thread:$0]  %s591, 16, %s602, %s593
    %s605 = sadd.s32 %s12, 35
    %s606 = sld [smem:[#allocation4 + %s605]]
    %s607 = smul.addr %s606, 16
    %s608 = scalar_lea.hbm %s1, %s607
    %s609 = scalar_lea.vmem [#allocation5], 35
    %s610 = scalar_lea.sflag [#allocation2], 35
    // Predicated region
    $region142: #{tpu_custom_call.1} parent=1 // pred_check
      _
    $region143: #{tpu_custom_call.1} parent=1 // pred_check_branch
      %612 = sbr.rel target = $region145
    $region144: #{tpu_custom_call.1} parent=1 // pred_region
      %613 = sst [smem:[#allocation9]] [#allocation80]
      %614 = sst [smem:[#allocation10]] [#allocation79]
    $region145: #{tpu_custom_call.1} parent=1 // pred_fallthru
      _
    %616 = shalt.err (0)
    %s618 = sshll.u32 %s609, 4
    %s619 = int_to_ptr.vmem [resolvable:$true] %s618
    %621 = dma.hbm_to_vmem [thread:$0]  %s608, 16, %s619, %s610
    %s622 = sadd.s32 %s12, 36
    %s623 = sld [smem:[#allocation4 + %s622]]
    %s624 = smul.addr %s623, 16
    %s625 = scalar_lea.hbm %s1, %s624
    %s626 = scalar_lea.vmem [#allocation5], 36
    %s627 = scalar_lea.sflag [#allocation2], 36
    // Predicated region
    $region146: #{tpu_custom_call.1} parent=1 // pred_check
      _
    $region147: #{tpu_custom_call.1} parent=1 // pred_check_branch
      %629 = sbr.rel target = $region149
    $region148: #{tpu_custom_call.1} parent=1 // pred_region
      %630 = sst [smem:[#allocation9]] [#allocation82]
      %631 = sst [smem:[#allocation10]] [#allocation81]
    $region149: #{tpu_custom_call.1} parent=1 // pred_fallthru
      _
    %633 = shalt.err (0)
    %s635 = sshll.u32 %s626, 4
    %s636 = int_to_ptr.vmem [resolvable:$true] %s635
    %638 = dma.hbm_to_vmem [thread:$0]  %s625, 16, %s636, %s627
    %s639 = sadd.s32 %s12, 37
    %s640 = sld [smem:[#allocation4 + %s639]]
    %s641 = smul.addr %s640, 16
    %s642 = scalar_lea.hbm %s1, %s641
    %s643 = scalar_lea.vmem [#allocation5], 37
    %s644 = scalar_lea.sflag [#allocation2], 37
    // Predicated region
    $region150: #{tpu_custom_call.1} parent=1 // pred_check
      _
    $region151: #{tpu_custom_call.1} parent=1 // pred_check_branch
      %646 = sbr.rel target = $region153
    $region152: #{tpu_custom_call.1} parent=1 // pred_region
      %647 = sst [smem:[#allocation9]] [#allocation84]
      %648 = sst [smem:[#allocation10]] [#allocation83]
    $region153: #{tpu_custom_call.1} parent=1 // pred_fallthru
      _
    %650 = shalt.err (0)
    %s652 = sshll.u32 %s643, 4
    %s653 = int_to_ptr.vmem [resolvable:$true] %s652
    %655 = dma.hbm_to_vmem [thread:$0]  %s642, 16, %s653, %s644
    %s656 = sadd.s32 %s12, 38
    %s657 = sld [smem:[#allocation4 + %s656]]
    %s658 = smul.addr %s657, 16
    %s659 = scalar_lea.hbm %s1, %s658
    %s660 = scalar_lea.vmem [#allocation5], 38
    %s661 = scalar_lea.sflag [#allocation2], 38
    // Predicated region
    $region154: #{tpu_custom_call.1} parent=1 // pred_check
      _
    $region155: #{tpu_custom_call.1} parent=1 // pred_check_branch
      %663 = sbr.rel target = $region157
    $region156: #{tpu_custom_call.1} parent=1 // pred_region
      %664 = sst [smem:[#allocation9]] [#allocation86]
      %665 = sst [smem:[#allocation10]] [#allocation85]
    $region157: #{tpu_custom_call.1} parent=1 // pred_fallthru
      _
    %667 = shalt.err (0)
    %s669 = sshll.u32 %s660, 4
    %s670 = int_to_ptr.vmem [resolvable:$true] %s669
    %672 = dma.hbm_to_vmem [thread:$0]  %s659, 16, %s670, %s661
    %s673 = sadd.s32 %s12, 39
    %s674 = sld [smem:[#allocation4 + %s673]]
    %s675 = smul.addr %s674, 16
    %s676 = scalar_lea.hbm %s1, %s675
    %s677 = scalar_lea.vmem [#allocation5], 39
    %s678 = scalar_lea.sflag [#allocation2], 39
    // Predicated region
    $region158: #{tpu_custom_call.1} parent=1 // pred_check
      _
    $region159: #{tpu_custom_call.1} parent=1 // pred_check_branch
      %680 = sbr.rel target = $region161
    $region160: #{tpu_custom_call.1} parent=1 // pred_region
      %681 = sst [smem:[#allocation9]] [#allocation88]
      %682 = sst [smem:[#allocation10]] [#allocation87]
    $region161: #{tpu_custom_call.1} parent=1 // pred_fallthru
      _
    %684 = shalt.err (0)
    %s686 = sshll.u32 %s677, 4
    %s687 = int_to_ptr.vmem [resolvable:$true] %s686
    %689 = dma.hbm_to_vmem [thread:$0]  %s676, 16, %s687, %s678
    %s690 = sadd.s32 %s12, 40
    %s691 = sld [smem:[#allocation4 + %s690]]
    %s692 = smul.addr %s691, 16
    %s693 = scalar_lea.hbm %s1, %s692
    %s694 = scalar_lea.vmem [#allocation5], 40
    %s695 = scalar_lea.sflag [#allocation2], 40
    // Predicated region
    $region162: #{tpu_custom_call.1} parent=1 // pred_check
      _
    $region163: #{tpu_custom_call.1} parent=1 // pred_check_branch
      %697 = sbr.rel target = $region165
    $region164: #{tpu_custom_call.1} parent=1 // pred_region
      %698 = sst [smem:[#allocation9]] [#allocation90]
      %699 = sst [smem:[#allocation10]] [#allocation89]
    $region165: #{tpu_custom_call.1} parent=1 // pred_fallthru
      _
    %701 = shalt.err (0)
    %s703 = sshll.u32 %s694, 4
    %s704 = int_to_ptr.vmem [resolvable:$true] %s703
    %706 = dma.hbm_to_vmem [thread:$0]  %s693, 16, %s704, %s695
    %s707 = sadd.s32 %s12, 41
    %s708 = sld [smem:[#allocation4 + %s707]]
    %s709 = smul.addr %s708, 16
    %s710 = scalar_lea.hbm %s1, %s709
    %s711 = scalar_lea.vmem [#allocation5], 41
    %s712 = scalar_lea.sflag [#allocation2], 41
    // Predicated region
    $region166: #{tpu_custom_call.1} parent=1 // pred_check
      _
    $region167: #{tpu_custom_call.1} parent=1 // pred_check_branch
      %714 = sbr.rel target = $region169
    $region168: #{tpu_custom_call.1} parent=1 // pred_region
      %715 = sst [smem:[#allocation9]] [#allocation92]
      %716 = sst [smem:[#allocation10]] [#allocation91]
    $region169: #{tpu_custom_call.1} parent=1 // pred_fallthru
      _
    %718 = shalt.err (0)
    %s720 = sshll.u32 %s711, 4
    %s721 = int_to_ptr.vmem [resolvable:$true] %s720
    %723 = dma.hbm_to_vmem [thread:$0]  %s710, 16, %s721, %s712
    %s724 = sadd.s32 %s12, 42
    %s725 = sld [smem:[#allocation4 + %s724]]
    %s726 = smul.addr %s725, 16
    %s727 = scalar_lea.hbm %s1, %s726
    %s728 = scalar_lea.vmem [#allocation5], 42
    %s729 = scalar_lea.sflag [#allocation2], 42
    // Predicated region
    $region170: #{tpu_custom_call.1} parent=1 // pred_check
      _
    $region171: #{tpu_custom_call.1} parent=1 // pred_check_branch
      %731 = sbr.rel target = $region173
    $region172: #{tpu_custom_call.1} parent=1 // pred_region
      %732 = sst [smem:[#allocation9]] [#allocation94]
      %733 = sst [smem:[#allocation10]] [#allocation93]
    $region173: #{tpu_custom_call.1} parent=1 // pred_fallthru
      _
    %735 = shalt.err (0)
    %s737 = sshll.u32 %s728, 4
    %s738 = int_to_ptr.vmem [resolvable:$true] %s737
    %740 = dma.hbm_to_vmem [thread:$0]  %s727, 16, %s738, %s729
    %s741 = sadd.s32 %s12, 43
    %s742 = sld [smem:[#allocation4 + %s741]]
    %s743 = smul.addr %s742, 16
    %s744 = scalar_lea.hbm %s1, %s743
    %s745 = scalar_lea.vmem [#allocation5], 43
    %s746 = scalar_lea.sflag [#allocation2], 43
    // Predicated region
    $region174: #{tpu_custom_call.1} parent=1 // pred_check
      _
    $region175: #{tpu_custom_call.1} parent=1 // pred_check_branch
      %748 = sbr.rel target = $region177
    $region176: #{tpu_custom_call.1} parent=1 // pred_region
      %749 = sst [smem:[#allocation9]] [#allocation96]
      %750 = sst [smem:[#allocation10]] [#allocation95]
    $region177: #{tpu_custom_call.1} parent=1 // pred_fallthru
      _
    %752 = shalt.err (0)
    %s754 = sshll.u32 %s745, 4
    %s755 = int_to_ptr.vmem [resolvable:$true] %s754
    %757 = dma.hbm_to_vmem [thread:$0]  %s744, 16, %s755, %s746
    %s758 = sadd.s32 %s12, 44
    %s759 = sld [smem:[#allocation4 + %s758]]
    %s760 = smul.addr %s759, 16
    %s761 = scalar_lea.hbm %s1, %s760
    %s762 = scalar_lea.vmem [#allocation5], 44
    %s763 = scalar_lea.sflag [#allocation2], 44
    // Predicated region
    $region178: #{tpu_custom_call.1} parent=1 // pred_check
      _
    $region179: #{tpu_custom_call.1} parent=1 // pred_check_branch
      %765 = sbr.rel target = $region181
    $region180: #{tpu_custom_call.1} parent=1 // pred_region
      %766 = sst [smem:[#allocation9]] [#allocation98]
      %767 = sst [smem:[#allocation10]] [#allocation97]
    $region181: #{tpu_custom_call.1} parent=1 // pred_fallthru
      _
    %769 = shalt.err (0)
    %s771 = sshll.u32 %s762, 4
    %s772 = int_to_ptr.vmem [resolvable:$true] %s771
    %774 = dma.hbm_to_vmem [thread:$0]  %s761, 16, %s772, %s763
    %s775 = sadd.s32 %s12, 45
    %s776 = sld [smem:[#allocation4 + %s775]]
    %s777 = smul.addr %s776, 16
    %s778 = scalar_lea.hbm %s1, %s777
    %s779 = scalar_lea.vmem [#allocation5], 45
    %s780 = scalar_lea.sflag [#allocation2], 45
    // Predicated region
    $region182: #{tpu_custom_call.1} parent=1 // pred_check
      _
    $region183: #{tpu_custom_call.1} parent=1 // pred_check_branch
      %782 = sbr.rel target = $region185
    $region184: #{tpu_custom_call.1} parent=1 // pred_region
      %783 = sst [smem:[#allocation9]] [#allocation100]
      %784 = sst [smem:[#allocation10]] [#allocation99]
    $region185: #{tpu_custom_call.1} parent=1 // pred_fallthru
      _
    %786 = shalt.err (0)
    %s788 = sshll.u32 %s779, 4
    %s789 = int_to_ptr.vmem [resolvable:$true] %s788
    %791 = dma.hbm_to_vmem [thread:$0]  %s778, 16, %s789, %s780
    %s792 = sadd.s32 %s12, 46
    %s793 = sld [smem:[#allocation4 + %s792]]
    %s794 = smul.addr %s793, 16
    %s795 = scalar_lea.hbm %s1, %s794
    %s796 = scalar_lea.vmem [#allocation5], 46
    %s797 = scalar_lea.sflag [#allocation2], 46
    // Predicated region
    $region186: #{tpu_custom_call.1} parent=1 // pred_check
      _
    $region187: #{tpu_custom_call.1} parent=1 // pred_check_branch
      %799 = sbr.rel target = $region189
    $region188: #{tpu_custom_call.1} parent=1 // pred_region
      %800 = sst [smem:[#allocation9]] [#allocation102]
      %801 = sst [smem:[#allocation10]] [#allocation101]
    $region189: #{tpu_custom_call.1} parent=1 // pred_fallthru
      _
    %803 = shalt.err (0)
    %s805 = sshll.u32 %s796, 4
    %s806 = int_to_ptr.vmem [resolvable:$true] %s805
    %808 = dma.hbm_to_vmem [thread:$0]  %s795, 16, %s806, %s797
    %s809 = sadd.s32 %s12, 47
    %s810 = sld [smem:[#allocation4 + %s809]]
    %s811 = smul.addr %s810, 16
    %s812 = scalar_lea.hbm %s1, %s811
    %s813 = scalar_lea.vmem [#allocation5], 47
    %s814 = scalar_lea.sflag [#allocation2], 47
    // Predicated region
    $region190: #{tpu_custom_call.1} parent=1 // pred_check
      _
    $region191: #{tpu_custom_call.1} parent=1 // pred_check_branch
      %816 = sbr.rel target = $region193
    $region192: #{tpu_custom_call.1} parent=1 // pred_region
      %817 = sst [smem:[#allocation9]] [#allocation104]
      %818 = sst [smem:[#allocation10]] [#allocation103]
    $region193: #{tpu_custom_call.1} parent=1 // pred_fallthru
      _
    %820 = shalt.err (0)
    %s822 = sshll.u32 %s813, 4
    %s823 = int_to_ptr.vmem [resolvable:$true] %s822
    %825 = dma.hbm_to_vmem [thread:$0]  %s812, 16, %s823, %s814
    %s826 = sadd.s32 %s12, 48
    %s827 = sld [smem:[#allocation4 + %s826]]
    %s828 = smul.addr %s827, 16
    %s829 = scalar_lea.hbm %s1, %s828
    %s830 = scalar_lea.vmem [#allocation5], 48
    %s831 = scalar_lea.sflag [#allocation2], 48
    // Predicated region
    $region194: #{tpu_custom_call.1} parent=1 // pred_check
      _
    $region195: #{tpu_custom_call.1} parent=1 // pred_check_branch
      %833 = sbr.rel target = $region197
    $region196: #{tpu_custom_call.1} parent=1 // pred_region
      %834 = sst [smem:[#allocation9]] [#allocation106]
      %835 = sst [smem:[#allocation10]] [#allocation105]
    $region197: #{tpu_custom_call.1} parent=1 // pred_fallthru
      _
    %837 = shalt.err (0)
    %s839 = sshll.u32 %s830, 4
    %s840 = int_to_ptr.vmem [resolvable:$true] %s839
    %842 = dma.hbm_to_vmem [thread:$0]  %s829, 16, %s840, %s831
    %s843 = sadd.s32 %s12, 49
    %s844 = sld [smem:[#allocation4 + %s843]]
    %s845 = smul.addr %s844, 16
    %s846 = scalar_lea.hbm %s1, %s845
    %s847 = scalar_lea.vmem [#allocation5], 49
    %s848 = scalar_lea.sflag [#allocation2], 49
    // Predicated region
    $region198: #{tpu_custom_call.1} parent=1 // pred_check
      _
    $region199: #{tpu_custom_call.1} parent=1 // pred_check_branch
      %850 = sbr.rel target = $region201
    $region200: #{tpu_custom_call.1} parent=1 // pred_region
      %851 = sst [smem:[#allocation9]] [#allocation108]
      %852 = sst [smem:[#allocation10]] [#allocation107]
    $region201: #{tpu_custom_call.1} parent=1 // pred_fallthru
      _
    %854 = shalt.err (0)
    %s856 = sshll.u32 %s847, 4
    %s857 = int_to_ptr.vmem [resolvable:$true] %s856
    %859 = dma.hbm_to_vmem [thread:$0]  %s846, 16, %s857, %s848
    %s860 = sadd.s32 %s12, 50
    %s861 = sld [smem:[#allocation4 + %s860]]
    %s862 = smul.addr %s861, 16
    %s863 = scalar_lea.hbm %s1, %s862
    %s864 = scalar_lea.vmem [#allocation5], 50
    %s865 = scalar_lea.sflag [#allocation2], 50
    // Predicated region
    $region202: #{tpu_custom_call.1} parent=1 // pred_check
      _
    $region203: #{tpu_custom_call.1} parent=1 // pred_check_branch
      %867 = sbr.rel target = $region205
    $region204: #{tpu_custom_call.1} parent=1 // pred_region
      %868 = sst [smem:[#allocation9]] [#allocation110]
      %869 = sst [smem:[#allocation10]] [#allocation109]
    $region205: #{tpu_custom_call.1} parent=1 // pred_fallthru
      _
    %871 = shalt.err (0)
    %s873 = sshll.u32 %s864, 4
    %s874 = int_to_ptr.vmem [resolvable:$true] %s873
    %876 = dma.hbm_to_vmem [thread:$0]  %s863, 16, %s874, %s865
    %s877 = sadd.s32 %s12, 51
    %s878 = sld [smem:[#allocation4 + %s877]]
    %s879 = smul.addr %s878, 16
    %s880 = scalar_lea.hbm %s1, %s879
    %s881 = scalar_lea.vmem [#allocation5], 51
    %s882 = scalar_lea.sflag [#allocation2], 51
    // Predicated region
    $region206: #{tpu_custom_call.1} parent=1 // pred_check
      _
    $region207: #{tpu_custom_call.1} parent=1 // pred_check_branch
      %884 = sbr.rel target = $region209
    $region208: #{tpu_custom_call.1} parent=1 // pred_region
      %885 = sst [smem:[#allocation9]] [#allocation112]
      %886 = sst [smem:[#allocation10]] [#allocation111]
    $region209: #{tpu_custom_call.1} parent=1 // pred_fallthru
      _
    %888 = shalt.err (0)
    %s890 = sshll.u32 %s881, 4
    %s891 = int_to_ptr.vmem [resolvable:$true] %s890
    %893 = dma.hbm_to_vmem [thread:$0]  %s880, 16, %s891, %s882
    %s894 = sadd.s32 %s12, 52
    %s895 = sld [smem:[#allocation4 + %s894]]
    %s896 = smul.addr %s895, 16
    %s897 = scalar_lea.hbm %s1, %s896
    %s898 = scalar_lea.vmem [#allocation5], 52
    %s899 = scalar_lea.sflag [#allocation2], 52
    // Predicated region
    $region210: #{tpu_custom_call.1} parent=1 // pred_check
      _
    $region211: #{tpu_custom_call.1} parent=1 // pred_check_branch
      %901 = sbr.rel target = $region213
    $region212: #{tpu_custom_call.1} parent=1 // pred_region
      %902 = sst [smem:[#allocation9]] [#allocation114]
      %903 = sst [smem:[#allocation10]] [#allocation113]
    $region213: #{tpu_custom_call.1} parent=1 // pred_fallthru
      _
    %905 = shalt.err (0)
    %s907 = sshll.u32 %s898, 4
    %s908 = int_to_ptr.vmem [resolvable:$true] %s907
    %910 = dma.hbm_to_vmem [thread:$0]  %s897, 16, %s908, %s899
    %s911 = sadd.s32 %s12, 53
    %s912 = sld [smem:[#allocation4 + %s911]]
    %s913 = smul.addr %s912, 16
    %s914 = scalar_lea.hbm %s1, %s913
    %s915 = scalar_lea.vmem [#allocation5], 53
    %s916 = scalar_lea.sflag [#allocation2], 53
    // Predicated region
    $region214: #{tpu_custom_call.1} parent=1 // pred_check
      _
    $region215: #{tpu_custom_call.1} parent=1 // pred_check_branch
      %918 = sbr.rel target = $region217
    $region216: #{tpu_custom_call.1} parent=1 // pred_region
      %919 = sst [smem:[#allocation9]] [#allocation116]
      %920 = sst [smem:[#allocation10]] [#allocation115]
    $region217: #{tpu_custom_call.1} parent=1 // pred_fallthru
      _
    %922 = shalt.err (0)
    %s924 = sshll.u32 %s915, 4
    %s925 = int_to_ptr.vmem [resolvable:$true] %s924
    %927 = dma.hbm_to_vmem [thread:$0]  %s914, 16, %s925, %s916
    %s928 = sadd.s32 %s12, 54
    %s929 = sld [smem:[#allocation4 + %s928]]
    %s930 = smul.addr %s929, 16
    %s931 = scalar_lea.hbm %s1, %s930
    %s932 = scalar_lea.vmem [#allocation5], 54
    %s933 = scalar_lea.sflag [#allocation2], 54
    // Predicated region
    $region218: #{tpu_custom_call.1} parent=1 // pred_check
      _
    $region219: #{tpu_custom_call.1} parent=1 // pred_check_branch
      %935 = sbr.rel target = $region221
    $region220: #{tpu_custom_call.1} parent=1 // pred_region
      %936 = sst [smem:[#allocation9]] [#allocation118]
      %937 = sst [smem:[#allocation10]] [#allocation117]
    $region221: #{tpu_custom_call.1} parent=1 // pred_fallthru
      _
    %939 = shalt.err (0)
    %s941 = sshll.u32 %s932, 4
    %s942 = int_to_ptr.vmem [resolvable:$true] %s941
    %944 = dma.hbm_to_vmem [thread:$0]  %s931, 16, %s942, %s933
    %s945 = sadd.s32 %s12, 55
    %s946 = sld [smem:[#allocation4 + %s945]]
    %s947 = smul.addr %s946, 16
    %s948 = scalar_lea.hbm %s1, %s947
    %s949 = scalar_lea.vmem [#allocation5], 55
    %s950 = scalar_lea.sflag [#allocation2], 55
    // Predicated region
    $region222: #{tpu_custom_call.1} parent=1 // pred_check
      _
    $region223: #{tpu_custom_call.1} parent=1 // pred_check_branch
      %952 = sbr.rel target = $region225
    $region224: #{tpu_custom_call.1} parent=1 // pred_region
      %953 = sst [smem:[#allocation9]] [#allocation120]
      %954 = sst [smem:[#allocation10]] [#allocation119]
    $region225: #{tpu_custom_call.1} parent=1 // pred_fallthru
      _
    %956 = shalt.err (0)
    %s958 = sshll.u32 %s949, 4
    %s959 = int_to_ptr.vmem [resolvable:$true] %s958
    %961 = dma.hbm_to_vmem [thread:$0]  %s948, 16, %s959, %s950
    %s962 = sadd.s32 %s12, 56
    %s963 = sld [smem:[#allocation4 + %s962]]
    %s964 = smul.addr %s963, 16
    %s965 = scalar_lea.hbm %s1, %s964
    %s966 = scalar_lea.vmem [#allocation5], 56
    %s967 = scalar_lea.sflag [#allocation2], 56
    // Predicated region
    $region226: #{tpu_custom_call.1} parent=1 // pred_check
      _
    $region227: #{tpu_custom_call.1} parent=1 // pred_check_branch
      %969 = sbr.rel target = $region229
    $region228: #{tpu_custom_call.1} parent=1 // pred_region
      %970 = sst [smem:[#allocation9]] [#allocation122]
      %971 = sst [smem:[#allocation10]] [#allocation121]
    $region229: #{tpu_custom_call.1} parent=1 // pred_fallthru
      _
    %973 = shalt.err (0)
    %s975 = sshll.u32 %s966, 4
    %s976 = int_to_ptr.vmem [resolvable:$true] %s975
    %978 = dma.hbm_to_vmem [thread:$0]  %s965, 16, %s976, %s967
    %s979 = sadd.s32 %s12, 57
    %s980 = sld [smem:[#allocation4 + %s979]]
    %s981 = smul.addr %s980, 16
    %s982 = scalar_lea.hbm %s1, %s981
    %s983 = scalar_lea.vmem [#allocation5], 57
    %s984 = scalar_lea.sflag [#allocation2], 57
    // Predicated region
    $region230: #{tpu_custom_call.1} parent=1 // pred_check
      _
    $region231: #{tpu_custom_call.1} parent=1 // pred_check_branch
      %986 = sbr.rel target = $region233
    $region232: #{tpu_custom_call.1} parent=1 // pred_region
      %987 = sst [smem:[#allocation9]] [#allocation124]
      %988 = sst [smem:[#allocation10]] [#allocation123]
    $region233: #{tpu_custom_call.1} parent=1 // pred_fallthru
      _
    %990 = shalt.err (0)
    %s992 = sshll.u32 %s983, 4
    %s993 = int_to_ptr.vmem [resolvable:$true] %s992
    %995 = dma.hbm_to_vmem [thread:$0]  %s982, 16, %s993, %s984
    %s996 = sadd.s32 %s12, 58
    %s997 = sld [smem:[#allocation4 + %s996]]
    %s998 = smul.addr %s997, 16
    %s999 = scalar_lea.hbm %s1, %s998
    %s1000 = scalar_lea.vmem [#allocation5], 58
    %s1001 = scalar_lea.sflag [#allocation2], 58
    // Predicated region
    $region234: #{tpu_custom_call.1} parent=1 // pred_check
      _
    $region235: #{tpu_custom_call.1} parent=1 // pred_check_branch
      %1003 = sbr.rel target = $region237
    $region236: #{tpu_custom_call.1} parent=1 // pred_region
      %1004 = sst [smem:[#allocation9]] [#allocation126]
      %1005 = sst [smem:[#allocation10]] [#allocation125]
    $region237: #{tpu_custom_call.1} parent=1 // pred_fallthru
      _
    %1007 = shalt.err (0)
    %s1009 = sshll.u32 %s1000, 4
    %s1010 = int_to_ptr.vmem [resolvable:$true] %s1009
    %1012 = dma.hbm_to_vmem [thread:$0]  %s999, 16, %s1010, %s1001
    %s1013 = sadd.s32 %s12, 59
    %s1014 = sld [smem:[#allocation4 + %s1013]]
    %s1015 = smul.addr %s1014, 16
    %s1016 = scalar_lea.hbm %s1, %s1015
    %s1017 = scalar_lea.vmem [#allocation5], 59
    %s1018 = scalar_lea.sflag [#allocation2], 59
    // Predicated region
    $region238: #{tpu_custom_call.1} parent=1 // pred_check
      _
    $region239: #{tpu_custom_call.1} parent=1 // pred_check_branch
      %1020 = sbr.rel target = $region241
    $region240: #{tpu_custom_call.1} parent=1 // pred_region
      %1021 = sst [smem:[#allocation9]] [#allocation128]
      %1022 = sst [smem:[#allocation10]] [#allocation127]
    $region241: #{tpu_custom_call.1} parent=1 // pred_fallthru
      _
    %1024 = shalt.err (0)
    %s1026 = sshll.u32 %s1017, 4
    %s1027 = int_to_ptr.vmem [resolvable:$true] %s1026
    %1029 = dma.hbm_to_vmem [thread:$0]  %s1016, 16, %s1027, %s1018
    %s1030 = sadd.s32 %s12, 60
    %s1031 = sld [smem:[#allocation4 + %s1030]]
    %s1032 = smul.addr %s1031, 16
    %s1033 = scalar_lea.hbm %s1, %s1032
    %s1034 = scalar_lea.vmem [#allocation5], 60
    %s1035 = scalar_lea.sflag [#allocation2], 60
    // Predicated region
    $region242: #{tpu_custom_call.1} parent=1 // pred_check
      _
    $region243: #{tpu_custom_call.1} parent=1 // pred_check_branch
      %1037 = sbr.rel target = $region245
    $region244: #{tpu_custom_call.1} parent=1 // pred_region
      %1038 = sst [smem:[#allocation9]] [#allocation130]
      %1039 = sst [smem:[#allocation10]] [#allocation129]
    $region245: #{tpu_custom_call.1} parent=1 // pred_fallthru
      _
    %1041 = shalt.err (0)
    %s1043 = sshll.u32 %s1034, 4
    %s1044 = int_to_ptr.vmem [resolvable:$true] %s1043
    %1046 = dma.hbm_to_vmem [thread:$0]  %s1033, 16, %s1044, %s1035
    %s1047 = sadd.s32 %s12, 61
    %s1048 = sld [smem:[#allocation4 + %s1047]]
    %s1049 = smul.addr %s1048, 16
    %s1050 = scalar_lea.hbm %s1, %s1049
    %s1051 = scalar_lea.vmem [#allocation5], 61
    %s1052 = scalar_lea.sflag [#allocation2], 61
    // Predicated region
    $region246: #{tpu_custom_call.1} parent=1 // pred_check
      _
    $region247: #{tpu_custom_call.1} parent=1 // pred_check_branch
      %1054 = sbr.rel target = $region249
    $region248: #{tpu_custom_call.1} parent=1 // pred_region
      %1055 = sst [smem:[#allocation9]] [#allocation132]
      %1056 = sst [smem:[#allocation10]] [#allocation131]
    $region249: #{tpu_custom_call.1} parent=1 // pred_fallthru
      _
    %1058 = shalt.err (0)
    %s1060 = sshll.u32 %s1051, 4
    %s1061 = int_to_ptr.vmem [resolvable:$true] %s1060
    %1063 = dma.hbm_to_vmem [thread:$0]  %s1050, 16, %s1061, %s1052
    %s1064 = sadd.s32 %s12, 62
    %s1065 = sld [smem:[#allocation4 + %s1064]]
    %s1066 = smul.addr %s1065, 16
    %s1067 = scalar_lea.hbm %s1, %s1066
    %s1068 = scalar_lea.vmem [#allocation5], 62
    %s1069 = scalar_lea.sflag [#allocation2], 62
    // Predicated region
    $region250: #{tpu_custom_call.1} parent=1 // pred_check
      _
    $region251: #{tpu_custom_call.1} parent=1 // pred_check_branch
      %1071 = sbr.rel target = $region253
    $region252: #{tpu_custom_call.1} parent=1 // pred_region
      %1072 = sst [smem:[#allocation9]] [#allocation134]
      %1073 = sst [smem:[#allocation10]] [#allocation133]
    $region253: #{tpu_custom_call.1} parent=1 // pred_fallthru
      _
    %1075 = shalt.err (0)
    %s1077 = sshll.u32 %s1068, 4
    %s1078 = int_to_ptr.vmem [resolvable:$true] %s1077
    %1080 = dma.hbm_to_vmem [thread:$0]  %s1067, 16, %s1078, %s1069
    %s1081 = sadd.s32 %s12, 63
    %s1082 = sld [smem:[#allocation4 + %s1081]]
    %s1083 = smul.addr %s1082, 16
    %s1084 = scalar_lea.hbm %s1, %s1083
    %s1085 = scalar_lea.vmem [#allocation5], 63
    %s1086 = scalar_lea.sflag [#allocation2], 63
    // Predicated region
    $region254: #{tpu_custom_call.1} parent=1 // pred_check
      _
    $region255: #{tpu_custom_call.1} parent=1 // pred_check_branch
      %1088 = sbr.rel target = $region257
    $region256: #{tpu_custom_call.1} parent=1 // pred_region
      %1089 = sst [smem:[#allocation9]] [#allocation136]
      %1090 = sst [smem:[#allocation10]] [#allocation135]
    $region257: #{tpu_custom_call.1} parent=1 // pred_fallthru
      _
    %1092 = shalt.err (0)
    %s1094 = sshll.u32 %s1085, 4
    %s1095 = int_to_ptr.vmem [resolvable:$true] %s1094
    %1097 = dma.hbm_to_vmem [thread:$0]  %s1084, 16, %s1095, %s1086
    %s1098 = sld [smem:[#allocation4 + %s12]]
    %1100 = dma.done [#allocation2], 16
    %s1101 = sld [smem:[#allocation4 + %s27]]
    %1103 = dma.done %s32, 16
    %s1104 = sld [smem:[#allocation4 + %s44]]
    %1106 = dma.done %s49, 16
    %s1107 = sld [smem:[#allocation4 + %s61]]
    %1109 = dma.done %s66, 16
    %s1110 = sld [smem:[#allocation4 + %s78]]
    %1112 = dma.done %s83, 16
    %s1113 = sld [smem:[#allocation4 + %s95]]
    %1115 = dma.done %s100, 16
    %s1116 = sld [smem:[#allocation4 + %s112]]
    %1118 = dma.done %s117, 16
    %s1119 = sld [smem:[#allocation4 + %s129]]
    %1121 = dma.done %s134, 16
    %s1122 = sld [smem:[#allocation4 + %s146]]
    %1124 = dma.done %s151, 16
    %s1125 = sld [smem:[#allocation4 + %s163]]
    %1127 = dma.done %s168, 16
    %s1128 = sld [smem:[#allocation4 + %s180]]
    %1130 = dma.done %s185, 16
    %s1131 = sld [smem:[#allocation4 + %s197]]
    %1133 = dma.done %s202, 16
    %s1134 = sld [smem:[#allocation4 + %s214]]
    %1136 = dma.done %s219, 16
    %s1137 = sld [smem:[#allocation4 + %s231]]
    %1139 = dma.done %s236, 16
    %s1140 = sld [smem:[#allocation4 + %s248]]
    %1142 = dma.done %s253, 16
    %s1143 = sld [smem:[#allocation4 + %s265]]
    %1145 = dma.done %s270, 16
    %s1146 = sld [smem:[#allocation4 + %s282]]
    %1148 = dma.done %s287, 16
    %s1149 = sld [smem:[#allocation4 + %s299]]
    %1151 = dma.done %s304, 16
    %s1152 = sld [smem:[#allocation4 + %s316]]
    %1154 = dma.done %s321, 16
    %s1155 = sld [smem:[#allocation4 + %s333]]
    %1157 = dma.done %s338, 16
    %s1158 = sld [smem:[#allocation4 + %s350]]
    %1160 = dma.done %s355, 16
    %s1161 = sld [smem:[#allocation4 + %s367]]
    %1163 = dma.done %s372, 16
    %s1164 = sld [smem:[#allocation4 + %s384]]
    %1166 = dma.done %s389, 16
    %s1167 = sld [smem:[#allocation4 + %s401]]
    %1169 = dma.done %s406, 16
    %s1170 = sld [smem:[#allocation4 + %s418]]
    %1172 = dma.done %s423, 16
    %s1173 = sld [smem:[#allocation4 + %s435]]
    %1175 = dma.done %s440, 16
    %s1176 = sld [smem:[#allocation4 + %s452]]
    %1178 = dma.done %s457, 16
    %s1179 = sld [smem:[#allocation4 + %s469]]
    %1181 = dma.done %s474, 16
    %s1182 = sld [smem:[#allocation4 + %s486]]
    %1184 = dma.done %s491, 16
    %s1185 = sld [smem:[#allocation4 + %s503]]
    %1187 = dma.done %s508, 16
    %s1188 = sld [smem:[#allocation4 + %s520]]
    %1190 = dma.done %s525, 16
    %s1191 = sld [smem:[#allocation4 + %s537]]
    %1193 = dma.done %s542, 16
    %s1194 = sld [smem:[#allocation4 + %s554]]
    %1196 = dma.done %s559, 16
    %s1197 = sld [smem:[#allocation4 + %s571]]
    %1199 = dma.done %s576, 16
    %s1200 = sld [smem:[#allocation4 + %s588]]
    %1202 = dma.done %s593, 16
    %s1203 = sld [smem:[#allocation4 + %s605]]
    %1205 = dma.done %s610, 16
    %s1206 = sld [smem:[#allocation4 + %s622]]
    %1208 = dma.done %s627, 16
    %s1209 = sld [smem:[#allocation4 + %s639]]
    %1211 = dma.done %s644, 16
    %s1212 = sld [smem:[#allocation4 + %s656]]
    %1214 = dma.done %s661, 16
    %s1215 = sld [smem:[#allocation4 + %s673]]
    %1217 = dma.done %s678, 16
    %s1218 = sld [smem:[#allocation4 + %s690]]
    %1220 = dma.done %s695, 16
    %s1221 = sld [smem:[#allocation4 + %s707]]
    %1223 = dma.done %s712, 16
    %s1224 = sld [smem:[#allocation4 + %s724]]
    %1226 = dma.done %s729, 16
    %s1227 = sld [smem:[#allocation4 + %s741]]
    %1229 = dma.done %s746, 16
    %s1230 = sld [smem:[#allocation4 + %s758]]
    %1232 = dma.done %s763, 16
    %s1233 = sld [smem:[#allocation4 + %s775]]
    %1235 = dma.done %s780, 16
    %s1236 = sld [smem:[#allocation4 + %s792]]
    %1238 = dma.done %s797, 16
    %s1239 = sld [smem:[#allocation4 + %s809]]
    %1241 = dma.done %s814, 16
    %s1242 = sld [smem:[#allocation4 + %s826]]
    %1244 = dma.done %s831, 16
    %s1245 = sld [smem:[#allocation4 + %s843]]
    %1247 = dma.done %s848, 16
    %s1248 = sld [smem:[#allocation4 + %s860]]
    %1250 = dma.done %s865, 16
    %s1251 = sld [smem:[#allocation4 + %s877]]
    %1253 = dma.done %s882, 16
    %s1254 = sld [smem:[#allocation4 + %s894]]
    %1256 = dma.done %s899, 16
    %s1257 = sld [smem:[#allocation4 + %s911]]
    %1259 = dma.done %s916, 16
    %s1260 = sld [smem:[#allocation4 + %s928]]
    %1262 = dma.done %s933, 16
    %s1263 = sld [smem:[#allocation4 + %s945]]
    %1265 = dma.done %s950, 16
    %s1266 = sld [smem:[#allocation4 + %s962]]
    %1268 = dma.done %s967, 16
    %s1269 = sld [smem:[#allocation4 + %s979]]
    %1271 = dma.done %s984, 16
    %s1272 = sld [smem:[#allocation4 + %s996]]
    %1274 = dma.done %s1001, 16
    %s1275 = sld [smem:[#allocation4 + %s1013]]
    %1277 = dma.done %s1018, 16
    %s1278 = sld [smem:[#allocation4 + %s1030]]
    %1280 = dma.done %s1035, 16
    %s1281 = sld [smem:[#allocation4 + %s1047]]
    %1283 = dma.done %s1052, 16
    %s1284 = sld [smem:[#allocation4 + %s1064]]
    %1286 = dma.done %s1069, 16
    %s1287 = sld [smem:[#allocation4 + %s1081]]
    %1289 = dma.done %s1086, 16
    // Predicated region
    $region258: #{tpu_custom_call.1} parent=1 // pred_check
      _
    $region259: #{tpu_custom_call.1} parent=1 // pred_check_branch
      %1291 = sbr.rel (0) target = $region261
    $region260: #{tpu_custom_call.1} parent=1 // pred_region
      %s1293 = ssub.s32 1024, 1024
      %1294 = vsyncadd [#allocation6], %s1293
      %s1295 = sshll.u32 [#allocation5], 4
      %s1296 = int_to_ptr.vmem [resolvable:$true] %s1295
      %1301 = dma.vmem_to_hbm [thread:$0]  %s1296, 1024, %s2, [#allocation6], 128, 128, 8
    $region261: #{tpu_custom_call.1} parent=1 // pred_fallthru
      _
    // Predicated region
    $region262: #{tpu_custom_call.1} parent=1 // pred_check
      _
    $region263: #{tpu_custom_call.1} parent=1 // pred_check_branch
      %1303 = sbr.rel (0) target = $region265
    $region264: #{tpu_custom_call.1} parent=1 // pred_region
      %1304 = dma.done [#allocation6], 1024
    $region265: #{tpu_custom_call.1} parent=1 // pred_fallthru
      _
    %1305 = vsyncpa [#allocation6], 1
  %1306 = vsyncmov [#allocation2]
  %s1307 = vpop.sfrf %1306
  %p1308 = scmp.eq.s32.totalorder %s1307, 0
  %p1309 = pneg %p1308
  %1311 = shalt.err (%p1309)
  %s1312 = scalar_lea.sflag [#allocation2], 1
  %1313 = vsyncmov %s1312
  %s1314 = vpop.sfrf %1313
  %p1315 = scmp.eq.s32.totalorder %s1314, 0
  %p1316 = pneg %p1315
  %1318 = shalt.err (%p1316)
  %s1319 = scalar_lea.sflag [#allocation2], 2
  %1320 = vsyncmov %s1319
  %s1321 = vpop.sfrf %1320
  %p1322 = scmp.eq.s32.totalorder %s1321, 0
  %p1323 = pneg %p1322
  %1325 = shalt.err (%p1323)
  %s1326 = scalar_lea.sflag [#allocation2], 3
  %1327 = vsyncmov %s1326
  %s1328 = vpop.sfrf %1327
  %p1329 = scmp.eq.s32.totalorder %s1328, 0
  %p1330 = pneg %p1329
  %1332 = shalt.err (%p1330)
  %s1333 = scalar_lea.sflag [#allocation2], 4
  %1334 = vsyncmov %s1333
  %s1335 = vpop.sfrf %1334
  %p1336 = scmp.eq.s32.totalorder %s1335, 0
  %p1337 = pneg %p1336
  %1339 = shalt.err (%p1337)
  %s1340 = scalar_lea.sflag [#allocation2], 5
  %1341 = vsyncmov %s1340
  %s1342 = vpop.sfrf %1341
  %p1343 = scmp.eq.s32.totalorder %s1342, 0
  %p1344 = pneg %p1343
  %1346 = shalt.err (%p1344)
  %s1347 = scalar_lea.sflag [#allocation2], 6
  %1348 = vsyncmov %s1347
  %s1349 = vpop.sfrf %1348
  %p1350 = scmp.eq.s32.totalorder %s1349, 0
  %p1351 = pneg %p1350
  %1353 = shalt.err (%p1351)
  %s1354 = scalar_lea.sflag [#allocation2], 7
  %1355 = vsyncmov %s1354
  %s1356 = vpop.sfrf %1355
  %p1357 = scmp.eq.s32.totalorder %s1356, 0
  %p1358 = pneg %p1357
  %1360 = shalt.err (%p1358)
  %s1361 = scalar_lea.sflag [#allocation2], 8
  %1362 = vsyncmov %s1361
  %s1363 = vpop.sfrf %1362
  %p1364 = scmp.eq.s32.totalorder %s1363, 0
  %p1365 = pneg %p1364
  %1367 = shalt.err (%p1365)
  %s1368 = scalar_lea.sflag [#allocation2], 9
  %1369 = vsyncmov %s1368
  %s1370 = vpop.sfrf %1369
  %p1371 = scmp.eq.s32.totalorder %s1370, 0
  %p1372 = pneg %p1371
  %1374 = shalt.err (%p1372)
  %s1375 = scalar_lea.sflag [#allocation2], 10
  %1376 = vsyncmov %s1375
  %s1377 = vpop.sfrf %1376
  %p1378 = scmp.eq.s32.totalorder %s1377, 0
  %p1379 = pneg %p1378
  %1381 = shalt.err (%p1379)
  %s1382 = scalar_lea.sflag [#allocation2], 11
  %1383 = vsyncmov %s1382
  %s1384 = vpop.sfrf %1383
  %p1385 = scmp.eq.s32.totalorder %s1384, 0
  %p1386 = pneg %p1385
  %1388 = shalt.err (%p1386)
  %s1389 = scalar_lea.sflag [#allocation2], 12
  %1390 = vsyncmov %s1389
  %s1391 = vpop.sfrf %1390
  %p1392 = scmp.eq.s32.totalorder %s1391, 0
  %p1393 = pneg %p1392
  %1395 = shalt.err (%p1393)
  %s1396 = scalar_lea.sflag [#allocation2], 13
  %1397 = vsyncmov %s1396
  %s1398 = vpop.sfrf %1397
  %p1399 = scmp.eq.s32.totalorder %s1398, 0
  %p1400 = pneg %p1399
  %1402 = shalt.err (%p1400)
  %s1403 = scalar_lea.sflag [#allocation2], 14
  %1404 = vsyncmov %s1403
  %s1405 = vpop.sfrf %1404
  %p1406 = scmp.eq.s32.totalorder %s1405, 0
  %p1407 = pneg %p1406
  %1409 = shalt.err (%p1407)
  %s1410 = scalar_lea.sflag [#allocation2], 15
  %1411 = vsyncmov %s1410
  %s1412 = vpop.sfrf %1411
  %p1413 = scmp.eq.s32.totalorder %s1412, 0
  %p1414 = pneg %p1413
  %1416 = shalt.err (%p1414)
  %s1417 = scalar_lea.sflag [#allocation2], 16
  %1418 = vsyncmov %s1417
  %s1419 = vpop.sfrf %1418
  %p1420 = scmp.eq.s32.totalorder %s1419, 0
  %p1421 = pneg %p1420
  %1423 = shalt.err (%p1421)
  %s1424 = scalar_lea.sflag [#allocation2], 17
  %1425 = vsyncmov %s1424
  %s1426 = vpop.sfrf %1425
  %p1427 = scmp.eq.s32.totalorder %s1426, 0
  %p1428 = pneg %p1427
  %1430 = shalt.err (%p1428)
  %s1431 = scalar_lea.sflag [#allocation2], 18
  %1432 = vsyncmov %s1431
  %s1433 = vpop.sfrf %1432
  %p1434 = scmp.eq.s32.totalorder %s1433, 0
  %p1435 = pneg %p1434
  %1437 = shalt.err (%p1435)
  %s1438 = scalar_lea.sflag [#allocation2], 19
  %1439 = vsyncmov %s1438
  %s1440 = vpop.sfrf %1439
  %p1441 = scmp.eq.s32.totalorder %s1440, 0
  %p1442 = pneg %p1441
  %1444 = shalt.err (%p1442)
  %s1445 = scalar_lea.sflag [#allocation2], 20
  %1446 = vsyncmov %s1445
  %s1447 = vpop.sfrf %1446
  %p1448 = scmp.eq.s32.totalorder %s1447, 0
  %p1449 = pneg %p1448
  %1451 = shalt.err (%p1449)
  %s1452 = scalar_lea.sflag [#allocation2], 21
  %1453 = vsyncmov %s1452
  %s1454 = vpop.sfrf %1453
  %p1455 = scmp.eq.s32.totalorder %s1454, 0
  %p1456 = pneg %p1455
  %1458 = shalt.err (%p1456)
  %s1459 = scalar_lea.sflag [#allocation2], 22
  %1460 = vsyncmov %s1459
  %s1461 = vpop.sfrf %1460
  %p1462 = scmp.eq.s32.totalorder %s1461, 0
  %p1463 = pneg %p1462
  %1465 = shalt.err (%p1463)
  %s1466 = scalar_lea.sflag [#allocation2], 23
  %1467 = vsyncmov %s1466
  %s1468 = vpop.sfrf %1467
  %p1469 = scmp.eq.s32.totalorder %s1468, 0
  %p1470 = pneg %p1469
  %1472 = shalt.err (%p1470)
  %s1473 = scalar_lea.sflag [#allocation2], 24
  %1474 = vsyncmov %s1473
  %s1475 = vpop.sfrf %1474
  %p1476 = scmp.eq.s32.totalorder %s1475, 0
  %p1477 = pneg %p1476
  %1479 = shalt.err (%p1477)
  %s1480 = scalar_lea.sflag [#allocation2], 25
  %1481 = vsyncmov %s1480
  %s1482 = vpop.sfrf %1481
  %p1483 = scmp.eq.s32.totalorder %s1482, 0
  %p1484 = pneg %p1483
  %1486 = shalt.err (%p1484)
  %s1487 = scalar_lea.sflag [#allocation2], 26
  %1488 = vsyncmov %s1487
  %s1489 = vpop.sfrf %1488
  %p1490 = scmp.eq.s32.totalorder %s1489, 0
  %p1491 = pneg %p1490
  %1493 = shalt.err (%p1491)
  %s1494 = scalar_lea.sflag [#allocation2], 27
  %1495 = vsyncmov %s1494
  %s1496 = vpop.sfrf %1495
  %p1497 = scmp.eq.s32.totalorder %s1496, 0
  %p1498 = pneg %p1497
  %1500 = shalt.err (%p1498)
  %s1501 = scalar_lea.sflag [#allocation2], 28
  %1502 = vsyncmov %s1501
  %s1503 = vpop.sfrf %1502
  %p1504 = scmp.eq.s32.totalorder %s1503, 0
  %p1505 = pneg %p1504
  %1507 = shalt.err (%p1505)
  %s1508 = scalar_lea.sflag [#allocation2], 29
  %1509 = vsyncmov %s1508
  %s1510 = vpop.sfrf %1509
  %p1511 = scmp.eq.s32.totalorder %s1510, 0
  %p1512 = pneg %p1511
  %1514 = shalt.err (%p1512)
  %s1515 = scalar_lea.sflag [#allocation2], 30
  %1516 = vsyncmov %s1515
  %s1517 = vpop.sfrf %1516
  %p1518 = scmp.eq.s32.totalorder %s1517, 0
  %p1519 = pneg %p1518
  %1521 = shalt.err (%p1519)
  %s1522 = scalar_lea.sflag [#allocation2], 31
  %1523 = vsyncmov %s1522
  %s1524 = vpop.sfrf %1523
  %p1525 = scmp.eq.s32.totalorder %s1524, 0
  %p1526 = pneg %p1525
  %1528 = shalt.err (%p1526)
  %s1529 = scalar_lea.sflag [#allocation2], 32
  %1530 = vsyncmov %s1529
  %s1531 = vpop.sfrf %1530
  %p1532 = scmp.eq.s32.totalorder %s1531, 0
  %p1533 = pneg %p1532
  %1535 = shalt.err (%p1533)
  %s1536 = scalar_lea.sflag [#allocation2], 33
  %1537 = vsyncmov %s1536
  %s1538 = vpop.sfrf %1537
  %p1539 = scmp.eq.s32.totalorder %s1538, 0
  %p1540 = pneg %p1539
  %1542 = shalt.err (%p1540)
  %s1543 = scalar_lea.sflag [#allocation2], 34
  %1544 = vsyncmov %s1543
  %s1545 = vpop.sfrf %1544
  %p1546 = scmp.eq.s32.totalorder %s1545, 0
  %p1547 = pneg %p1546
  %1549 = shalt.err (%p1547)
  %s1550 = scalar_lea.sflag [#allocation2], 35
  %1551 = vsyncmov %s1550
  %s1552 = vpop.sfrf %1551
  %p1553 = scmp.eq.s32.totalorder %s1552, 0
  %p1554 = pneg %p1553
  %1556 = shalt.err (%p1554)
  %s1557 = scalar_lea.sflag [#allocation2], 36
  %1558 = vsyncmov %s1557
  %s1559 = vpop.sfrf %1558
  %p1560 = scmp.eq.s32.totalorder %s1559, 0
  %p1561 = pneg %p1560
  %1563 = shalt.err (%p1561)
  %s1564 = scalar_lea.sflag [#allocation2], 37
  %1565 = vsyncmov %s1564
  %s1566 = vpop.sfrf %1565
  %p1567 = scmp.eq.s32.totalorder %s1566, 0
  %p1568 = pneg %p1567
  %1570 = shalt.err (%p1568)
  %s1571 = scalar_lea.sflag [#allocation2], 38
  %1572 = vsyncmov %s1571
  %s1573 = vpop.sfrf %1572
  %p1574 = scmp.eq.s32.totalorder %s1573, 0
  %p1575 = pneg %p1574
  %1577 = shalt.err (%p1575)
  %s1578 = scalar_lea.sflag [#allocation2], 39
  %1579 = vsyncmov %s1578
  %s1580 = vpop.sfrf %1579
  %p1581 = scmp.eq.s32.totalorder %s1580, 0
  %p1582 = pneg %p1581
  %1584 = shalt.err (%p1582)
  %s1585 = scalar_lea.sflag [#allocation2], 40
  %1586 = vsyncmov %s1585
  %s1587 = vpop.sfrf %1586
  %p1588 = scmp.eq.s32.totalorder %s1587, 0
  %p1589 = pneg %p1588
  %1591 = shalt.err (%p1589)
  %s1592 = scalar_lea.sflag [#allocation2], 41
  %1593 = vsyncmov %s1592
  %s1594 = vpop.sfrf %1593
  %p1595 = scmp.eq.s32.totalorder %s1594, 0
  %p1596 = pneg %p1595
  %1598 = shalt.err (%p1596)
  %s1599 = scalar_lea.sflag [#allocation2], 42
  %1600 = vsyncmov %s1599
  %s1601 = vpop.sfrf %1600
  %p1602 = scmp.eq.s32.totalorder %s1601, 0
  %p1603 = pneg %p1602
  %1605 = shalt.err (%p1603)
  %s1606 = scalar_lea.sflag [#allocation2], 43
  %1607 = vsyncmov %s1606
  %s1608 = vpop.sfrf %1607
  %p1609 = scmp.eq.s32.totalorder %s1608, 0
  %p1610 = pneg %p1609
  %1612 = shalt.err (%p1610)
  %s1613 = scalar_lea.sflag [#allocation2], 44
  %1614 = vsyncmov %s1613
  %s1615 = vpop.sfrf %1614
  %p1616 = scmp.eq.s32.totalorder %s1615, 0
  %p1617 = pneg %p1616
  %1619 = shalt.err (%p1617)
  %s1620 = scalar_lea.sflag [#allocation2], 45
  %1621 = vsyncmov %s1620
  %s1622 = vpop.sfrf %1621
  %p1623 = scmp.eq.s32.totalorder %s1622, 0
  %p1624 = pneg %p1623
  %1626 = shalt.err (%p1624)
  %s1627 = scalar_lea.sflag [#allocation2], 46
  %1628 = vsyncmov %s1627
  %s1629 = vpop.sfrf %1628
  %p1630 = scmp.eq.s32.totalorder %s1629, 0
  %p1631 = pneg %p1630
  %1633 = shalt.err (%p1631)
  %s1634 = scalar_lea.sflag [#allocation2], 47
  %1635 = vsyncmov %s1634
  %s1636 = vpop.sfrf %1635
  %p1637 = scmp.eq.s32.totalorder %s1636, 0
  %p1638 = pneg %p1637
  %1640 = shalt.err (%p1638)
  %s1641 = scalar_lea.sflag [#allocation2], 48
  %1642 = vsyncmov %s1641
  %s1643 = vpop.sfrf %1642
  %p1644 = scmp.eq.s32.totalorder %s1643, 0
  %p1645 = pneg %p1644
  %1647 = shalt.err (%p1645)
  %s1648 = scalar_lea.sflag [#allocation2], 49
  %1649 = vsyncmov %s1648
  %s1650 = vpop.sfrf %1649
  %p1651 = scmp.eq.s32.totalorder %s1650, 0
  %p1652 = pneg %p1651
  %1654 = shalt.err (%p1652)
  %s1655 = scalar_lea.sflag [#allocation2], 50
  %1656 = vsyncmov %s1655
  %s1657 = vpop.sfrf %1656
  %p1658 = scmp.eq.s32.totalorder %s1657, 0
  %p1659 = pneg %p1658
  %1661 = shalt.err (%p1659)
  %s1662 = scalar_lea.sflag [#allocation2], 51
  %1663 = vsyncmov %s1662
  %s1664 = vpop.sfrf %1663
  %p1665 = scmp.eq.s32.totalorder %s1664, 0
  %p1666 = pneg %p1665
  %1668 = shalt.err (%p1666)
  %s1669 = scalar_lea.sflag [#allocation2], 52
  %1670 = vsyncmov %s1669
  %s1671 = vpop.sfrf %1670
  %p1672 = scmp.eq.s32.totalorder %s1671, 0
  %p1673 = pneg %p1672
  %1675 = shalt.err (%p1673)
  %s1676 = scalar_lea.sflag [#allocation2], 53
  %1677 = vsyncmov %s1676
  %s1678 = vpop.sfrf %1677
  %p1679 = scmp.eq.s32.totalorder %s1678, 0
  %p1680 = pneg %p1679
  %1682 = shalt.err (%p1680)
  %s1683 = scalar_lea.sflag [#allocation2], 54
  %1684 = vsyncmov %s1683
  %s1685 = vpop.sfrf %1684
  %p1686 = scmp.eq.s32.totalorder %s1685, 0
  %p1687 = pneg %p1686
  %1689 = shalt.err (%p1687)
  %s1690 = scalar_lea.sflag [#allocation2], 55
  %1691 = vsyncmov %s1690
  %s1692 = vpop.sfrf %1691
  %p1693 = scmp.eq.s32.totalorder %s1692, 0
  %p1694 = pneg %p1693
  %1696 = shalt.err (%p1694)
  %s1697 = scalar_lea.sflag [#allocation2], 56
  %1698 = vsyncmov %s1697
  %s1699 = vpop.sfrf %1698
  %p1700 = scmp.eq.s32.totalorder %s1699, 0
  %p1701 = pneg %p1700
  %1703 = shalt.err (%p1701)
  %s1704 = scalar_lea.sflag [#allocation2], 57
  %1705 = vsyncmov %s1704
  %s1706 = vpop.sfrf %1705
  %p1707 = scmp.eq.s32.totalorder %s1706, 0
  %p1708 = pneg %p1707
  %1710 = shalt.err (%p1708)
  %s1711 = scalar_lea.sflag [#allocation2], 58
  %1712 = vsyncmov %s1711
  %s1713 = vpop.sfrf %1712
  %p1714 = scmp.eq.s32.totalorder %s1713, 0
  %p1715 = pneg %p1714
  %1717 = shalt.err (%p1715)
  %s1718 = scalar_lea.sflag [#allocation2], 59
  %1719 = vsyncmov %s1718
  %s1720 = vpop.sfrf %1719
  %p1721 = scmp.eq.s32.totalorder %s1720, 0
  %p1722 = pneg %p1721
  %1724 = shalt.err (%p1722)
  %s1725 = scalar_lea.sflag [#allocation2], 60
  %1726 = vsyncmov %s1725
  %s1727 = vpop.sfrf %1726
  %p1728 = scmp.eq.s32.totalorder %s1727, 0
  %p1729 = pneg %p1728
  %1731 = shalt.err (%p1729)
  %s1732 = scalar_lea.sflag [#allocation2], 61
  %1733 = vsyncmov %s1732
  %s1734 = vpop.sfrf %1733
  %p1735 = scmp.eq.s32.totalorder %s1734, 0
  %p1736 = pneg %p1735
  %1738 = shalt.err (%p1736)
  %s1739 = scalar_lea.sflag [#allocation2], 62
  %1740 = vsyncmov %s1739
  %s1741 = vpop.sfrf %1740
  %p1742 = scmp.eq.s32.totalorder %s1741, 0
  %p1743 = pneg %p1742
  %1745 = shalt.err (%p1743)
  %s1746 = scalar_lea.sflag [#allocation2], 63
  %1747 = vsyncmov %s1746
  %s1748 = vpop.sfrf %1747
  %p1749 = scmp.eq.s32.totalorder %s1748, 0
  %p1750 = pneg %p1749
  %1752 = shalt.err (%p1750)

</llo_original>
